<compile_context>
chip_gen: v6e
topology: v6e:2x2x1
jax: 0.10.0
libtpu: 0.0.40
codegen_flags: <defaults>
</compile_context>

<pallas_src>
import jax
import jax.numpy as jnp
from jax import lax
from jax.experimental import pallas as pl
from jax.experimental.pallas import tpu as pltpu

# ---- hyperparameters (defaults of the PyTorch module) ----
ACTION_SIZE = 31
SEQ_LEN = 16                     # smallest length for which the module is valid
NOISE_SIZE = 16
EMBED_DIM = 16
HIDDEN = 64                      # hidden_size
L1_SIZE = 64
OUT_DIM = 25 + 4 + ACTION_SIZE   # 60
K1, K2 = 6, 11                   # conv kernel sizes
NEG_SLOPE = 0.01                 # nn.LeakyReLU default negative_slope
NOISE_STD = 1.0
GATES = 4 * HIDDEN               # 256, stacked (i, f, g, o)
IN_DIM = 3 + EMBED_DIM           # 19


def _leaky_relu(x):
    return jnp.where(x > 0, x, NEG_SLOPE * x)


def generator_kernel(data_ref, acts_ref, noise_ref,
                     w_feat_ref, w_emb_ref, w_hh_ref, b_lstm_ref,
                     w1_ref, b1_ref, w2_ref, b2_ref, wl_ref,
                     out_ref):
    TB, S, _ = data_ref.shape
    L1 = S - K1 + 1                                     # conv1 output length (= 11)
    assert L1 == K2, "module requires conv2 output length == 1"

    # ---- embedding lookup (one-hot matmul) + hoisted LSTM input projection ----
    # x_pre[row] = [feat, embed(action)] @ W_ih + (b_ih + b_hh), all 4 gates stacked.
    acts = acts_ref[...].reshape(TB * S, 1)                              # int32
    iota = lax.broadcasted_iota(jnp.int32, (TB * S, ACTION_SIZE), 1)
    onehot = (iota == acts).astype(jnp.bfloat16)                         # (TB*S, 31)
    x_pre = (
        jnp.dot(data_ref[...].reshape(TB * S, 4).astype(jnp.bfloat16),
                w_feat_ref[...], preferred_element_type=jnp.float32)
        + jnp.dot(onehot, w_emb_ref[...], preferred_element_type=jnp.float32)
        + b_lstm_ref[...]
    ).reshape(TB, S, GATES)                                              # (TB, S, 256)

    # ---- LSTM recurrence: ONE fused (TB,64)x(64,256) GEMM per timestep ----
    w_hh = w_hh_ref[...]                                                 # (64, 256) bf16
    h = jnp.zeros((TB, HIDDEN), dtype=jnp.float32)
    c = jnp.zeros((TB, HIDDEN), dtype=jnp.float32)
    hs = []
    for t in range(S):                                                   # static unroll
        gates = x_pre[:, t, :] + jnp.dot(h.astype(jnp.bfloat16), w_hh,
                                         preferred_element_type=jnp.float32)
        i_g = jax.nn.sigmoid(gates[:, 0 * HIDDEN:1 * HIDDEN])
        f_g = jax.nn.sigmoid(gates[:, 1 * HIDDEN:2 * HIDDEN])
        g_g = jnp.tanh(gates[:, 2 * HIDDEN:3 * HIDDEN])
        o_g = jax.nn.sigmoid(gates[:, 3 * HIDDEN:4 * HIDDEN])
        c = f_g * c + i_g * g_g
        h = o_g * jnp.tanh(c)
        hs.append(h)
    lstm_out = jnp.stack(hs, axis=1)                                     # (TB, S, 64)

    # ---- conv1 (K=6) + LeakyReLU as ONE im2col GEMM: (TB*L1, 480) x (480, 64) ----
    seq = jnp.concatenate([lstm_out, noise_ref[...]], axis=2)            # (TB, S, 80)
    slab = jnp.concatenate([seq[:, k:k + L1, :] for k in range(K1)], axis=2)
    y1 = jnp.dot(slab.reshape(TB * L1, K1 * (HIDDEN + NOISE_SIZE)).astype(jnp.bfloat16),
                 w1_ref[...], preferred_element_type=jnp.float32) + b1_ref[...]
    y1 = _leaky_relu(y1)                                                 # (TB*L1, 64)

    # ---- conv2 (K=11 == L1) + LeakyReLU as ONE flattened GEMM: (TB,704)x(704,64) ----
    y1_3d = y1.reshape(TB, L1, L1_SIZE)
    y1_flat = jnp.concatenate([y1_3d[:, k, :] for k in range(L1)], axis=1)   # (TB, 704)
    y2 = jnp.dot(y1_flat.astype(jnp.bfloat16), w2_ref[...],
                 preferred_element_type=jnp.float32) + b2_ref[...]
    y2 = _leaky_relu(y2)                                                 # (TB, 64)

    # ---- Linear (bias=False) + sigmoid, whole batch tile at once ----
    logits = jnp.dot(y2.astype(jnp.bfloat16), wl_ref[...],
                     preferred_element_type=jnp.float32)                 # (TB, 60)
    out_ref[:, 0, :] = jax.nn.sigmoid(logits)


def init_params(key):
    ks = jax.random.split(key, 10)

    def rnd(k, shape, scale=0.1):
        return scale * jax.random.normal(k, shape, dtype=jnp.float32)

    emb = rnd(ks[0], (ACTION_SIZE, EMBED_DIM))
    w_ih = rnd(ks[1], (GATES, IN_DIM))                   # torch weight_ih_l0
    w_hh = rnd(ks[2], (GATES, HIDDEN))                   # torch weight_hh_l0
    b_ih = rnd(ks[3], (GATES,))
    b_hh = rnd(ks[4], (GATES,))
    w1 = rnd(ks[5], (L1_SIZE, HIDDEN + NOISE_SIZE, K1))  # Conv1d (Cout, Cin, K)
    b1 = rnd(ks[6], (L1_SIZE,))
    w2 = rnd(ks[7], (L1_SIZE, L1_SIZE, K2))
    b2 = rnd(ks[8], (L1_SIZE,))
    wl = rnd(ks[9], (OUT_DIM, L1_SIZE))                  # Linear (out, in), bias=False

    # --- host-side layout glue (done once, off the critical path) ---
    w_ih_t = w_ih.T                                      # (19, 256), gate cols (i,f,g,o)
    bf = jnp.bfloat16
    return dict(
        # raw-feature rows of W_ih padded to the 4 raw data channels (action col -> 0)
        w_feat=jnp.concatenate(
            [w_ih_t[:3], jnp.zeros((1, GATES), jnp.float32)], axis=0).astype(bf),  # (4,256)
        # embedding table pre-multiplied by the embedding rows of W_ih
        w_emb=(emb @ w_ih_t[3:]).astype(bf),                             # (31, 256)
        w_hh=w_hh.T.astype(bf),                                          # (64, 256)
        b_lstm=(b_ih + b_hh).reshape(1, GATES),                          # (1, 256) f32
        w1=w1.transpose(2, 1, 0).reshape(K1 * (HIDDEN + NOISE_SIZE),
                                         L1_SIZE).astype(bf),            # (480, 64)
        b1=b1.reshape(1, L1_SIZE),
        w2=w2.transpose(2, 1, 0).reshape(K2 * L1_SIZE, L1_SIZE).astype(bf),  # (704, 64)
        b2=b2.reshape(1, L1_SIZE),
        wl=wl.T.astype(bf),                                              # (64, 60)
    )


def generator_forward(data, params, noise):
    B, S, _ = data.shape
    assert S - K1 + 1 == K2, "module requires conv2 output length == 1"

    # At most 2 batch blocks: one per v7x TensorCore via the "parallel" grid axis;
    # on v5e/v6e (single TC) the extra grid step is negligible at these sizes.
    nb = 2 if (B >= 2 and B % 2 == 0) else 1
    TB = B // nb
    assert B % TB == 0

    data = data.astype(jnp.float32)
    acts = data[:, :, 3:].astype(jnp.int32)              # torch data[:,:,3:].squeeze().long()
    noise = noise.astype(jnp.float32)

    def full2d(arr):
        return pl.BlockSpec(arr.shape, lambda i: (0, 0))

    in_specs = [
        pl.BlockSpec((TB, S, 4), lambda i: (i, 0, 0)),            # data
        pl.BlockSpec((TB, S, 1), lambda i: (i, 0, 0)),            # action ids
        pl.BlockSpec((TB, S, NOISE_SIZE), lambda i: (i, 0, 0)),   # noise
        full2d(params["w_feat"]), full2d(params["w_emb"]),
        full2d(params["w_hh"]), full2d(params["b_lstm"]),
        full2d(params["w1"]), full2d(params["b1"]),
        full2d(params["w2"]), full2d(params["b2"]),
        full2d(params["wl"]),
    ]

    out = pl.pallas_call(
        generator_kernel,
        out_shape=jax.ShapeDtypeStruct((B, 1, OUT_DIM), jnp.float32),
        grid_spec=pltpu.PrefetchScalarGridSpec(
            num_scalar_prefetch=0,
            grid=(nb,),
            in_specs=in_specs,
            out_specs=pl.BlockSpec((TB, 1, OUT_DIM), lambda i: (i, 0, 0)),
        ),
        compiler_params=pltpu.CompilerParams(
            dimension_semantics=("parallel",)),
    )(data, acts, noise,
      params["w_feat"], params["w_emb"], params["w_hh"], params["b_lstm"],
      params["w1"], params["b1"], params["w2"], params["b2"], params["wl"])

    # torch `.squeeze()` (B > 1 case; the B == 1 batch-dim drop is intentionally
    # not replicated — documented deviation).
    return out.reshape(B, OUT_DIM)


if __name__ == "__main__":
    key = jax.random.PRNGKey(0)
    k_param, k_feat, k_act, k_noise = jax.random.split(key, 4)

    B, S = 2, SEQ_LEN
    params = init_params(k_param)

    feats = jax.random.normal(k_feat, (B, S, 3), dtype=jnp.float32)
    action_ids = jax.random.randint(k_act, (B, S, 1), 0, ACTION_SIZE).astype(jnp.float32)
    data = jnp.concatenate([feats, action_ids], axis=2)               # (B, S, 4)

    # make_noise(...) equivalent, generated deterministically on host
    noise = NOISE_STD * jax.random.normal(k_noise, (B, S, NOISE_SIZE), dtype=jnp.float32)

    out = generator_forward(data, params, noise)
    out = jax.block_until_ready(out)
    assert out.shape == (B, OUT_DIM), out.shape
    assert bool(jnp.all(jnp.isfinite(out)))
    assert bool(jnp.all((out >= 0.0) & (out <= 1.0)))                  # sigmoid range
    print("KERNEL_OK")
</pallas_src>

<mosaic_0001>
module attributes {stable_mosaic.version = 11 : i64} {
  func.func @generator_kernel(%arg0: i32, %arg1: memref<1x16x4xf32, #tpu.memory_space<vmem>>, %arg2: memref<1x16x1xi32, #tpu.memory_space<vmem>>, %arg3: memref<1x16x16xf32, #tpu.memory_space<vmem>>, %arg4: memref<4x256xbf16, #tpu.memory_space<vmem>>, %arg5: memref<31x256xbf16, #tpu.memory_space<vmem>>, %arg6: memref<64x256xbf16, #tpu.memory_space<vmem>>, %arg7: memref<1x256xf32, #tpu.memory_space<vmem>>, %arg8: memref<480x64xbf16, #tpu.memory_space<vmem>>, %arg9: memref<1x64xf32, #tpu.memory_space<vmem>>, %arg10: memref<704x64xbf16, #tpu.memory_space<vmem>>, %arg11: memref<1x64xf32, #tpu.memory_space<vmem>>, %arg12: memref<64x60xbf16, #tpu.memory_space<vmem>>, %arg13: memref<1x1x60xf32, #tpu.memory_space<vmem>>) attributes {dimension_semantics = [#tpu.dimension_semantics<parallel>], iteration_bounds = array<i64: 2>, scalar_prefetch = 0 : i64, scratch_operands = 0 : i64, tpu.core_type = #tpu.core_type<tc>, window_params = [{transform_indices = @transform_0, window_bounds = array<i64: 1, 16, 4>}, {transform_indices = @transform_1, window_bounds = array<i64: 1, 16, 1>}, {transform_indices = @transform_2, window_bounds = array<i64: 1, 16, 16>}, {pipeline_mode = #tpu.pipeline_mode<synchronous>, transform_indices = @transform_3, window_bounds = array<i64: 4, 256>}, {pipeline_mode = #tpu.pipeline_mode<synchronous>, transform_indices = @transform_4, window_bounds = array<i64: 31, 256>}, {pipeline_mode = #tpu.pipeline_mode<synchronous>, transform_indices = @transform_5, window_bounds = array<i64: 64, 256>}, {pipeline_mode = #tpu.pipeline_mode<synchronous>, transform_indices = @transform_6, window_bounds = array<i64: 1, 256>}, {pipeline_mode = #tpu.pipeline_mode<synchronous>, transform_indices = @transform_7, window_bounds = array<i64: 480, 64>}, {pipeline_mode = #tpu.pipeline_mode<synchronous>, transform_indices = @transform_8, window_bounds = array<i64: 1, 64>}, {pipeline_mode = #tpu.pipeline_mode<synchronous>, transform_indices = @transform_9, window_bounds = array<i64: 704, 64>}, {pipeline_mode = #tpu.pipeline_mode<synchronous>, transform_indices = @transform_10, window_bounds = array<i64: 1, 64>}, {pipeline_mode = #tpu.pipeline_mode<synchronous>, transform_indices = @transform_11, window_bounds = array<i64: 64, 60>}, {transform_indices = @transform_12, window_bounds = array<i64: 1, 1, 60>}]} {
    %c0 = arith.constant 0 : index
    %c0_0 = arith.constant 0 : index
    %c0_1 = arith.constant 0 : index
    %0 = vector.load %arg2[%c0, %c0_0, %c0_1] : memref<1x16x1xi32, #tpu.memory_space<vmem>>, vector<1x16x1xi32>
    %1 = vector.shape_cast %0 : vector<1x16x1xi32> to vector<16x1xi32>
    %2 = tpu.iota {dimensions = array<i32: 1>} : vector<16x31xi32>
    %3 = vector.broadcast %1 : vector<16x1xi32> to vector<16x31xi32>
    %4 = arith.cmpi eq, %2, %3 : vector<16x31xi32>
    %5 = arith.extui %4 : vector<16x31xi1> to vector<16x31xi32>
    %6 = arith.sitofp %5 : vector<16x31xi32> to vector<16x31xf32>
    %7 = arith.truncf %6 : vector<16x31xf32> to vector<16x31xbf16>
    %c0_2 = arith.constant 0 : index
    %c0_3 = arith.constant 0 : index
    %c0_4 = arith.constant 0 : index
    %8 = vector.load %arg1[%c0_2, %c0_3, %c0_4] : memref<1x16x4xf32, #tpu.memory_space<vmem>>, vector<1x16x4xf32>
    %9 = vector.shape_cast %8 : vector<1x16x4xf32> to vector<16x4xf32>
    %10 = arith.truncf %9 : vector<16x4xf32> to vector<16x4xbf16>
    %c0_5 = arith.constant 0 : index
    %c0_6 = arith.constant 0 : index
    %11 = vector.load %arg4[%c0_5, %c0_6] : memref<4x256xbf16, #tpu.memory_space<vmem>>, vector<4x256xbf16>
    %cst = arith.constant dense<0.000000e+00> : vector<16x256xf32>
    %12 = tpu.matmul %10, %11, %cst {dimension_numbers = #tpu.dot_dimension_numbers<[1], [0], [0], [1], [0, 0, 1, 1], [], []>} : vector<16x4xbf16>, vector<4x256xbf16>, vector<16x256xf32> -> vector<16x256xf32>
    %c0_7 = arith.constant 0 : index
    %c0_8 = arith.constant 0 : index
    %13 = vector.load %arg5[%c0_7, %c0_8] : memref<31x256xbf16, #tpu.memory_space<vmem>>, vector<31x256xbf16>
    %cst_9 = arith.constant dense<0.000000e+00> : vector<16x256xf32>
    %14 = tpu.matmul %7, %13, %cst_9 {dimension_numbers = #tpu.dot_dimension_numbers<[1], [0], [0], [1], [0, 0, 1, 1], [], []>} : vector<16x31xbf16>, vector<31x256xbf16>, vector<16x256xf32> -> vector<16x256xf32>
    %15 = arith.addf %12, %14 : vector<16x256xf32>
    %c0_10 = arith.constant 0 : index
    %c0_11 = arith.constant 0 : index
    %16 = vector.load %arg7[%c0_10, %c0_11] : memref<1x256xf32, #tpu.memory_space<vmem>>, vector<1x256xf32>
    %17 = vector.broadcast %16 : vector<1x256xf32> to vector<16x256xf32>
    %18 = arith.addf %15, %17 : vector<16x256xf32>
    %19 = vector.shape_cast %18 : vector<16x256xf32> to vector<1x16x256xf32>
    %c0_12 = arith.constant 0 : index
    %c0_13 = arith.constant 0 : index
    %20 = vector.load %arg6[%c0_12, %c0_13] : memref<64x256xbf16, #tpu.memory_space<vmem>>, vector<64x256xbf16>
    %cst_14 = arith.constant 0.000000e+00 : f32
    %21 = vector.broadcast %cst_14 : f32 to vector<1x64xf32>
    %cst_15 = arith.constant 0.000000e+00 : f32
    %22 = vector.broadcast %cst_15 : f32 to vector<1x64xf32>
    %23 = vector.extract_strided_slice %19 {offsets = [0, 0, 0], sizes = [1, 1, 256], strides = [1, 1, 1]} : vector<1x16x256xf32> to vector<1x1x256xf32>
    %24 = vector.shape_cast %23 : vector<1x1x256xf32> to vector<1x256xf32>
    %25 = arith.truncf %21 : vector<1x64xf32> to vector<1x64xbf16>
    %cst_16 = arith.constant dense<0.000000e+00> : vector<1x256xf32>
    %26 = tpu.matmul %25, %20, %cst_16 {dimension_numbers = #tpu.dot_dimension_numbers<[1], [0], [0], [1], [0, 0, 1, 1], [], []>} : vector<1x64xbf16>, vector<64x256xbf16>, vector<1x256xf32> -> vector<1x256xf32>
    %27 = arith.addf %24, %26 : vector<1x256xf32>
    %28 = vector.extract_strided_slice %27 {offsets = [0, 0], sizes = [1, 64], strides = [1, 1]} : vector<1x256xf32> to vector<1x64xf32>
    %29 = arith.negf %28 : vector<1x64xf32>
    %30 = math.exp %29 : vector<1x64xf32>
    %cst_17 = arith.constant 1.000000e+00 : f32
    %31 = vector.broadcast %cst_17 : f32 to vector<1x64xf32>
    %32 = arith.addf %31, %30 : vector<1x64xf32>
    %33 = arith.divf %31, %32 : vector<1x64xf32>
    %34 = vector.extract_strided_slice %27 {offsets = [0, 64], sizes = [1, 64], strides = [1, 1]} : vector<1x256xf32> to vector<1x64xf32>
    %35 = arith.negf %34 : vector<1x64xf32>
    %36 = math.exp %35 : vector<1x64xf32>
    %cst_18 = arith.constant 1.000000e+00 : f32
    %37 = vector.broadcast %cst_18 : f32 to vector<1x64xf32>
    %38 = arith.addf %37, %36 : vector<1x64xf32>
    %39 = arith.divf %37, %38 : vector<1x64xf32>
    %40 = vector.extract_strided_slice %27 {offsets = [0, 128], sizes = [1, 64], strides = [1, 1]} : vector<1x256xf32> to vector<1x64xf32>
    %41 = math.tanh %40 : vector<1x64xf32>
    %42 = vector.extract_strided_slice %27 {offsets = [0, 192], sizes = [1, 64], strides = [1, 1]} : vector<1x256xf32> to vector<1x64xf32>
    %43 = arith.negf %42 : vector<1x64xf32>
    %44 = math.exp %43 : vector<1x64xf32>
    %cst_19 = arith.constant 1.000000e+00 : f32
    %45 = vector.broadcast %cst_19 : f32 to vector<1x64xf32>
    %46 = arith.addf %45, %44 : vector<1x64xf32>
    %47 = arith.divf %45, %46 : vector<1x64xf32>
    %48 = arith.mulf %39, %22 : vector<1x64xf32>
    %49 = arith.mulf %33, %41 : vector<1x64xf32>
    %50 = arith.addf %48, %49 : vector<1x64xf32>
    %51 = math.tanh %50 : vector<1x64xf32>
    %52 = arith.mulf %47, %51 : vector<1x64xf32>
    %53 = vector.extract_strided_slice %19 {offsets = [0, 1, 0], sizes = [1, 1, 256], strides = [1, 1, 1]} : vector<1x16x256xf32> to vector<1x1x256xf32>
    %54 = vector.shape_cast %53 : vector<1x1x256xf32> to vector<1x256xf32>
    %55 = arith.truncf %52 : vector<1x64xf32> to vector<1x64xbf16>
    %cst_20 = arith.constant dense<0.000000e+00> : vector<1x256xf32>
    %56 = tpu.matmul %55, %20, %cst_20 {dimension_numbers = #tpu.dot_dimension_numbers<[1], [0], [0], [1], [0, 0, 1, 1], [], []>} : vector<1x64xbf16>, vector<64x256xbf16>, vector<1x256xf32> -> vector<1x256xf32>
    %57 = arith.addf %54, %56 : vector<1x256xf32>
    %58 = vector.extract_strided_slice %57 {offsets = [0, 0], sizes = [1, 64], strides = [1, 1]} : vector<1x256xf32> to vector<1x64xf32>
    %59 = arith.negf %58 : vector<1x64xf32>
    %60 = math.exp %59 : vector<1x64xf32>
    %cst_21 = arith.constant 1.000000e+00 : f32
    %61 = vector.broadcast %cst_21 : f32 to vector<1x64xf32>
    %62 = arith.addf %61, %60 : vector<1x64xf32>
    %63 = arith.divf %61, %62 : vector<1x64xf32>
    %64 = vector.extract_strided_slice %57 {offsets = [0, 64], sizes = [1, 64], strides = [1, 1]} : vector<1x256xf32> to vector<1x64xf32>
    %65 = arith.negf %64 : vector<1x64xf32>
    %66 = math.exp %65 : vector<1x64xf32>
    %cst_22 = arith.constant 1.000000e+00 : f32
    %67 = vector.broadcast %cst_22 : f32 to vector<1x64xf32>
    %68 = arith.addf %67, %66 : vector<1x64xf32>
    %69 = arith.divf %67, %68 : vector<1x64xf32>
    %70 = vector.extract_strided_slice %57 {offsets = [0, 128], sizes = [1, 64], strides = [1, 1]} : vector<1x256xf32> to vector<1x64xf32>
    %71 = math.tanh %70 : vector<1x64xf32>
    %72 = vector.extract_strided_slice %57 {offsets = [0, 192], sizes = [1, 64], strides = [1, 1]} : vector<1x256xf32> to vector<1x64xf32>
    %73 = arith.negf %72 : vector<1x64xf32>
    %74 = math.exp %73 : vector<1x64xf32>
    %cst_23 = arith.constant 1.000000e+00 : f32
    %75 = vector.broadcast %cst_23 : f32 to vector<1x64xf32>
    %76 = arith.addf %75, %74 : vector<1x64xf32>
    %77 = arith.divf %75, %76 : vector<1x64xf32>
    %78 = arith.mulf %69, %50 : vector<1x64xf32>
    %79 = arith.mulf %63, %71 : vector<1x64xf32>
    %80 = arith.addf %78, %79 : vector<1x64xf32>
    %81 = math.tanh %80 : vector<1x64xf32>
    %82 = arith.mulf %77, %81 : vector<1x64xf32>
    %83 = vector.extract_strided_slice %19 {offsets = [0, 2, 0], sizes = [1, 1, 256], strides = [1, 1, 1]} : vector<1x16x256xf32> to vector<1x1x256xf32>
    %84 = vector.shape_cast %83 : vector<1x1x256xf32> to vector<1x256xf32>
    %85 = arith.truncf %82 : vector<1x64xf32> to vector<1x64xbf16>
    %cst_24 = arith.constant dense<0.000000e+00> : vector<1x256xf32>
    %86 = tpu.matmul %85, %20, %cst_24 {dimension_numbers = #tpu.dot_dimension_numbers<[1], [0], [0], [1], [0, 0, 1, 1], [], []>} : vector<1x64xbf16>, vector<64x256xbf16>, vector<1x256xf32> -> vector<1x256xf32>
    %87 = arith.addf %84, %86 : vector<1x256xf32>
    %88 = vector.extract_strided_slice %87 {offsets = [0, 0], sizes = [1, 64], strides = [1, 1]} : vector<1x256xf32> to vector<1x64xf32>
    %89 = arith.negf %88 : vector<1x64xf32>
    %90 = math.exp %89 : vector<1x64xf32>
    %cst_25 = arith.constant 1.000000e+00 : f32
    %91 = vector.broadcast %cst_25 : f32 to vector<1x64xf32>
    %92 = arith.addf %91, %90 : vector<1x64xf32>
    %93 = arith.divf %91, %92 : vector<1x64xf32>
    %94 = vector.extract_strided_slice %87 {offsets = [0, 64], sizes = [1, 64], strides = [1, 1]} : vector<1x256xf32> to vector<1x64xf32>
    %95 = arith.negf %94 : vector<1x64xf32>
    %96 = math.exp %95 : vector<1x64xf32>
    %cst_26 = arith.constant 1.000000e+00 : f32
    %97 = vector.broadcast %cst_26 : f32 to vector<1x64xf32>
    %98 = arith.addf %97, %96 : vector<1x64xf32>
    %99 = arith.divf %97, %98 : vector<1x64xf32>
    %100 = vector.extract_strided_slice %87 {offsets = [0, 128], sizes = [1, 64], strides = [1, 1]} : vector<1x256xf32> to vector<1x64xf32>
    %101 = math.tanh %100 : vector<1x64xf32>
    %102 = vector.extract_strided_slice %87 {offsets = [0, 192], sizes = [1, 64], strides = [1, 1]} : vector<1x256xf32> to vector<1x64xf32>
    %103 = arith.negf %102 : vector<1x64xf32>
    %104 = math.exp %103 : vector<1x64xf32>
    %cst_27 = arith.constant 1.000000e+00 : f32
    %105 = vector.broadcast %cst_27 : f32 to vector<1x64xf32>
    %106 = arith.addf %105, %104 : vector<1x64xf32>
    %107 = arith.divf %105, %106 : vector<1x64xf32>
    %108 = arith.mulf %99, %80 : vector<1x64xf32>
    %109 = arith.mulf %93, %101 : vector<1x64xf32>
    %110 = arith.addf %108, %109 : vector<1x64xf32>
    %111 = math.tanh %110 : vector<1x64xf32>
    %112 = arith.mulf %107, %111 : vector<1x64xf32>
    %113 = vector.extract_strided_slice %19 {offsets = [0, 3, 0], sizes = [1, 1, 256], strides = [1, 1, 1]} : vector<1x16x256xf32> to vector<1x1x256xf32>
    %114 = vector.shape_cast %113 : vector<1x1x256xf32> to vector<1x256xf32>
    %115 = arith.truncf %112 : vector<1x64xf32> to vector<1x64xbf16>
    %cst_28 = arith.constant dense<0.000000e+00> : vector<1x256xf32>
    %116 = tpu.matmul %115, %20, %cst_28 {dimension_numbers = #tpu.dot_dimension_numbers<[1], [0], [0], [1], [0, 0, 1, 1], [], []>} : vector<1x64xbf16>, vector<64x256xbf16>, vector<1x256xf32> -> vector<1x256xf32>
    %117 = arith.addf %114, %116 : vector<1x256xf32>
    %118 = vector.extract_strided_slice %117 {offsets = [0, 0], sizes = [1, 64], strides = [1, 1]} : vector<1x256xf32> to vector<1x64xf32>
    %119 = arith.negf %118 : vector<1x64xf32>
    %120 = math.exp %119 : vector<1x64xf32>
    %cst_29 = arith.constant 1.000000e+00 : f32
    %121 = vector.broadcast %cst_29 : f32 to vector<1x64xf32>
    %122 = arith.addf %121, %120 : vector<1x64xf32>
    %123 = arith.divf %121, %122 : vector<1x64xf32>
    %124 = vector.extract_strided_slice %117 {offsets = [0, 64], sizes = [1, 64], strides = [1, 1]} : vector<1x256xf32> to vector<1x64xf32>
    %125 = arith.negf %124 : vector<1x64xf32>
    %126 = math.exp %125 : vector<1x64xf32>
    %cst_30 = arith.constant 1.000000e+00 : f32
    %127 = vector.broadcast %cst_30 : f32 to vector<1x64xf32>
    %128 = arith.addf %127, %126 : vector<1x64xf32>
    %129 = arith.divf %127, %128 : vector<1x64xf32>
    %130 = vector.extract_strided_slice %117 {offsets = [0, 128], sizes = [1, 64], strides = [1, 1]} : vector<1x256xf32> to vector<1x64xf32>
    %131 = math.tanh %130 : vector<1x64xf32>
    %132 = vector.extract_strided_slice %117 {offsets = [0, 192], sizes = [1, 64], strides = [1, 1]} : vector<1x256xf32> to vector<1x64xf32>
    %133 = arith.negf %132 : vector<1x64xf32>
    %134 = math.exp %133 : vector<1x64xf32>
    %cst_31 = arith.constant 1.000000e+00 : f32
    %135 = vector.broadcast %cst_31 : f32 to vector<1x64xf32>
    %136 = arith.addf %135, %134 : vector<1x64xf32>
    %137 = arith.divf %135, %136 : vector<1x64xf32>
    %138 = arith.mulf %129, %110 : vector<1x64xf32>
    %139 = arith.mulf %123, %131 : vector<1x64xf32>
    %140 = arith.addf %138, %139 : vector<1x64xf32>
    %141 = math.tanh %140 : vector<1x64xf32>
    %142 = arith.mulf %137, %141 : vector<1x64xf32>
    %143 = vector.extract_strided_slice %19 {offsets = [0, 4, 0], sizes = [1, 1, 256], strides = [1, 1, 1]} : vector<1x16x256xf32> to vector<1x1x256xf32>
    %144 = vector.shape_cast %143 : vector<1x1x256xf32> to vector<1x256xf32>
    %145 = arith.truncf %142 : vector<1x64xf32> to vector<1x64xbf16>
    %cst_32 = arith.constant dense<0.000000e+00> : vector<1x256xf32>
    %146 = tpu.matmul %145, %20, %cst_32 {dimension_numbers = #tpu.dot_dimension_numbers<[1], [0], [0], [1], [0, 0, 1, 1], [], []>} : vector<1x64xbf16>, vector<64x256xbf16>, vector<1x256xf32> -> vector<1x256xf32>
    %147 = arith.addf %144, %146 : vector<1x256xf32>
    %148 = vector.extract_strided_slice %147 {offsets = [0, 0], sizes = [1, 64], strides = [1, 1]} : vector<1x256xf32> to vector<1x64xf32>
    %149 = arith.negf %148 : vector<1x64xf32>
    %150 = math.exp %149 : vector<1x64xf32>
    %cst_33 = arith.constant 1.000000e+00 : f32
    %151 = vector.broadcast %cst_33 : f32 to vector<1x64xf32>
    %152 = arith.addf %151, %150 : vector<1x64xf32>
    %153 = arith.divf %151, %152 : vector<1x64xf32>
    %154 = vector.extract_strided_slice %147 {offsets = [0, 64], sizes = [1, 64], strides = [1, 1]} : vector<1x256xf32> to vector<1x64xf32>
    %155 = arith.negf %154 : vector<1x64xf32>
    %156 = math.exp %155 : vector<1x64xf32>
    %cst_34 = arith.constant 1.000000e+00 : f32
    %157 = vector.broadcast %cst_34 : f32 to vector<1x64xf32>
    %158 = arith.addf %157, %156 : vector<1x64xf32>
    %159 = arith.divf %157, %158 : vector<1x64xf32>
    %160 = vector.extract_strided_slice %147 {offsets = [0, 128], sizes = [1, 64], strides = [1, 1]} : vector<1x256xf32> to vector<1x64xf32>
    %161 = math.tanh %160 : vector<1x64xf32>
    %162 = vector.extract_strided_slice %147 {offsets = [0, 192], sizes = [1, 64], strides = [1, 1]} : vector<1x256xf32> to vector<1x64xf32>
    %163 = arith.negf %162 : vector<1x64xf32>
    %164 = math.exp %163 : vector<1x64xf32>
    %cst_35 = arith.constant 1.000000e+00 : f32
    %165 = vector.broadcast %cst_35 : f32 to vector<1x64xf32>
    %166 = arith.addf %165, %164 : vector<1x64xf32>
    %167 = arith.divf %165, %166 : vector<1x64xf32>
    %168 = arith.mulf %159, %140 : vector<1x64xf32>
    %169 = arith.mulf %153, %161 : vector<1x64xf32>
    %170 = arith.addf %168, %169 : vector<1x64xf32>
    %171 = math.tanh %170 : vector<1x64xf32>
    %172 = arith.mulf %167, %171 : vector<1x64xf32>
    %173 = vector.extract_strided_slice %19 {offsets = [0, 5, 0], sizes = [1, 1, 256], strides = [1, 1, 1]} : vector<1x16x256xf32> to vector<1x1x256xf32>
    %174 = vector.shape_cast %173 : vector<1x1x256xf32> to vector<1x256xf32>
    %175 = arith.truncf %172 : vector<1x64xf32> to vector<1x64xbf16>
    %cst_36 = arith.constant dense<0.000000e+00> : vector<1x256xf32>
    %176 = tpu.matmul %175, %20, %cst_36 {dimension_numbers = #tpu.dot_dimension_numbers<[1], [0], [0], [1], [0, 0, 1, 1], [], []>} : vector<1x64xbf16>, vector<64x256xbf16>, vector<1x256xf32> -> vector<1x256xf32>
    %177 = arith.addf %174, %176 : vector<1x256xf32>
    %178 = vector.extract_strided_slice %177 {offsets = [0, 0], sizes = [1, 64], strides = [1, 1]} : vector<1x256xf32> to vector<1x64xf32>
    %179 = arith.negf %178 : vector<1x64xf32>
    %180 = math.exp %179 : vector<1x64xf32>
    %cst_37 = arith.constant 1.000000e+00 : f32
    %181 = vector.broadcast %cst_37 : f32 to vector<1x64xf32>
    %182 = arith.addf %181, %180 : vector<1x64xf32>
    %183 = arith.divf %181, %182 : vector<1x64xf32>
    %184 = vector.extract_strided_slice %177 {offsets = [0, 64], sizes = [1, 64], strides = [1, 1]} : vector<1x256xf32> to vector<1x64xf32>
    %185 = arith.negf %184 : vector<1x64xf32>
    %186 = math.exp %185 : vector<1x64xf32>
    %cst_38 = arith.constant 1.000000e+00 : f32
    %187 = vector.broadcast %cst_38 : f32 to vector<1x64xf32>
    %188 = arith.addf %187, %186 : vector<1x64xf32>
    %189 = arith.divf %187, %188 : vector<1x64xf32>
    %190 = vector.extract_strided_slice %177 {offsets = [0, 128], sizes = [1, 64], strides = [1, 1]} : vector<1x256xf32> to vector<1x64xf32>
    %191 = math.tanh %190 : vector<1x64xf32>
    %192 = vector.extract_strided_slice %177 {offsets = [0, 192], sizes = [1, 64], strides = [1, 1]} : vector<1x256xf32> to vector<1x64xf32>
    %193 = arith.negf %192 : vector<1x64xf32>
    %194 = math.exp %193 : vector<1x64xf32>
    %cst_39 = arith.constant 1.000000e+00 : f32
    %195 = vector.broadcast %cst_39 : f32 to vector<1x64xf32>
    %196 = arith.addf %195, %194 : vector<1x64xf32>
    %197 = arith.divf %195, %196 : vector<1x64xf32>
    %198 = arith.mulf %189, %170 : vector<1x64xf32>
    %199 = arith.mulf %183, %191 : vector<1x64xf32>
    %200 = arith.addf %198, %199 : vector<1x64xf32>
    %201 = math.tanh %200 : vector<1x64xf32>
    %202 = arith.mulf %197, %201 : vector<1x64xf32>
    %203 = vector.extract_strided_slice %19 {offsets = [0, 6, 0], sizes = [1, 1, 256], strides = [1, 1, 1]} : vector<1x16x256xf32> to vector<1x1x256xf32>
    %204 = vector.shape_cast %203 : vector<1x1x256xf32> to vector<1x256xf32>
    %205 = arith.truncf %202 : vector<1x64xf32> to vector<1x64xbf16>
    %cst_40 = arith.constant dense<0.000000e+00> : vector<1x256xf32>
    %206 = tpu.matmul %205, %20, %cst_40 {dimension_numbers = #tpu.dot_dimension_numbers<[1], [0], [0], [1], [0, 0, 1, 1], [], []>} : vector<1x64xbf16>, vector<64x256xbf16>, vector<1x256xf32> -> vector<1x256xf32>
    %207 = arith.addf %204, %206 : vector<1x256xf32>
    %208 = vector.extract_strided_slice %207 {offsets = [0, 0], sizes = [1, 64], strides = [1, 1]} : vector<1x256xf32> to vector<1x64xf32>
    %209 = arith.negf %208 : vector<1x64xf32>
    %210 = math.exp %209 : vector<1x64xf32>
    %cst_41 = arith.constant 1.000000e+00 : f32
    %211 = vector.broadcast %cst_41 : f32 to vector<1x64xf32>
    %212 = arith.addf %211, %210 : vector<1x64xf32>
    %213 = arith.divf %211, %212 : vector<1x64xf32>
    %214 = vector.extract_strided_slice %207 {offsets = [0, 64], sizes = [1, 64], strides = [1, 1]} : vector<1x256xf32> to vector<1x64xf32>
    %215 = arith.negf %214 : vector<1x64xf32>
    %216 = math.exp %215 : vector<1x64xf32>
    %cst_42 = arith.constant 1.000000e+00 : f32
    %217 = vector.broadcast %cst_42 : f32 to vector<1x64xf32>
    %218 = arith.addf %217, %216 : vector<1x64xf32>
    %219 = arith.divf %217, %218 : vector<1x64xf32>
    %220 = vector.extract_strided_slice %207 {offsets = [0, 128], sizes = [1, 64], strides = [1, 1]} : vector<1x256xf32> to vector<1x64xf32>
    %221 = math.tanh %220 : vector<1x64xf32>
    %222 = vector.extract_strided_slice %207 {offsets = [0, 192], sizes = [1, 64], strides = [1, 1]} : vector<1x256xf32> to vector<1x64xf32>
    %223 = arith.negf %222 : vector<1x64xf32>
    %224 = math.exp %223 : vector<1x64xf32>
    %cst_43 = arith.constant 1.000000e+00 : f32
    %225 = vector.broadcast %cst_43 : f32 to vector<1x64xf32>
    %226 = arith.addf %225, %224 : vector<1x64xf32>
    %227 = arith.divf %225, %226 : vector<1x64xf32>
    %228 = arith.mulf %219, %200 : vector<1x64xf32>
    %229 = arith.mulf %213, %221 : vector<1x64xf32>
    %230 = arith.addf %228, %229 : vector<1x64xf32>
    %231 = math.tanh %230 : vector<1x64xf32>
    %232 = arith.mulf %227, %231 : vector<1x64xf32>
    %233 = vector.extract_strided_slice %19 {offsets = [0, 7, 0], sizes = [1, 1, 256], strides = [1, 1, 1]} : vector<1x16x256xf32> to vector<1x1x256xf32>
    %234 = vector.shape_cast %233 : vector<1x1x256xf32> to vector<1x256xf32>
    %235 = arith.truncf %232 : vector<1x64xf32> to vector<1x64xbf16>
    %cst_44 = arith.constant dense<0.000000e+00> : vector<1x256xf32>
    %236 = tpu.matmul %235, %20, %cst_44 {dimension_numbers = #tpu.dot_dimension_numbers<[1], [0], [0], [1], [0, 0, 1, 1], [], []>} : vector<1x64xbf16>, vector<64x256xbf16>, vector<1x256xf32> -> vector<1x256xf32>
    %237 = arith.addf %234, %236 : vector<1x256xf32>
    %238 = vector.extract_strided_slice %237 {offsets = [0, 0], sizes = [1, 64], strides = [1, 1]} : vector<1x256xf32> to vector<1x64xf32>
    %239 = arith.negf %238 : vector<1x64xf32>
    %240 = math.exp %239 : vector<1x64xf32>
    %cst_45 = arith.constant 1.000000e+00 : f32
    %241 = vector.broadcast %cst_45 : f32 to vector<1x64xf32>
    %242 = arith.addf %241, %240 : vector<1x64xf32>
    %243 = arith.divf %241, %242 : vector<1x64xf32>
    %244 = vector.extract_strided_slice %237 {offsets = [0, 64], sizes = [1, 64], strides = [1, 1]} : vector<1x256xf32> to vector<1x64xf32>
    %245 = arith.negf %244 : vector<1x64xf32>
    %246 = math.exp %245 : vector<1x64xf32>
    %cst_46 = arith.constant 1.000000e+00 : f32
    %247 = vector.broadcast %cst_46 : f32 to vector<1x64xf32>
    %248 = arith.addf %247, %246 : vector<1x64xf32>
    %249 = arith.divf %247, %248 : vector<1x64xf32>
    %250 = vector.extract_strided_slice %237 {offsets = [0, 128], sizes = [1, 64], strides = [1, 1]} : vector<1x256xf32> to vector<1x64xf32>
    %251 = math.tanh %250 : vector<1x64xf32>
    %252 = vector.extract_strided_slice %237 {offsets = [0, 192], sizes = [1, 64], strides = [1, 1]} : vector<1x256xf32> to vector<1x64xf32>
    %253 = arith.negf %252 : vector<1x64xf32>
    %254 = math.exp %253 : vector<1x64xf32>
    %cst_47 = arith.constant 1.000000e+00 : f32
    %255 = vector.broadcast %cst_47 : f32 to vector<1x64xf32>
    %256 = arith.addf %255, %254 : vector<1x64xf32>
    %257 = arith.divf %255, %256 : vector<1x64xf32>
    %258 = arith.mulf %249, %230 : vector<1x64xf32>
    %259 = arith.mulf %243, %251 : vector<1x64xf32>
    %260 = arith.addf %258, %259 : vector<1x64xf32>
    %261 = math.tanh %260 : vector<1x64xf32>
    %262 = arith.mulf %257, %261 : vector<1x64xf32>
    %263 = vector.extract_strided_slice %19 {offsets = [0, 8, 0], sizes = [1, 1, 256], strides = [1, 1, 1]} : vector<1x16x256xf32> to vector<1x1x256xf32>
    %264 = vector.shape_cast %263 : vector<1x1x256xf32> to vector<1x256xf32>
    %265 = arith.truncf %262 : vector<1x64xf32> to vector<1x64xbf16>
    %cst_48 = arith.constant dense<0.000000e+00> : vector<1x256xf32>
    %266 = tpu.matmul %265, %20, %cst_48 {dimension_numbers = #tpu.dot_dimension_numbers<[1], [0], [0], [1], [0, 0, 1, 1], [], []>} : vector<1x64xbf16>, vector<64x256xbf16>, vector<1x256xf32> -> vector<1x256xf32>
    %267 = arith.addf %264, %266 : vector<1x256xf32>
    %268 = vector.extract_strided_slice %267 {offsets = [0, 0], sizes = [1, 64], strides = [1, 1]} : vector<1x256xf32> to vector<1x64xf32>
    %269 = arith.negf %268 : vector<1x64xf32>
    %270 = math.exp %269 : vector<1x64xf32>
    %cst_49 = arith.constant 1.000000e+00 : f32
    %271 = vector.broadcast %cst_49 : f32 to vector<1x64xf32>
    %272 = arith.addf %271, %270 : vector<1x64xf32>
    %273 = arith.divf %271, %272 : vector<1x64xf32>
    %274 = vector.extract_strided_slice %267 {offsets = [0, 64], sizes = [1, 64], strides = [1, 1]} : vector<1x256xf32> to vector<1x64xf32>
    %275 = arith.negf %274 : vector<1x64xf32>
    %276 = math.exp %275 : vector<1x64xf32>
    %cst_50 = arith.constant 1.000000e+00 : f32
    %277 = vector.broadcast %cst_50 : f32 to vector<1x64xf32>
    %278 = arith.addf %277, %276 : vector<1x64xf32>
    %279 = arith.divf %277, %278 : vector<1x64xf32>
    %280 = vector.extract_strided_slice %267 {offsets = [0, 128], sizes = [1, 64], strides = [1, 1]} : vector<1x256xf32> to vector<1x64xf32>
    %281 = math.tanh %280 : vector<1x64xf32>
    %282 = vector.extract_strided_slice %267 {offsets = [0, 192], sizes = [1, 64], strides = [1, 1]} : vector<1x256xf32> to vector<1x64xf32>
    %283 = arith.negf %282 : vector<1x64xf32>
    %284 = math.exp %283 : vector<1x64xf32>
    %cst_51 = arith.constant 1.000000e+00 : f32
    %285 = vector.broadcast %cst_51 : f32 to vector<1x64xf32>
    %286 = arith.addf %285, %284 : vector<1x64xf32>
    %287 = arith.divf %285, %286 : vector<1x64xf32>
    %288 = arith.mulf %279, %260 : vector<1x64xf32>
    %289 = arith.mulf %273, %281 : vector<1x64xf32>
    %290 = arith.addf %288, %289 : vector<1x64xf32>
    %291 = math.tanh %290 : vector<1x64xf32>
    %292 = arith.mulf %287, %291 : vector<1x64xf32>
    %293 = vector.extract_strided_slice %19 {offsets = [0, 9, 0], sizes = [1, 1, 256], strides = [1, 1, 1]} : vector<1x16x256xf32> to vector<1x1x256xf32>
    %294 = vector.shape_cast %293 : vector<1x1x256xf32> to vector<1x256xf32>
    %295 = arith.truncf %292 : vector<1x64xf32> to vector<1x64xbf16>
    %cst_52 = arith.constant dense<0.000000e+00> : vector<1x256xf32>
    %296 = tpu.matmul %295, %20, %cst_52 {dimension_numbers = #tpu.dot_dimension_numbers<[1], [0], [0], [1], [0, 0, 1, 1], [], []>} : vector<1x64xbf16>, vector<64x256xbf16>, vector<1x256xf32> -> vector<1x256xf32>
    %297 = arith.addf %294, %296 : vector<1x256xf32>
    %298 = vector.extract_strided_slice %297 {offsets = [0, 0], sizes = [1, 64], strides = [1, 1]} : vector<1x256xf32> to vector<1x64xf32>
    %299 = arith.negf %298 : vector<1x64xf32>
    %300 = math.exp %299 : vector<1x64xf32>
    %cst_53 = arith.constant 1.000000e+00 : f32
    %301 = vector.broadcast %cst_53 : f32 to vector<1x64xf32>
    %302 = arith.addf %301, %300 : vector<1x64xf32>
    %303 = arith.divf %301, %302 : vector<1x64xf32>
    %304 = vector.extract_strided_slice %297 {offsets = [0, 64], sizes = [1, 64], strides = [1, 1]} : vector<1x256xf32> to vector<1x64xf32>
    %305 = arith.negf %304 : vector<1x64xf32>
    %306 = math.exp %305 : vector<1x64xf32>
    %cst_54 = arith.constant 1.000000e+00 : f32
    %307 = vector.broadcast %cst_54 : f32 to vector<1x64xf32>
    %308 = arith.addf %307, %306 : vector<1x64xf32>
    %309 = arith.divf %307, %308 : vector<1x64xf32>
    %310 = vector.extract_strided_slice %297 {offsets = [0, 128], sizes = [1, 64], strides = [1, 1]} : vector<1x256xf32> to vector<1x64xf32>
    %311 = math.tanh %310 : vector<1x64xf32>
    %312 = vector.extract_strided_slice %297 {offsets = [0, 192], sizes = [1, 64], strides = [1, 1]} : vector<1x256xf32> to vector<1x64xf32>
    %313 = arith.negf %312 : vector<1x64xf32>
    %314 = math.exp %313 : vector<1x64xf32>
    %cst_55 = arith.constant 1.000000e+00 : f32
    %315 = vector.broadcast %cst_55 : f32 to vector<1x64xf32>
    %316 = arith.addf %315, %314 : vector<1x64xf32>
    %317 = arith.divf %315, %316 : vector<1x64xf32>
    %318 = arith.mulf %309, %290 : vector<1x64xf32>
    %319 = arith.mulf %303, %311 : vector<1x64xf32>
    %320 = arith.addf %318, %319 : vector<1x64xf32>
    %321 = math.tanh %320 : vector<1x64xf32>
    %322 = arith.mulf %317, %321 : vector<1x64xf32>
    %323 = vector.extract_strided_slice %19 {offsets = [0, 10, 0], sizes = [1, 1, 256], strides = [1, 1, 1]} : vector<1x16x256xf32> to vector<1x1x256xf32>
    %324 = vector.shape_cast %323 : vector<1x1x256xf32> to vector<1x256xf32>
    %325 = arith.truncf %322 : vector<1x64xf32> to vector<1x64xbf16>
    %cst_56 = arith.constant dense<0.000000e+00> : vector<1x256xf32>
    %326 = tpu.matmul %325, %20, %cst_56 {dimension_numbers = #tpu.dot_dimension_numbers<[1], [0], [0], [1], [0, 0, 1, 1], [], []>} : vector<1x64xbf16>, vector<64x256xbf16>, vector<1x256xf32> -> vector<1x256xf32>
    %327 = arith.addf %324, %326 : vector<1x256xf32>
    %328 = vector.extract_strided_slice %327 {offsets = [0, 0], sizes = [1, 64], strides = [1, 1]} : vector<1x256xf32> to vector<1x64xf32>
    %329 = arith.negf %328 : vector<1x64xf32>
    %330 = math.exp %329 : vector<1x64xf32>
    %cst_57 = arith.constant 1.000000e+00 : f32
    %331 = vector.broadcast %cst_57 : f32 to vector<1x64xf32>
    %332 = arith.addf %331, %330 : vector<1x64xf32>
    %333 = arith.divf %331, %332 : vector<1x64xf32>
    %334 = vector.extract_strided_slice %327 {offsets = [0, 64], sizes = [1, 64], strides = [1, 1]} : vector<1x256xf32> to vector<1x64xf32>
    %335 = arith.negf %334 : vector<1x64xf32>
    %336 = math.exp %335 : vector<1x64xf32>
    %cst_58 = arith.constant 1.000000e+00 : f32
    %337 = vector.broadcast %cst_58 : f32 to vector<1x64xf32>
    %338 = arith.addf %337, %336 : vector<1x64xf32>
    %339 = arith.divf %337, %338 : vector<1x64xf32>
    %340 = vector.extract_strided_slice %327 {offsets = [0, 128], sizes = [1, 64], strides = [1, 1]} : vector<1x256xf32> to vector<1x64xf32>
    %341 = math.tanh %340 : vector<1x64xf32>
    %342 = vector.extract_strided_slice %327 {offsets = [0, 192], sizes = [1, 64], strides = [1, 1]} : vector<1x256xf32> to vector<1x64xf32>
    %343 = arith.negf %342 : vector<1x64xf32>
    %344 = math.exp %343 : vector<1x64xf32>
    %cst_59 = arith.constant 1.000000e+00 : f32
    %345 = vector.broadcast %cst_59 : f32 to vector<1x64xf32>
    %346 = arith.addf %345, %344 : vector<1x64xf32>
    %347 = arith.divf %345, %346 : vector<1x64xf32>
    %348 = arith.mulf %339, %320 : vector<1x64xf32>
    %349 = arith.mulf %333, %341 : vector<1x64xf32>
    %350 = arith.addf %348, %349 : vector<1x64xf32>
    %351 = math.tanh %350 : vector<1x64xf32>
    %352 = arith.mulf %347, %351 : vector<1x64xf32>
    %353 = vector.extract_strided_slice %19 {offsets = [0, 11, 0], sizes = [1, 1, 256], strides = [1, 1, 1]} : vector<1x16x256xf32> to vector<1x1x256xf32>
    %354 = vector.shape_cast %353 : vector<1x1x256xf32> to vector<1x256xf32>
    %355 = arith.truncf %352 : vector<1x64xf32> to vector<1x64xbf16>
    %cst_60 = arith.constant dense<0.000000e+00> : vector<1x256xf32>
    %356 = tpu.matmul %355, %20, %cst_60 {dimension_numbers = #tpu.dot_dimension_numbers<[1], [0], [0], [1], [0, 0, 1, 1], [], []>} : vector<1x64xbf16>, vector<64x256xbf16>, vector<1x256xf32> -> vector<1x256xf32>
    %357 = arith.addf %354, %356 : vector<1x256xf32>
    %358 = vector.extract_strided_slice %357 {offsets = [0, 0], sizes = [1, 64], strides = [1, 1]} : vector<1x256xf32> to vector<1x64xf32>
    %359 = arith.negf %358 : vector<1x64xf32>
    %360 = math.exp %359 : vector<1x64xf32>
    %cst_61 = arith.constant 1.000000e+00 : f32
    %361 = vector.broadcast %cst_61 : f32 to vector<1x64xf32>
    %362 = arith.addf %361, %360 : vector<1x64xf32>
    %363 = arith.divf %361, %362 : vector<1x64xf32>
    %364 = vector.extract_strided_slice %357 {offsets = [0, 64], sizes = [1, 64], strides = [1, 1]} : vector<1x256xf32> to vector<1x64xf32>
    %365 = arith.negf %364 : vector<1x64xf32>
    %366 = math.exp %365 : vector<1x64xf32>
    %cst_62 = arith.constant 1.000000e+00 : f32
    %367 = vector.broadcast %cst_62 : f32 to vector<1x64xf32>
    %368 = arith.addf %367, %366 : vector<1x64xf32>
    %369 = arith.divf %367, %368 : vector<1x64xf32>
    %370 = vector.extract_strided_slice %357 {offsets = [0, 128], sizes = [1, 64], strides = [1, 1]} : vector<1x256xf32> to vector<1x64xf32>
    %371 = math.tanh %370 : vector<1x64xf32>
    %372 = vector.extract_strided_slice %357 {offsets = [0, 192], sizes = [1, 64], strides = [1, 1]} : vector<1x256xf32> to vector<1x64xf32>
    %373 = arith.negf %372 : vector<1x64xf32>
    %374 = math.exp %373 : vector<1x64xf32>
    %cst_63 = arith.constant 1.000000e+00 : f32
    %375 = vector.broadcast %cst_63 : f32 to vector<1x64xf32>
    %376 = arith.addf %375, %374 : vector<1x64xf32>
    %377 = arith.divf %375, %376 : vector<1x64xf32>
    %378 = arith.mulf %369, %350 : vector<1x64xf32>
    %379 = arith.mulf %363, %371 : vector<1x64xf32>
    %380 = arith.addf %378, %379 : vector<1x64xf32>
    %381 = math.tanh %380 : vector<1x64xf32>
    %382 = arith.mulf %377, %381 : vector<1x64xf32>
    %383 = vector.extract_strided_slice %19 {offsets = [0, 12, 0], sizes = [1, 1, 256], strides = [1, 1, 1]} : vector<1x16x256xf32> to vector<1x1x256xf32>
    %384 = vector.shape_cast %383 : vector<1x1x256xf32> to vector<1x256xf32>
    %385 = arith.truncf %382 : vector<1x64xf32> to vector<1x64xbf16>
    %cst_64 = arith.constant dense<0.000000e+00> : vector<1x256xf32>
    %386 = tpu.matmul %385, %20, %cst_64 {dimension_numbers = #tpu.dot_dimension_numbers<[1], [0], [0], [1], [0, 0, 1, 1], [], []>} : vector<1x64xbf16>, vector<64x256xbf16>, vector<1x256xf32> -> vector<1x256xf32>
    %387 = arith.addf %384, %386 : vector<1x256xf32>
    %388 = vector.extract_strided_slice %387 {offsets = [0, 0], sizes = [1, 64], strides = [1, 1]} : vector<1x256xf32> to vector<1x64xf32>
    %389 = arith.negf %388 : vector<1x64xf32>
    %390 = math.exp %389 : vector<1x64xf32>
    %cst_65 = arith.constant 1.000000e+00 : f32
    %391 = vector.broadcast %cst_65 : f32 to vector<1x64xf32>
    %392 = arith.addf %391, %390 : vector<1x64xf32>
    %393 = arith.divf %391, %392 : vector<1x64xf32>
    %394 = vector.extract_strided_slice %387 {offsets = [0, 64], sizes = [1, 64], strides = [1, 1]} : vector<1x256xf32> to vector<1x64xf32>
    %395 = arith.negf %394 : vector<1x64xf32>
    %396 = math.exp %395 : vector<1x64xf32>
    %cst_66 = arith.constant 1.000000e+00 : f32
    %397 = vector.broadcast %cst_66 : f32 to vector<1x64xf32>
    %398 = arith.addf %397, %396 : vector<1x64xf32>
    %399 = arith.divf %397, %398 : vector<1x64xf32>
    %400 = vector.extract_strided_slice %387 {offsets = [0, 128], sizes = [1, 64], strides = [1, 1]} : vector<1x256xf32> to vector<1x64xf32>
    %401 = math.tanh %400 : vector<1x64xf32>
    %402 = vector.extract_strided_slice %387 {offsets = [0, 192], sizes = [1, 64], strides = [1, 1]} : vector<1x256xf32> to vector<1x64xf32>
    %403 = arith.negf %402 : vector<1x64xf32>
    %404 = math.exp %403 : vector<1x64xf32>
    %cst_67 = arith.constant 1.000000e+00 : f32
    %405 = vector.broadcast %cst_67 : f32 to vector<1x64xf32>
    %406 = arith.addf %405, %404 : vector<1x64xf32>
    %407 = arith.divf %405, %406 : vector<1x64xf32>
    %408 = arith.mulf %399, %380 : vector<1x64xf32>
    %409 = arith.mulf %393, %401 : vector<1x64xf32>
    %410 = arith.addf %408, %409 : vector<1x64xf32>
    %411 = math.tanh %410 : vector<1x64xf32>
    %412 = arith.mulf %407, %411 : vector<1x64xf32>
    %413 = vector.extract_strided_slice %19 {offsets = [0, 13, 0], sizes = [1, 1, 256], strides = [1, 1, 1]} : vector<1x16x256xf32> to vector<1x1x256xf32>
    %414 = vector.shape_cast %413 : vector<1x1x256xf32> to vector<1x256xf32>
    %415 = arith.truncf %412 : vector<1x64xf32> to vector<1x64xbf16>
    %cst_68 = arith.constant dense<0.000000e+00> : vector<1x256xf32>
    %416 = tpu.matmul %415, %20, %cst_68 {dimension_numbers = #tpu.dot_dimension_numbers<[1], [0], [0], [1], [0, 0, 1, 1], [], []>} : vector<1x64xbf16>, vector<64x256xbf16>, vector<1x256xf32> -> vector<1x256xf32>
    %417 = arith.addf %414, %416 : vector<1x256xf32>
    %418 = vector.extract_strided_slice %417 {offsets = [0, 0], sizes = [1, 64], strides = [1, 1]} : vector<1x256xf32> to vector<1x64xf32>
    %419 = arith.negf %418 : vector<1x64xf32>
    %420 = math.exp %419 : vector<1x64xf32>
    %cst_69 = arith.constant 1.000000e+00 : f32
    %421 = vector.broadcast %cst_69 : f32 to vector<1x64xf32>
    %422 = arith.addf %421, %420 : vector<1x64xf32>
    %423 = arith.divf %421, %422 : vector<1x64xf32>
    %424 = vector.extract_strided_slice %417 {offsets = [0, 64], sizes = [1, 64], strides = [1, 1]} : vector<1x256xf32> to vector<1x64xf32>
    %425 = arith.negf %424 : vector<1x64xf32>
    %426 = math.exp %425 : vector<1x64xf32>
    %cst_70 = arith.constant 1.000000e+00 : f32
    %427 = vector.broadcast %cst_70 : f32 to vector<1x64xf32>
    %428 = arith.addf %427, %426 : vector<1x64xf32>
    %429 = arith.divf %427, %428 : vector<1x64xf32>
    %430 = vector.extract_strided_slice %417 {offsets = [0, 128], sizes = [1, 64], strides = [1, 1]} : vector<1x256xf32> to vector<1x64xf32>
    %431 = math.tanh %430 : vector<1x64xf32>
    %432 = vector.extract_strided_slice %417 {offsets = [0, 192], sizes = [1, 64], strides = [1, 1]} : vector<1x256xf32> to vector<1x64xf32>
    %433 = arith.negf %432 : vector<1x64xf32>
    %434 = math.exp %433 : vector<1x64xf32>
    %cst_71 = arith.constant 1.000000e+00 : f32
    %435 = vector.broadcast %cst_71 : f32 to vector<1x64xf32>
    %436 = arith.addf %435, %434 : vector<1x64xf32>
    %437 = arith.divf %435, %436 : vector<1x64xf32>
    %438 = arith.mulf %429, %410 : vector<1x64xf32>
    %439 = arith.mulf %423, %431 : vector<1x64xf32>
    %440 = arith.addf %438, %439 : vector<1x64xf32>
    %441 = math.tanh %440 : vector<1x64xf32>
    %442 = arith.mulf %437, %441 : vector<1x64xf32>
    %443 = vector.extract_strided_slice %19 {offsets = [0, 14, 0], sizes = [1, 1, 256], strides = [1, 1, 1]} : vector<1x16x256xf32> to vector<1x1x256xf32>
    %444 = vector.shape_cast %443 : vector<1x1x256xf32> to vector<1x256xf32>
    %445 = arith.truncf %442 : vector<1x64xf32> to vector<1x64xbf16>
    %cst_72 = arith.constant dense<0.000000e+00> : vector<1x256xf32>
    %446 = tpu.matmul %445, %20, %cst_72 {dimension_numbers = #tpu.dot_dimension_numbers<[1], [0], [0], [1], [0, 0, 1, 1], [], []>} : vector<1x64xbf16>, vector<64x256xbf16>, vector<1x256xf32> -> vector<1x256xf32>
    %447 = arith.addf %444, %446 : vector<1x256xf32>
    %448 = vector.extract_strided_slice %447 {offsets = [0, 0], sizes = [1, 64], strides = [1, 1]} : vector<1x256xf32> to vector<1x64xf32>
    %449 = arith.negf %448 : vector<1x64xf32>
    %450 = math.exp %449 : vector<1x64xf32>
    %cst_73 = arith.constant 1.000000e+00 : f32
    %451 = vector.broadcast %cst_73 : f32 to vector<1x64xf32>
    %452 = arith.addf %451, %450 : vector<1x64xf32>
    %453 = arith.divf %451, %452 : vector<1x64xf32>
    %454 = vector.extract_strided_slice %447 {offsets = [0, 64], sizes = [1, 64], strides = [1, 1]} : vector<1x256xf32> to vector<1x64xf32>
    %455 = arith.negf %454 : vector<1x64xf32>
    %456 = math.exp %455 : vector<1x64xf32>
    %cst_74 = arith.constant 1.000000e+00 : f32
    %457 = vector.broadcast %cst_74 : f32 to vector<1x64xf32>
    %458 = arith.addf %457, %456 : vector<1x64xf32>
    %459 = arith.divf %457, %458 : vector<1x64xf32>
    %460 = vector.extract_strided_slice %447 {offsets = [0, 128], sizes = [1, 64], strides = [1, 1]} : vector<1x256xf32> to vector<1x64xf32>
    %461 = math.tanh %460 : vector<1x64xf32>
    %462 = vector.extract_strided_slice %447 {offsets = [0, 192], sizes = [1, 64], strides = [1, 1]} : vector<1x256xf32> to vector<1x64xf32>
    %463 = arith.negf %462 : vector<1x64xf32>
    %464 = math.exp %463 : vector<1x64xf32>
    %cst_75 = arith.constant 1.000000e+00 : f32
    %465 = vector.broadcast %cst_75 : f32 to vector<1x64xf32>
    %466 = arith.addf %465, %464 : vector<1x64xf32>
    %467 = arith.divf %465, %466 : vector<1x64xf32>
    %468 = arith.mulf %459, %440 : vector<1x64xf32>
    %469 = arith.mulf %453, %461 : vector<1x64xf32>
    %470 = arith.addf %468, %469 : vector<1x64xf32>
    %471 = math.tanh %470 : vector<1x64xf32>
    %472 = arith.mulf %467, %471 : vector<1x64xf32>
    %473 = vector.extract_strided_slice %19 {offsets = [0, 15, 0], sizes = [1, 1, 256], strides = [1, 1, 1]} : vector<1x16x256xf32> to vector<1x1x256xf32>
    %474 = vector.shape_cast %473 : vector<1x1x256xf32> to vector<1x256xf32>
    %475 = arith.truncf %472 : vector<1x64xf32> to vector<1x64xbf16>
    %cst_76 = arith.constant dense<0.000000e+00> : vector<1x256xf32>
    %476 = tpu.matmul %475, %20, %cst_76 {dimension_numbers = #tpu.dot_dimension_numbers<[1], [0], [0], [1], [0, 0, 1, 1], [], []>} : vector<1x64xbf16>, vector<64x256xbf16>, vector<1x256xf32> -> vector<1x256xf32>
    %477 = arith.addf %474, %476 : vector<1x256xf32>
    %478 = vector.extract_strided_slice %477 {offsets = [0, 0], sizes = [1, 64], strides = [1, 1]} : vector<1x256xf32> to vector<1x64xf32>
    %479 = arith.negf %478 : vector<1x64xf32>
    %480 = math.exp %479 : vector<1x64xf32>
    %cst_77 = arith.constant 1.000000e+00 : f32
    %481 = vector.broadcast %cst_77 : f32 to vector<1x64xf32>
    %482 = arith.addf %481, %480 : vector<1x64xf32>
    %483 = arith.divf %481, %482 : vector<1x64xf32>
    %484 = vector.extract_strided_slice %477 {offsets = [0, 64], sizes = [1, 64], strides = [1, 1]} : vector<1x256xf32> to vector<1x64xf32>
    %485 = arith.negf %484 : vector<1x64xf32>
    %486 = math.exp %485 : vector<1x64xf32>
    %cst_78 = arith.constant 1.000000e+00 : f32
    %487 = vector.broadcast %cst_78 : f32 to vector<1x64xf32>
    %488 = arith.addf %487, %486 : vector<1x64xf32>
    %489 = arith.divf %487, %488 : vector<1x64xf32>
    %490 = vector.extract_strided_slice %477 {offsets = [0, 128], sizes = [1, 64], strides = [1, 1]} : vector<1x256xf32> to vector<1x64xf32>
    %491 = math.tanh %490 : vector<1x64xf32>
    %492 = vector.extract_strided_slice %477 {offsets = [0, 192], sizes = [1, 64], strides = [1, 1]} : vector<1x256xf32> to vector<1x64xf32>
    %493 = arith.negf %492 : vector<1x64xf32>
    %494 = math.exp %493 : vector<1x64xf32>
    %cst_79 = arith.constant 1.000000e+00 : f32
    %495 = vector.broadcast %cst_79 : f32 to vector<1x64xf32>
    %496 = arith.addf %495, %494 : vector<1x64xf32>
    %497 = arith.divf %495, %496 : vector<1x64xf32>
    %498 = arith.mulf %489, %470 : vector<1x64xf32>
    %499 = arith.mulf %483, %491 : vector<1x64xf32>
    %500 = arith.addf %498, %499 : vector<1x64xf32>
    %501 = math.tanh %500 : vector<1x64xf32>
    %502 = arith.mulf %497, %501 : vector<1x64xf32>
    %503 = vector.shape_cast %52 : vector<1x64xf32> to vector<1x1x64xf32>
    %504 = vector.shape_cast %82 : vector<1x64xf32> to vector<1x1x64xf32>
    %505 = vector.shape_cast %112 : vector<1x64xf32> to vector<1x1x64xf32>
    %506 = vector.shape_cast %142 : vector<1x64xf32> to vector<1x1x64xf32>
    %507 = vector.shape_cast %172 : vector<1x64xf32> to vector<1x1x64xf32>
    %508 = vector.shape_cast %202 : vector<1x64xf32> to vector<1x1x64xf32>
    %509 = vector.shape_cast %232 : vector<1x64xf32> to vector<1x1x64xf32>
    %510 = vector.shape_cast %262 : vector<1x64xf32> to vector<1x1x64xf32>
    %511 = vector.shape_cast %292 : vector<1x64xf32> to vector<1x1x64xf32>
    %512 = vector.shape_cast %322 : vector<1x64xf32> to vector<1x1x64xf32>
    %513 = vector.shape_cast %352 : vector<1x64xf32> to vector<1x1x64xf32>
    %514 = vector.shape_cast %382 : vector<1x64xf32> to vector<1x1x64xf32>
    %515 = vector.shape_cast %412 : vector<1x64xf32> to vector<1x1x64xf32>
    %516 = vector.shape_cast %442 : vector<1x64xf32> to vector<1x1x64xf32>
    %517 = vector.shape_cast %472 : vector<1x64xf32> to vector<1x1x64xf32>
    %518 = vector.shape_cast %502 : vector<1x64xf32> to vector<1x1x64xf32>
    %519 = tpu.concatenate %503, %504, %505, %506, %507, %508, %509, %510, %511, %512, %513, %514, %515, %516, %517, %518 in 1 : vector<1x1x64xf32>, vector<1x1x64xf32>, vector<1x1x64xf32>, vector<1x1x64xf32>, vector<1x1x64xf32>, vector<1x1x64xf32>, vector<1x1x64xf32>, vector<1x1x64xf32>, vector<1x1x64xf32>, vector<1x1x64xf32>, vector<1x1x64xf32>, vector<1x1x64xf32>, vector<1x1x64xf32>, vector<1x1x64xf32>, vector<1x1x64xf32>, vector<1x1x64xf32> -> vector<1x16x64xf32>
    %c0_80 = arith.constant 0 : index
    %c0_81 = arith.constant 0 : index
    %c0_82 = arith.constant 0 : index
    %520 = vector.load %arg3[%c0_80, %c0_81, %c0_82] : memref<1x16x16xf32, #tpu.memory_space<vmem>>, vector<1x16x16xf32>
    %521 = tpu.concatenate %519, %520 in 2 : vector<1x16x64xf32>, vector<1x16x16xf32> -> vector<1x16x80xf32>
    %522 = vector.extract_strided_slice %521 {offsets = [0, 0, 0], sizes = [1, 11, 80], strides = [1, 1, 1]} : vector<1x16x80xf32> to vector<1x11x80xf32>
    %523 = vector.extract_strided_slice %521 {offsets = [0, 1, 0], sizes = [1, 11, 80], strides = [1, 1, 1]} : vector<1x16x80xf32> to vector<1x11x80xf32>
    %524 = vector.extract_strided_slice %521 {offsets = [0, 2, 0], sizes = [1, 11, 80], strides = [1, 1, 1]} : vector<1x16x80xf32> to vector<1x11x80xf32>
    %525 = vector.extract_strided_slice %521 {offsets = [0, 3, 0], sizes = [1, 11, 80], strides = [1, 1, 1]} : vector<1x16x80xf32> to vector<1x11x80xf32>
    %526 = vector.extract_strided_slice %521 {offsets = [0, 4, 0], sizes = [1, 11, 80], strides = [1, 1, 1]} : vector<1x16x80xf32> to vector<1x11x80xf32>
    %527 = vector.extract_strided_slice %521 {offsets = [0, 5, 0], sizes = [1, 11, 80], strides = [1, 1, 1]} : vector<1x16x80xf32> to vector<1x11x80xf32>
    %528 = tpu.concatenate %522, %523, %524, %525, %526, %527 in 2 : vector<1x11x80xf32>, vector<1x11x80xf32>, vector<1x11x80xf32>, vector<1x11x80xf32>, vector<1x11x80xf32>, vector<1x11x80xf32> -> vector<1x11x480xf32>
    %529 = vector.shape_cast %528 : vector<1x11x480xf32> to vector<11x480xf32>
    %530 = arith.truncf %529 : vector<11x480xf32> to vector<11x480xbf16>
    %c0_83 = arith.constant 0 : index
    %c0_84 = arith.constant 0 : index
    %531 = vector.load %arg8[%c0_83, %c0_84] : memref<480x64xbf16, #tpu.memory_space<vmem>>, vector<480x64xbf16>
    %cst_85 = arith.constant dense<0.000000e+00> : vector<11x64xf32>
    %532 = tpu.matmul %530, %531, %cst_85 {dimension_numbers = #tpu.dot_dimension_numbers<[1], [0], [0], [1], [0, 0, 1, 1], [], []>} : vector<11x480xbf16>, vector<480x64xbf16>, vector<11x64xf32> -> vector<11x64xf32>
    %c0_86 = arith.constant 0 : index
    %c0_87 = arith.constant 0 : index
    %533 = vector.load %arg9[%c0_86, %c0_87] : memref<1x64xf32, #tpu.memory_space<vmem>>, vector<1x64xf32>
    %534 = vector.broadcast %533 : vector<1x64xf32> to vector<11x64xf32>
    %535 = arith.addf %532, %534 : vector<11x64xf32>
    %cst_88 = arith.constant 0.000000e+00 : f32
    %536 = vector.broadcast %cst_88 : f32 to vector<11x64xf32>
    %537 = arith.cmpf ogt, %535, %536 : vector<11x64xf32>
    %cst_89 = arith.constant 0.00999999977 : f32
    %538 = vector.broadcast %cst_89 : f32 to vector<11x64xf32>
    %539 = arith.mulf %538, %535 : vector<11x64xf32>
    %540 = arith.select %537, %535, %539 : vector<11x64xi1>, vector<11x64xf32>
    %541 = vector.shape_cast %540 : vector<11x64xf32> to vector<1x11x64xf32>
    %542 = vector.extract_strided_slice %541 {offsets = [0, 0, 0], sizes = [1, 1, 64], strides = [1, 1, 1]} : vector<1x11x64xf32> to vector<1x1x64xf32>
    %543 = vector.shape_cast %542 : vector<1x1x64xf32> to vector<1x64xf32>
    %544 = vector.extract_strided_slice %541 {offsets = [0, 1, 0], sizes = [1, 1, 64], strides = [1, 1, 1]} : vector<1x11x64xf32> to vector<1x1x64xf32>
    %545 = vector.shape_cast %544 : vector<1x1x64xf32> to vector<1x64xf32>
    %546 = vector.extract_strided_slice %541 {offsets = [0, 2, 0], sizes = [1, 1, 64], strides = [1, 1, 1]} : vector<1x11x64xf32> to vector<1x1x64xf32>
    %547 = vector.shape_cast %546 : vector<1x1x64xf32> to vector<1x64xf32>
    %548 = vector.extract_strided_slice %541 {offsets = [0, 3, 0], sizes = [1, 1, 64], strides = [1, 1, 1]} : vector<1x11x64xf32> to vector<1x1x64xf32>
    %549 = vector.shape_cast %548 : vector<1x1x64xf32> to vector<1x64xf32>
    %550 = vector.extract_strided_slice %541 {offsets = [0, 4, 0], sizes = [1, 1, 64], strides = [1, 1, 1]} : vector<1x11x64xf32> to vector<1x1x64xf32>
    %551 = vector.shape_cast %550 : vector<1x1x64xf32> to vector<1x64xf32>
    %552 = vector.extract_strided_slice %541 {offsets = [0, 5, 0], sizes = [1, 1, 64], strides = [1, 1, 1]} : vector<1x11x64xf32> to vector<1x1x64xf32>
    %553 = vector.shape_cast %552 : vector<1x1x64xf32> to vector<1x64xf32>
    %554 = vector.extract_strided_slice %541 {offsets = [0, 6, 0], sizes = [1, 1, 64], strides = [1, 1, 1]} : vector<1x11x64xf32> to vector<1x1x64xf32>
    %555 = vector.shape_cast %554 : vector<1x1x64xf32> to vector<1x64xf32>
    %556 = vector.extract_strided_slice %541 {offsets = [0, 7, 0], sizes = [1, 1, 64], strides = [1, 1, 1]} : vector<1x11x64xf32> to vector<1x1x64xf32>
    %557 = vector.shape_cast %556 : vector<1x1x64xf32> to vector<1x64xf32>
    %558 = vector.extract_strided_slice %541 {offsets = [0, 8, 0], sizes = [1, 1, 64], strides = [1, 1, 1]} : vector<1x11x64xf32> to vector<1x1x64xf32>
    %559 = vector.shape_cast %558 : vector<1x1x64xf32> to vector<1x64xf32>
    %560 = vector.extract_strided_slice %541 {offsets = [0, 9, 0], sizes = [1, 1, 64], strides = [1, 1, 1]} : vector<1x11x64xf32> to vector<1x1x64xf32>
    %561 = vector.shape_cast %560 : vector<1x1x64xf32> to vector<1x64xf32>
    %562 = vector.extract_strided_slice %541 {offsets = [0, 10, 0], sizes = [1, 1, 64], strides = [1, 1, 1]} : vector<1x11x64xf32> to vector<1x1x64xf32>
    %563 = vector.shape_cast %562 : vector<1x1x64xf32> to vector<1x64xf32>
    %564 = tpu.concatenate %543, %545, %547, %549, %551, %553, %555, %557, %559, %561, %563 in 1 : vector<1x64xf32>, vector<1x64xf32>, vector<1x64xf32>, vector<1x64xf32>, vector<1x64xf32>, vector<1x64xf32>, vector<1x64xf32>, vector<1x64xf32>, vector<1x64xf32>, vector<1x64xf32>, vector<1x64xf32> -> vector<1x704xf32>
    %565 = arith.truncf %564 : vector<1x704xf32> to vector<1x704xbf16>
    %c0_90 = arith.constant 0 : index
    %c0_91 = arith.constant 0 : index
    %566 = vector.load %arg10[%c0_90, %c0_91] : memref<704x64xbf16, #tpu.memory_space<vmem>>, vector<704x64xbf16>
    %cst_92 = arith.constant dense<0.000000e+00> : vector<1x64xf32>
    %567 = tpu.matmul %565, %566, %cst_92 {dimension_numbers = #tpu.dot_dimension_numbers<[1], [0], [0], [1], [0, 0, 1, 1], [], []>} : vector<1x704xbf16>, vector<704x64xbf16>, vector<1x64xf32> -> vector<1x64xf32>
    %c0_93 = arith.constant 0 : index
    %c0_94 = arith.constant 0 : index
    %568 = vector.load %arg11[%c0_93, %c0_94] : memref<1x64xf32, #tpu.memory_space<vmem>>, vector<1x64xf32>
    %569 = arith.addf %567, %568 : vector<1x64xf32>
    %cst_95 = arith.constant 0.000000e+00 : f32
    %570 = vector.broadcast %cst_95 : f32 to vector<1x64xf32>
    %571 = arith.cmpf ogt, %569, %570 : vector<1x64xf32>
    %cst_96 = arith.constant 0.00999999977 : f32
    %572 = vector.broadcast %cst_96 : f32 to vector<1x64xf32>
    %573 = arith.mulf %572, %569 : vector<1x64xf32>
    %574 = arith.select %571, %569, %573 : vector<1x64xi1>, vector<1x64xf32>
    %575 = arith.truncf %574 : vector<1x64xf32> to vector<1x64xbf16>
    %c0_97 = arith.constant 0 : index
    %c0_98 = arith.constant 0 : index
    %576 = vector.load %arg12[%c0_97, %c0_98] : memref<64x60xbf16, #tpu.memory_space<vmem>>, vector<64x60xbf16>
    %cst_99 = arith.constant dense<0.000000e+00> : vector<1x60xf32>
    %577 = tpu.matmul %575, %576, %cst_99 {dimension_numbers = #tpu.dot_dimension_numbers<[1], [0], [0], [1], [0, 0, 1, 1], [], []>} : vector<1x64xbf16>, vector<64x60xbf16>, vector<1x60xf32> -> vector<1x60xf32>
    %578 = arith.negf %577 : vector<1x60xf32>
    %579 = math.exp %578 : vector<1x60xf32>
    %cst_100 = arith.constant 1.000000e+00 : f32
    %580 = vector.broadcast %cst_100 : f32 to vector<1x60xf32>
    %581 = arith.addf %580, %579 : vector<1x60xf32>
    %582 = arith.divf %580, %581 : vector<1x60xf32>
    %c0_101 = arith.constant 0 : index
    %c0_102 = arith.constant 0 : index
    %c0_103 = arith.constant 0 : index
    %583 = vector.load %arg13[%c0_101, %c0_102, %c0_103] : memref<1x1x60xf32, #tpu.memory_space<vmem>>, vector<1x1x60xf32>
    %584 = vector.shape_cast %583 : vector<1x1x60xf32> to vector<1x60xf32>
    %585 = vector.shape_cast %582 : vector<1x60xf32> to vector<1x1x60xf32>
    tpu.vector_store %arg13[%c0_101, %c0_102, %c0_103], %585 {strides = array<i32>} : memref<1x1x60xf32, #tpu.memory_space<vmem>>, vector<1x1x60xf32>,
    return
  }
  func.func @transform_0(%arg0: i32) -> (i32, i32, i32) {
    %c0_i32 = arith.constant 0 : i32
    %c0_i32_0 = arith.constant 0 : i32
    %c0_i32_1 = arith.constant 0 : i32
    return %arg0, %c0_i32, %c0_i32_0 : i32, i32, i32
  }
  func.func @transform_1(%arg0: i32) -> (i32, i32, i32) {
    %c0_i32 = arith.constant 0 : i32
    %c0_i32_0 = arith.constant 0 : i32
    %c0_i32_1 = arith.constant 0 : i32
    return %arg0, %c0_i32, %c0_i32_0 : i32, i32, i32
  }
  func.func @transform_2(%arg0: i32) -> (i32, i32, i32) {
    %c0_i32 = arith.constant 0 : i32
    %c0_i32_0 = arith.constant 0 : i32
    %c0_i32_1 = arith.constant 0 : i32
    return %arg0, %c0_i32, %c0_i32_0 : i32, i32, i32
  }
  func.func @transform_3(%arg0: i32) -> (i32, i32) {
    %c0_i32 = arith.constant 0 : i32
    %c0_i32_0 = arith.constant 0 : i32
    %c0_i32_1 = arith.constant 0 : i32
    return %c0_i32, %c0_i32_0 : i32, i32
  }
  func.func @transform_4(%arg0: i32) -> (i32, i32) {
    %c0_i32 = arith.constant 0 : i32
    %c0_i32_0 = arith.constant 0 : i32
    %c0_i32_1 = arith.constant 0 : i32
    return %c0_i32, %c0_i32_0 : i32, i32
  }
  func.func @transform_5(%arg0: i32) -> (i32, i32) {
    %c0_i32 = arith.constant 0 : i32
    %c0_i32_0 = arith.constant 0 : i32
    %c0_i32_1 = arith.constant 0 : i32
    return %c0_i32, %c0_i32_0 : i32, i32
  }
  func.func @transform_6(%arg0: i32) -> (i32, i32) {
    %c0_i32 = arith.constant 0 : i32
    %c0_i32_0 = arith.constant 0 : i32
    %c0_i32_1 = arith.constant 0 : i32
    return %c0_i32, %c0_i32_0 : i32, i32
  }
  func.func @transform_7(%arg0: i32) -> (i32, i32) {
    %c0_i32 = arith.constant 0 : i32
    %c0_i32_0 = arith.constant 0 : i32
    %c0_i32_1 = arith.constant 0 : i32
    return %c0_i32, %c0_i32_0 : i32, i32
  }
  func.func @transform_8(%arg0: i32) -> (i32, i32) {
    %c0_i32 = arith.constant 0 : i32
    %c0_i32_0 = arith.constant 0 : i32
    %c0_i32_1 = arith.constant 0 : i32
    return %c0_i32, %c0_i32_0 : i32, i32
  }
  func.func @transform_9(%arg0: i32) -> (i32, i32) {
    %c0_i32 = arith.constant 0 : i32
    %c0_i32_0 = arith.constant 0 : i32
    %c0_i32_1 = arith.constant 0 : i32
    return %c0_i32, %c0_i32_0 : i32, i32
  }
  func.func @transform_10(%arg0: i32) -> (i32, i32) {
    %c0_i32 = arith.constant 0 : i32
    %c0_i32_0 = arith.constant 0 : i32
    %c0_i32_1 = arith.constant 0 : i32
    return %c0_i32, %c0_i32_0 : i32, i32
  }
  func.func @transform_11(%arg0: i32) -> (i32, i32) {
    %c0_i32 = arith.constant 0 : i32
    %c0_i32_0 = arith.constant 0 : i32
    %c0_i32_1 = arith.constant 0 : i32
    return %c0_i32, %c0_i32_0 : i32, i32
  }
  func.func @transform_12(%arg0: i32) -> (i32, i32, i32) {
    %c0_i32 = arith.constant 0 : i32
    %c0_i32_0 = arith.constant 0 : i32
    %c0_i32_1 = arith.constant 0 : i32
    return %arg0, %c0_i32, %c0_i32_0 : i32, i32, i32
  }
}

</mosaic_0001>

<llo_original>
// kernel: tpu_custom_call.1
$region0: #{tpu_custom_call.1}
  #allocation0 [shape = 'u32[]', space=smem, size = 0x4, offset = 0x4, fixed_abs, tag = 'smem constant byte address 0x4 - core index']
  #allocation1 [shape = 'u32[144,128]{1,0:T(1,128)}', space=vmem, size = 0x12000, scoped, tag = 'internal scratch']
  %s0 = inlined_call_operand.vmem [shape: f32[2,16,4], index: 0, kind: input, shape index: {}]
  %s1 = inlined_call_operand.vmem [shape: s32[2,16,1], index: 1, kind: input, shape index: {}]
  %s2 = inlined_call_operand.vmem [shape: f32[2,16,16], index: 2, kind: input, shape index: {}]
  %s3 = inlined_call_operand.vmem [shape: bf16[4,256], index: 3, kind: input, shape index: {}]
  %s4 = inlined_call_operand.vmem [shape: bf16[31,256], index: 4, kind: input, shape index: {}]
  %s5 = inlined_call_operand.vmem [shape: bf16[64,256], index: 5, kind: input, shape index: {}]
  %s6 = inlined_call_operand.vmem [shape: f32[1,256], index: 6, kind: input, shape index: {}]
  %s7 = inlined_call_operand.vmem [shape: bf16[480,64], index: 7, kind: input, shape index: {}]
  %s8 = inlined_call_operand.vmem [shape: f32[1,64], index: 8, kind: input, shape index: {}]
  %s9 = inlined_call_operand.vmem [shape: bf16[704,64], index: 9, kind: input, shape index: {}]
  %s10 = inlined_call_operand.vmem [shape: f32[1,64], index: 10, kind: input, shape index: {}]
  %s11 = inlined_call_operand.vmem [shape: bf16[64,60], index: 11, kind: input, shape index: {}]
  %s12 = inlined_call_operand.hbm [shape: f32[2,1,60], index: 12, kind: output, shape index: {}]
  %s13 = sld [smem:[#allocation0]]
  $region81: #{tpu_custom_call.1} parent=0
    _
  %s15 = ssub.s32 1, %s13
  %s16 = scalar_select 0, %s15, %s13
  $region1: #{tpu_custom_call.1} parent=0
    #allocation2 [shape = 'u8[1024]{0}', space=vmem, size = 0x400, scoped, tag = 'output window, operand 0']
    #allocation3 [shape = 's32[2]{0}', space=sflag, size = 0x8, scoped, tag = 'scoped memory for tpu_custom_call.1']
    %17 = vsyncpa [#allocation3], 0
    %s18 = scalar_lea.sflag [#allocation3], 1
    %19 = vsyncpa %s18, 0
    loop: start=0, step=1, limit=4
    $region2: #{tpu_custom_call.1} parent=1 // loop_pre_header
      _
    $region3: #{tpu_custom_call.1} parent=1 // loop_header
      %s21 = sphi 0, %s25
      %p22 = scmp.ge.s32.totalorder %s21, 4
      %s31 = sphi 0, %s33
      %s34 = sphi 0, %s31
      %s35 = sphi 0, %s34
      %s51 = sphi 0, %s35
      %s57 = sphi 0, %s59
      %s60 = sphi 0, %s57
      %s61 = sphi 0, %s60
      %s77 = sphi 0, %s61
      %s83 = sphi 0, %s85
      %s86 = sphi 0, %s83
      %s87 = sphi 0, %s86
      %s103 = sphi 0, %s87
      %s107 = sphi 0, %s107
      %s109 = sphi 0, %s107
      %s110 = sphi 0, %s109
      %s124 = sphi 0, %s110
      %s128 = sphi 0, %s128
      %s130 = sphi 0, %s128
      %s131 = sphi 0, %s130
      %s145 = sphi 0, %s131
      %s149 = sphi 0, %s149
      %s151 = sphi 0, %s149
      %s152 = sphi 0, %s151
      %s166 = sphi 0, %s152
      %s170 = sphi 0, %s170
      %s172 = sphi 0, %s170
      %s173 = sphi 0, %s172
      %s187 = sphi 0, %s173
      %s191 = sphi 0, %s191
      %s193 = sphi 0, %s191
      %s194 = sphi 0, %s193
      %s208 = sphi 0, %s194
      %s212 = sphi 0, %s212
      %s214 = sphi 0, %s212
      %s215 = sphi 0, %s214
      %s229 = sphi 0, %s215
      %s233 = sphi 0, %s233
      %s235 = sphi 0, %s233
      %s236 = sphi 0, %s235
      %s250 = sphi 0, %s236
      %s254 = sphi 0, %s254
      %s256 = sphi 0, %s254
      %s257 = sphi 0, %s256
      %s271 = sphi 0, %s257
      %s275 = sphi 0, %s275
      %s277 = sphi 0, %s275
      %s278 = sphi 0, %s277
      %s292 = sphi 0, %s278
      %s298 = sphi 0, %s300
      %s301 = sphi 0, %s298
      %s302 = sphi 0, %s301
      %s318 = sphi 0, %s302
    $region4: #{tpu_custom_call.1} parent=1 // loop_header_branch
      %24 = sbr.rel (%p22) target = $region8
    $region5: #{tpu_custom_call.1} parent=1 // loop_body
      %s26 = ssub.s32 %s21, 1
      %s27 = ssub.s32 %s21, 2
      %s28 = sadd.s32 %s21, 1
      %s29 = ssub.s32 %s21, %s28
      %p30 = scmp.eq.s32.totalorder %s29, 0
      %s32 = sadd.s32 %s31, 1
      %s33 = scalar_select %p30, %s31, %s32
      %p36 = pneg %p30
      %p37 = scmp.eq.s32.totalorder %s21, 1
      %p38 = por %p36, %p37
      %p39 = scmp.ne.s32.totalorder %s31, %s34
      %p40 = scmp.eq.s32.totalorder %s21, 0
      %p41 = por %p39, %p40
      %p42 = scmp.ne.s32.totalorder %s31, %s34
      %p43 = scmp.eq.s32.totalorder %s26, 1
      %p44 = por %p42, %p43
      %p45 = scmp.ne.s32.totalorder %s34, %s35
      %p46 = scmp.eq.s32.totalorder %s26, 0
      %p47 = por %p45, %p46
      %p48 = scmp.ne.s32.totalorder %s34, %s35
      %p49 = scmp.eq.s32.totalorder %s27, 1
      %p50 = por %p48, %p49
      %p52 = scmp.ne.s32.totalorder %s35, %s51
      %p53 = scmp.eq.s32.totalorder %s27, 0
      %p54 = por %p52, %p53
      %s55 = ssub.s32 %s21, %s28
      %p56 = scmp.eq.s32.totalorder %s55, 0
      %s58 = sadd.s32 %s57, 1
      %s59 = scalar_select %p56, %s57, %s58
      %p62 = pneg %p56
      %p63 = scmp.eq.s32.totalorder %s21, 1
      %p64 = por %p62, %p63
      %p65 = scmp.ne.s32.totalorder %s57, %s60
      %p66 = scmp.eq.s32.totalorder %s21, 0
      %p67 = por %p65, %p66
      %p68 = scmp.ne.s32.totalorder %s57, %s60
      %p69 = scmp.eq.s32.totalorder %s26, 1
      %p70 = por %p68, %p69
      %p71 = scmp.ne.s32.totalorder %s60, %s61
      %p72 = scmp.eq.s32.totalorder %s26, 0
      %p73 = por %p71, %p72
      %p74 = scmp.ne.s32.totalorder %s60, %s61
      %p75 = scmp.eq.s32.totalorder %s27, 1
      %p76 = por %p74, %p75
      %p78 = scmp.ne.s32.totalorder %s61, %s77
      %p79 = scmp.eq.s32.totalorder %s27, 0
      %p80 = por %p78, %p79
      %s81 = ssub.s32 %s21, %s28
      %p82 = scmp.eq.s32.totalorder %s81, 0
      %s84 = sadd.s32 %s83, 1
      %s85 = scalar_select %p82, %s83, %s84
      %p88 = pneg %p82
      %p89 = scmp.eq.s32.totalorder %s21, 1
      %p90 = por %p88, %p89
      %p91 = scmp.ne.s32.totalorder %s83, %s86
      %p92 = scmp.eq.s32.totalorder %s21, 0
      %p93 = por %p91, %p92
      %p94 = scmp.ne.s32.totalorder %s83, %s86
      %p95 = scmp.eq.s32.totalorder %s26, 1
      %p96 = por %p94, %p95
      %p97 = scmp.ne.s32.totalorder %s86, %s87
      %p98 = scmp.eq.s32.totalorder %s26, 0
      %p99 = por %p97, %p98
      %p100 = scmp.ne.s32.totalorder %s86, %s87
      %p101 = scmp.eq.s32.totalorder %s27, 1
      %p102 = por %p100, %p101
      %p104 = scmp.ne.s32.totalorder %s87, %s103
      %p105 = scmp.eq.s32.totalorder %s27, 0
      %p106 = por %p104, %p105
      %s108 = sadd.s32 %s107, 1
      %p111 = scmp.eq.s32.totalorder %s21, 1
      %p112 = scmp.ne.s32.totalorder %s107, %s109
      %p113 = scmp.eq.s32.totalorder %s21, 0
      %p114 = por %p112, %p113
      %p115 = scmp.ne.s32.totalorder %s107, %s109
      %p116 = scmp.eq.s32.totalorder %s26, 1
      %p117 = por %p115, %p116
      %p118 = scmp.ne.s32.totalorder %s109, %s110
      %p119 = scmp.eq.s32.totalorder %s26, 0
      %p120 = por %p118, %p119
      %p121 = scmp.ne.s32.totalorder %s109, %s110
      %p122 = scmp.eq.s32.totalorder %s27, 1
      %p123 = por %p121, %p122
      %p125 = scmp.ne.s32.totalorder %s110, %s124
      %p126 = scmp.eq.s32.totalorder %s27, 0
      %p127 = por %p125, %p126
      %s129 = sadd.s32 %s128, 1
      %p132 = scmp.eq.s32.totalorder %s21, 1
      %p133 = scmp.ne.s32.totalorder %s128, %s130
      %p134 = scmp.eq.s32.totalorder %s21, 0
      %p135 = por %p133, %p134
      %p136 = scmp.ne.s32.totalorder %s128, %s130
      %p137 = scmp.eq.s32.totalorder %s26, 1
      %p138 = por %p136, %p137
      %p139 = scmp.ne.s32.totalorder %s130, %s131
      %p140 = scmp.eq.s32.totalorder %s26, 0
      %p141 = por %p139, %p140
      %p142 = scmp.ne.s32.totalorder %s130, %s131
      %p143 = scmp.eq.s32.totalorder %s27, 1
      %p144 = por %p142, %p143
      %p146 = scmp.ne.s32.totalorder %s131, %s145
      %p147 = scmp.eq.s32.totalorder %s27, 0
      %p148 = por %p146, %p147
      %s150 = sadd.s32 %s149, 1
      %p153 = scmp.eq.s32.totalorder %s21, 1
      %p154 = scmp.ne.s32.totalorder %s149, %s151
      %p155 = scmp.eq.s32.totalorder %s21, 0
      %p156 = por %p154, %p155
      %p157 = scmp.ne.s32.totalorder %s149, %s151
      %p158 = scmp.eq.s32.totalorder %s26, 1
      %p159 = por %p157, %p158
      %p160 = scmp.ne.s32.totalorder %s151, %s152
      %p161 = scmp.eq.s32.totalorder %s26, 0
      %p162 = por %p160, %p161
      %p163 = scmp.ne.s32.totalorder %s151, %s152
      %p164 = scmp.eq.s32.totalorder %s27, 1
      %p165 = por %p163, %p164
      %p167 = scmp.ne.s32.totalorder %s152, %s166
      %p168 = scmp.eq.s32.totalorder %s27, 0
      %p169 = por %p167, %p168
      %s171 = sadd.s32 %s170, 1
      %p174 = scmp.eq.s32.totalorder %s21, 1
      %p175 = scmp.ne.s32.totalorder %s170, %s172
      %p176 = scmp.eq.s32.totalorder %s21, 0
      %p177 = por %p175, %p176
      %p178 = scmp.ne.s32.totalorder %s170, %s172
      %p179 = scmp.eq.s32.totalorder %s26, 1
      %p180 = por %p178, %p179
      %p181 = scmp.ne.s32.totalorder %s172, %s173
      %p182 = scmp.eq.s32.totalorder %s26, 0
      %p183 = por %p181, %p182
      %p184 = scmp.ne.s32.totalorder %s172, %s173
      %p185 = scmp.eq.s32.totalorder %s27, 1
      %p186 = por %p184, %p185
      %p188 = scmp.ne.s32.totalorder %s173, %s187
      %p189 = scmp.eq.s32.totalorder %s27, 0
      %p190 = por %p188, %p189
      %s192 = sadd.s32 %s191, 1
      %p195 = scmp.eq.s32.totalorder %s21, 1
      %p196 = scmp.ne.s32.totalorder %s191, %s193
      %p197 = scmp.eq.s32.totalorder %s21, 0
      %p198 = por %p196, %p197
      %p199 = scmp.ne.s32.totalorder %s191, %s193
      %p200 = scmp.eq.s32.totalorder %s26, 1
      %p201 = por %p199, %p200
      %p202 = scmp.ne.s32.totalorder %s193, %s194
      %p203 = scmp.eq.s32.totalorder %s26, 0
      %p204 = por %p202, %p203
      %p205 = scmp.ne.s32.totalorder %s193, %s194
      %p206 = scmp.eq.s32.totalorder %s27, 1
      %p207 = por %p205, %p206
      %p209 = scmp.ne.s32.totalorder %s194, %s208
      %p210 = scmp.eq.s32.totalorder %s27, 0
      %p211 = por %p209, %p210
      %s213 = sadd.s32 %s212, 1
      %p216 = scmp.eq.s32.totalorder %s21, 1
      %p217 = scmp.ne.s32.totalorder %s212, %s214
      %p218 = scmp.eq.s32.totalorder %s21, 0
      %p219 = por %p217, %p218
      %p220 = scmp.ne.s32.totalorder %s212, %s214
      %p221 = scmp.eq.s32.totalorder %s26, 1
      %p222 = por %p220, %p221
      %p223 = scmp.ne.s32.totalorder %s214, %s215
      %p224 = scmp.eq.s32.totalorder %s26, 0
      %p225 = por %p223, %p224
      %p226 = scmp.ne.s32.totalorder %s214, %s215
      %p227 = scmp.eq.s32.totalorder %s27, 1
      %p228 = por %p226, %p227
      %p230 = scmp.ne.s32.totalorder %s215, %s229
      %p231 = scmp.eq.s32.totalorder %s27, 0
      %p232 = por %p230, %p231
      %s234 = sadd.s32 %s233, 1
      %p237 = scmp.eq.s32.totalorder %s21, 1
      %p238 = scmp.ne.s32.totalorder %s233, %s235
      %p239 = scmp.eq.s32.totalorder %s21, 0
      %p240 = por %p238, %p239
      %p241 = scmp.ne.s32.totalorder %s233, %s235
      %p242 = scmp.eq.s32.totalorder %s26, 1
      %p243 = por %p241, %p242
      %p244 = scmp.ne.s32.totalorder %s235, %s236
      %p245 = scmp.eq.s32.totalorder %s26, 0
      %p246 = por %p244, %p245
      %p247 = scmp.ne.s32.totalorder %s235, %s236
      %p248 = scmp.eq.s32.totalorder %s27, 1
      %p249 = por %p247, %p248
      %p251 = scmp.ne.s32.totalorder %s236, %s250
      %p252 = scmp.eq.s32.totalorder %s27, 0
      %p253 = por %p251, %p252
      %s255 = sadd.s32 %s254, 1
      %p258 = scmp.eq.s32.totalorder %s21, 1
      %p259 = scmp.ne.s32.totalorder %s254, %s256
      %p260 = scmp.eq.s32.totalorder %s21, 0
      %p261 = por %p259, %p260
      %p262 = scmp.ne.s32.totalorder %s254, %s256
      %p263 = scmp.eq.s32.totalorder %s26, 1
      %p264 = por %p262, %p263
      %p265 = scmp.ne.s32.totalorder %s256, %s257
      %p266 = scmp.eq.s32.totalorder %s26, 0
      %p267 = por %p265, %p266
      %p268 = scmp.ne.s32.totalorder %s256, %s257
      %p269 = scmp.eq.s32.totalorder %s27, 1
      %p270 = por %p268, %p269
      %p272 = scmp.ne.s32.totalorder %s257, %s271
      %p273 = scmp.eq.s32.totalorder %s27, 0
      %p274 = por %p272, %p273
      %s276 = sadd.s32 %s275, 1
      %p279 = scmp.eq.s32.totalorder %s21, 1
      %p280 = scmp.ne.s32.totalorder %s275, %s277
      %p281 = scmp.eq.s32.totalorder %s21, 0
      %p282 = por %p280, %p281
      %p283 = scmp.ne.s32.totalorder %s275, %s277
      %p284 = scmp.eq.s32.totalorder %s26, 1
      %p285 = por %p283, %p284
      %p286 = scmp.ne.s32.totalorder %s277, %s278
      %p287 = scmp.eq.s32.totalorder %s26, 0
      %p288 = por %p286, %p287
      %p289 = scmp.ne.s32.totalorder %s277, %s278
      %p290 = scmp.eq.s32.totalorder %s27, 1
      %p291 = por %p289, %p290
      %p293 = scmp.ne.s32.totalorder %s278, %s292
      %p294 = scmp.eq.s32.totalorder %s27, 0
      %p295 = por %p293, %p294
      %s296 = ssub.s32 %s21, %s28
      %p297 = scmp.eq.s32.totalorder %s296, 0
      %s299 = sadd.s32 %s298, 1
      %s300 = scalar_select %p297, %s298, %s299
      %p303 = pneg %p297
      %p304 = scmp.eq.s32.totalorder %s21, 1
      %p305 = por %p303, %p304
      %p306 = scmp.ne.s32.totalorder %s298, %s301
      %p307 = scmp.eq.s32.totalorder %s21, 0
      %p308 = por %p306, %p307
      %p309 = scmp.ne.s32.totalorder %s298, %s301
      %p310 = scmp.eq.s32.totalorder %s26, 1
      %p311 = por %p309, %p310
      %p312 = scmp.ne.s32.totalorder %s301, %s302
      %p313 = scmp.eq.s32.totalorder %s26, 0
      %p314 = por %p312, %p313
      %p315 = scmp.ne.s32.totalorder %s301, %s302
      %p316 = scmp.eq.s32.totalorder %s27, 1
      %p317 = por %p315, %p316
      %p319 = scmp.ne.s32.totalorder %s302, %s318
      %p320 = scmp.eq.s32.totalorder %s27, 0
      %p321 = por %p319, %p320
      %p322 = scmp.le.s32.totalorder 1, %s21
      %p323 = scmp.lt.s32.totalorder %s21, 3
      %p324 = pnand %p322, %p323
      %p325 = pneg %p324
      // Predicated region
      $region9: #{tpu_custom_call.1} parent=5 // pred_check
        _
      $region10: #{tpu_custom_call.1} parent=5 // pred_check_branch
        %327 = sbr.rel (%p324) target = $region12
      $region11: #{tpu_custom_call.1} parent=5 // pred_region
        %s328 = ssub.s32 %s21, 1
        // Predicated region
        $region13: #{tpu_custom_call.1} parent=11 // pred_check
          %p329 = pneg %p120
        $region14: #{tpu_custom_call.1} parent=11 // pred_check_branch
          %331 = sbr.rel (%p329) target = $region16
        $region15: #{tpu_custom_call.1} parent=11 // pred_region
          _
        $region16: #{tpu_custom_call.1} parent=11 // pred_fallthru
          _
        // Predicated region
        $region17: #{tpu_custom_call.1} parent=11 // pred_check
          %p332 = pneg %p141
        $region18: #{tpu_custom_call.1} parent=11 // pred_check_branch
          %334 = sbr.rel (%p332) target = $region20
        $region19: #{tpu_custom_call.1} parent=11 // pred_region
          _
        $region20: #{tpu_custom_call.1} parent=11 // pred_fallthru
          _
        // Predicated region
        $region21: #{tpu_custom_call.1} parent=11 // pred_check
          %p335 = pneg %p162
        $region22: #{tpu_custom_call.1} parent=11 // pred_check_branch
          %337 = sbr.rel (%p335) target = $region24
        $region23: #{tpu_custom_call.1} parent=11 // pred_region
          _
        $region24: #{tpu_custom_call.1} parent=11 // pred_fallthru
          _
        // Predicated region
        $region25: #{tpu_custom_call.1} parent=11 // pred_check
          %p338 = pneg %p183
        $region26: #{tpu_custom_call.1} parent=11 // pred_check_branch
          %340 = sbr.rel (%p338) target = $region28
        $region27: #{tpu_custom_call.1} parent=11 // pred_region
          _
        $region28: #{tpu_custom_call.1} parent=11 // pred_fallthru
          _
        // Predicated region
        $region29: #{tpu_custom_call.1} parent=11 // pred_check
          %p341 = pneg %p204
        $region30: #{tpu_custom_call.1} parent=11 // pred_check_branch
          %343 = sbr.rel (%p341) target = $region32
        $region31: #{tpu_custom_call.1} parent=11 // pred_region
          _
        $region32: #{tpu_custom_call.1} parent=11 // pred_fallthru
          _
        // Predicated region
        $region33: #{tpu_custom_call.1} parent=11 // pred_check
          %p344 = pneg %p225
        $region34: #{tpu_custom_call.1} parent=11 // pred_check_branch
          %346 = sbr.rel (%p344) target = $region36
        $region35: #{tpu_custom_call.1} parent=11 // pred_region
          _
        $region36: #{tpu_custom_call.1} parent=11 // pred_fallthru
          _
        // Predicated region
        $region37: #{tpu_custom_call.1} parent=11 // pred_check
          %p347 = pneg %p246
        $region38: #{tpu_custom_call.1} parent=11 // pred_check_branch
          %349 = sbr.rel (%p347) target = $region40
        $region39: #{tpu_custom_call.1} parent=11 // pred_region
          _
        $region40: #{tpu_custom_call.1} parent=11 // pred_fallthru
          _
        // Predicated region
        $region41: #{tpu_custom_call.1} parent=11 // pred_check
          %p350 = pneg %p267
        $region42: #{tpu_custom_call.1} parent=11 // pred_check_branch
          %352 = sbr.rel (%p350) target = $region44
        $region43: #{tpu_custom_call.1} parent=11 // pred_region
          _
        $region44: #{tpu_custom_call.1} parent=11 // pred_fallthru
          _
        // Predicated region
        $region45: #{tpu_custom_call.1} parent=11 // pred_check
          %p353 = pneg %p288
        $region46: #{tpu_custom_call.1} parent=11 // pred_check_branch
          %355 = sbr.rel (%p353) target = $region48
        $region47: #{tpu_custom_call.1} parent=11 // pred_region
          _
        $region48: #{tpu_custom_call.1} parent=11 // pred_fallthru
          _
      $region12: #{tpu_custom_call.1} parent=5 // pred_fallthru
        _
      %p356 = scmp.lt.s32.totalorder %s21, 2
      // Predicated region
      $region49: #{tpu_custom_call.1} parent=5 // pred_check
        %p357 = pneg %p356
      $region50: #{tpu_custom_call.1} parent=5 // pred_check_branch
        %359 = sbr.rel (%p357) target = $region52
      $region51: #{tpu_custom_call.1} parent=5 // pred_region
        // Predicated region
        $region53: #{tpu_custom_call.1} parent=51 // pred_check
          %p360 = pneg %p41
        $region54: #{tpu_custom_call.1} parent=51 // pred_check_branch
          %362 = sbr.rel (%p360) target = $region56
        $region55: #{tpu_custom_call.1} parent=51 // pred_region
          %p363 = scmp.lt.s32.totalorder %s21, 1
          %s364 = scalar_select %p363, %s21, 1
          %s365 = smul.addr %s364, 2
          %s366 = smul.addr %s365, 8
          %s367 = scalar_lea.vmem %s0, %s366
        $region56: #{tpu_custom_call.1} parent=51 // pred_fallthru
          _
        // Predicated region
        $region57: #{tpu_custom_call.1} parent=51 // pred_check
          %p368 = pneg %p67
        $region58: #{tpu_custom_call.1} parent=51 // pred_check_branch
          %370 = sbr.rel (%p368) target = $region60
        $region59: #{tpu_custom_call.1} parent=51 // pred_region
          %p371 = scmp.lt.s32.totalorder %s21, 1
          %s372 = scalar_select %p371, %s21, 1
          %s373 = smul.addr %s372, 2
          %s374 = smul.addr %s373, 8
          %s375 = scalar_lea.vmem %s1, %s374
        $region60: #{tpu_custom_call.1} parent=51 // pred_fallthru
          _
        // Predicated region
        $region61: #{tpu_custom_call.1} parent=51 // pred_check
          %p376 = pneg %p93
        $region62: #{tpu_custom_call.1} parent=51 // pred_check_branch
          %378 = sbr.rel (%p376) target = $region64
        $region63: #{tpu_custom_call.1} parent=51 // pred_region
          %p379 = scmp.lt.s32.totalorder %s21, 1
          %s380 = scalar_select %p379, %s21, 1
          %s381 = smul.addr %s380, 2
          %s382 = smul.addr %s381, 8
          %s383 = scalar_lea.vmem %s2, %s382
        $region64: #{tpu_custom_call.1} parent=51 // pred_fallthru
          _
      $region52: #{tpu_custom_call.1} parent=5 // pred_fallthru
        _
      %p384 = scmp.le.s32.totalorder 1, %s21
      %p385 = scmp.lt.s32.totalorder %s21, 3
      %p386 = pnand %p384, %p385
      %p387 = pneg %p386
      // Predicated region
      $region65: #{tpu_custom_call.1} parent=5 // pred_check
        _
      $region66: #{tpu_custom_call.1} parent=5 // pred_check_branch
        %389 = sbr.rel (%p386) target = $region68
      $region67: #{tpu_custom_call.1} parent=5 // pred_region
        %s390 = ssub.s32 %s21, 1
        %p391 = scmp.lt.s32.totalorder %s26, 1
        %s392 = scalar_select %p391, %s26, 1
        %s393 = smul.addr %s392, 2
        %s394 = smul.addr %s393, 8
        %s395 = scalar_lea.vmem %s0, %s394
        %p396 = pneg %p47
        %p397 = pneg %p44
        %p398 = scmp.lt.s32.totalorder %s26, 1
        %s399 = scalar_select %p398, %s26, 1
        %s400 = smul.addr %s399, 2
        %s401 = smul.addr %s400, 8
        %s402 = scalar_lea.vmem %s1, %s401
        %p403 = pneg %p73
        %p404 = pneg %p70
        %p405 = scmp.lt.s32.totalorder %s26, 1
        %s406 = scalar_select %p405, %s26, 1
        %s407 = smul.addr %s406, 2
        %s408 = smul.addr %s407, 8
        %s409 = scalar_lea.vmem %s2, %s408
        %p410 = pneg %p99
        %p411 = pneg %p96
        %p412 = pneg %p120
        %p413 = pneg %p117
        %p414 = pneg %p141
        %p415 = pneg %p138
        %p416 = pneg %p162
        %p417 = pneg %p159
        %p418 = pneg %p183
        %p419 = pneg %p180
        %p420 = pneg %p204
        %p421 = pneg %p201
        %p422 = pneg %p225
        %p423 = pneg %p222
        %p424 = pneg %p246
        %p425 = pneg %p243
        %p426 = pneg %p267
        %p427 = pneg %p264
        %p428 = pneg %p288
        %p429 = pneg %p285
        %p430 = pneg %p314
        %p431 = pneg %p311
        %s432 = sand.u32 %s301, 1
        %s433 = scalar_lea.sflag [#allocation3], %s432
        %s434 = sand.u32 %s301, 1
        %s435 = scalar_lea.vmem [#allocation2], %s434
        %p436 = scmp.lt.s32.totalorder %s26, 1
        %s437 = scalar_select %p436, %s26, 1
        %s438 = smul.addr %s437, 2
        %s439 = smul.addr %s438, 8
        %s440 = scalar_lea.vmem %s0, %s439
        %p441 = scmp.lt.s32.totalorder %s26, 1
        %s442 = scalar_select %p441, %s26, 1
        %s443 = smul.addr %s442, 2
        %s444 = smul.addr %s443, 8
        %s445 = scalar_lea.vmem %s1, %s444
        %p446 = scmp.lt.s32.totalorder %s26, 1
        %s447 = scalar_select %p446, %s26, 1
        %s448 = smul.addr %s447, 2
        %s449 = smul.addr %s448, 8
        %s450 = scalar_lea.vmem %s2, %s449
        %v452 = vld [vmem:[%s445] sm:$0xff]
        %v453 = vld [vmem:[%s445 + $0x8] sm:$0xff]
        %v454 = vlaneseq
        %v455 = vand.u32 %v454, 127
        %456 = vset.pattern.permute.xlu0 0
        %457 = vperm.xlu0 %456, %v452
        %v458 = vpop.permute.xlu0 %457
        %459 = vset.pattern.permute.xlu0 0
        %460 = vperm.xlu0 %459, %v453
        %v461 = vpop.permute.xlu0 %460
        %vm462 = vcmp.eq.s32.totalorder %v455, %v458
        %vm463 = vcmp.eq.s32.totalorder %v455, %v461
        %v464 = vsel %vm462, 1, 0
        %v465 = vsel %vm463, 1, 0
        %v466 = vcvt.s32.f32 %v464
        %v467 = vcvt.s32.f32 %v465
        %v468 = vpack.c.bf16 %v467, %v466
        %v469 = vld [vmem:[%s440] sm:$0xff]
        %v470 = vld [vmem:[%s440 + $0x8] sm:$0xff]
        %v471 = vpack.c.bf16 %v470, %v469
        %v472 = vld [vmem:[%s3] sm:$0xf]
        %v473 = vld [vmem:[%s4] sm:$0xff]
        %v474 = vld [vmem:[%s4 + $0x8] sm:$0xff]
        %v475 = vld [vmem:[%s4 + $0x10] sm:$0xff]
        %v476 = vld [vmem:[%s4 + $0x18] sm:$0xff]
        %v481 = vunpack.c.l.b16 %v473
        %v482 = vunpack.c.h.b16 %v473
        %v483 = vunpack.c.l.b16 %v474
        %v484 = vunpack.c.h.b16 %v474
        %v485 = vunpack.c.l.b16 %v475
        %v486 = vunpack.c.h.b16 %v475
        %v487 = vunpack.c.l.b16 %v476
        %v488 = vunpack.c.h.b16 %v476
        %v489 = vpack.c.b16 %v483, %v481
        %v490 = vpack.c.b16 %v484, %v482
        %v491 = vpack.c.b16 %v487, %v485
        %v492 = vpack.c.b16 %v488, %v486
        %vm495 = vcmask 252928
        %v497 = vsel %vm495, %v468, 0
        %vm499 = vcmask 1046528
        %vm500 = vcmask 1047552
        %v501 = vsel %vm499, 4294967295, 65535
        %v502 = vsel %vm500, %v501, 0
        %v504 = vand.u32 %v491, %v502
        %v507 = vand.u32 %v492, %v502
        %509 = vmatprep.subr.bf16.mxu0 0
        %510 = vmatpush1.bf16.msra.mxu0 0
        %511 = vmatprep.subr.bf16.mxu0 0
        %512 = vmatpush1.bf16.msra.mxu0 0
        %513 = vmatprep.subr.bf16.mxu0 0
        %514 = vmatpush1.bf16.msra.mxu0 0
        %515 = vmatprep.subr.bf16.mxu0 0
        %516 = vmatpush1.bf16.msra.mxu0 0
        %517 = vmatprep.subr.bf16.mxu0 0
        %518 = vmatpush1.bf16.msra.mxu0 0
        %519 = vmatprep.subr.bf16.mxu0 0
        %520 = vmatpush1.bf16.msra.mxu0 0
        %521 = vmatprep.subr.bf16.mxu0 %v507
        %522 = vmatpush1.bf16.msra.mxu0 %v504
        %523 = vmatprep.subr.bf16.mxu0 %v490
        %524 = vmatpush1.bf16.msra.mxu0 %v489
        %525 = vmatprep.subr.bf16.mxu0 0
        %526 = vmatpush2.bf16.msra.mxu0 0
        %527 = vmatprep.subr.bf16.mxu0 0
        %528 = vmatpush2.bf16.msra.mxu0 0
        %529 = vmatprep.subr.bf16.mxu0 0
        %530 = vmatpush2.bf16.msra.mxu0 0
        %531 = vmatprep.subr.bf16.mxu0 0
        %532 = vmatpush2.bf16.msra.mxu0 0
        %533 = vmatprep.subr.bf16.mxu0 0
        %534 = vmatpush2.bf16.msra.mxu0 0
        %535 = vmatprep.subr.bf16.mxu0 0
        %536 = vmatpush2.bf16.msra.mxu0 0
        %537 = vmatprep.subr.bf16.mxu0 0
        %538 = vmatpush2.bf16.msra.mxu0 0
        %539 = vmatprep.subr.bf16.mxu0 0
        %540 = vmatpush2.bf16.msra.mxu0 0
        %541 = vmatprep.mubr.bf16.mxu0 0
        %542 = vmatmul.mubr.bf16.gmra.mxu0 %v497
        %v543 = vpop.f32.mrf.mxu0
        %v544 = vadd.f32 0.0, %v543
        %v545 = vpop.f32.mrf.mxu0
        %v546 = vadd.f32 0.0, %v545
        %v547 = vpop.f32.mrf.mxu0
        %v548 = vadd.f32 0.0, %v547
        %v549 = vpop.f32.mrf.mxu0
        %v550 = vadd.f32 0.0, %v549
        %551 = vdwg.mxu0
        %v554 = vunpack.c.l.s4 1983009808
        %v555 = vunpack.c.0.s8 %v554
        %v556 = vlaneseq
        %v557 = vshrl.u32 %v556, 7
        %v558 = vsub.s32 %v555, %v557
        %v559 = vrot.slane %v472, %v558
        %v560 = vcombine.high %v559, %v559
        %vm561 = vcmask 31744
        %v563 = vsel %vm561, %v471, 0
        %vm565 = vcmask 1041408
        %v567 = vsel %vm565, %v559, 0
        %v570 = vsel %vm565, %v560, 0
        %572 = vmatprep.subr.bf16.mxu0 0
        %573 = vmatpush1.bf16.msra.mxu0 0
        %574 = vmatprep.subr.bf16.mxu0 0
        %575 = vmatpush1.bf16.msra.mxu0 0
        %576 = vmatprep.subr.bf16.mxu0 0
        %577 = vmatpush1.bf16.msra.mxu0 0
        %578 = vmatprep.subr.bf16.mxu0 0
        %579 = vmatpush1.bf16.msra.mxu0 0
        %580 = vmatprep.subr.bf16.mxu0 0
        %581 = vmatpush1.bf16.msra.mxu0 0
        %582 = vmatprep.subr.bf16.mxu0 0
        %583 = vmatpush1.bf16.msra.mxu0 0
        %584 = vmatprep.subr.bf16.mxu0 0
        %585 = vmatpush1.bf16.msra.mxu0 0
        %586 = vmatprep.subr.bf16.mxu0 %v570
        %587 = vmatpush1.bf16.msra.mxu0 %v567
        %588 = vmatprep.subr.bf16.mxu0 0
        %589 = vmatpush2.bf16.msra.mxu0 0
        %590 = vmatprep.subr.bf16.mxu0 0
        %591 = vmatpush2.bf16.msra.mxu0 0
        %592 = vmatprep.subr.bf16.mxu0 0
        %593 = vmatpush2.bf16.msra.mxu0 0
        %594 = vmatprep.subr.bf16.mxu0 0
        %595 = vmatpush2.bf16.msra.mxu0 0
        %596 = vmatprep.subr.bf16.mxu0 0
        %597 = vmatpush2.bf16.msra.mxu0 0
        %598 = vmatprep.subr.bf16.mxu0 0
        %599 = vmatpush2.bf16.msra.mxu0 0
        %600 = vmatprep.subr.bf16.mxu0 0
        %601 = vmatpush2.bf16.msra.mxu0 0
        %602 = vmatprep.subr.bf16.mxu0 0
        %603 = vmatpush2.bf16.msra.mxu0 0
        %604 = vmatprep.mubr.bf16.mxu0 0
        %605 = vmatmul.mubr.bf16.gmra.mxu0 %v563
        %v606 = vpop.f32.mrf.mxu0
        %v607 = vadd.f32 %v544, %v606
        %v608 = vpop.f32.mrf.mxu0
        %v609 = vadd.f32 %v546, %v608
        %v610 = vpop.f32.mrf.mxu0
        %v611 = vadd.f32 %v548, %v610
        %v612 = vpop.f32.mrf.mxu0
        %v613 = vadd.f32 %v550, %v612
        %614 = vdwg.mxu0
        %v615 = vld [vmem:[%s6] sm:$0x3]
        %v617 = vlaneseq
        %v618 = vshrl.u32 %v617, 7
        %v619 = vsub.s32 0, %v618
        %v620 = vrot.slane %v615, %v619
        %v621 = vlaneseq
        %v622 = vshrl.u32 %v621, 7
        %v623 = vsub.s32 1, %v622
        %v624 = vrot.slane %v615, %v623
        %v627 = vadd.f32 %v607, %v620
        %v628 = vadd.f32 %v609, %v624
        %v629 = vadd.f32 %v611, %v620
        %v630 = vadd.f32 %v613, %v624
        %v631 = vld [vmem:[%s5] sm:$0xff]
        %v632 = vld [vmem:[%s5 + $0x8] sm:$0xff]
        %v633 = vld [vmem:[%s5 + $0x10] sm:$0xff]
        %v634 = vld [vmem:[%s5 + $0x18] sm:$0xff]
        %v635 = vld [vmem:[%s5 + $0x20] sm:$0xff]
        %v636 = vld [vmem:[%s5 + $0x28] sm:$0xff]
        %v637 = vld [vmem:[%s5 + $0x30] sm:$0xff]
        %v638 = vld [vmem:[%s5 + $0x38] sm:$0xff]
        %v647 = vunpack.c.l.b16 %v631
        %v648 = vunpack.c.h.b16 %v631
        %v649 = vunpack.c.l.b16 %v632
        %v650 = vunpack.c.h.b16 %v632
        %v651 = vunpack.c.l.b16 %v633
        %v652 = vunpack.c.h.b16 %v633
        %v653 = vunpack.c.l.b16 %v634
        %v654 = vunpack.c.h.b16 %v634
        %v655 = vunpack.c.l.b16 %v635
        %v656 = vunpack.c.h.b16 %v635
        %v657 = vunpack.c.l.b16 %v636
        %v658 = vunpack.c.h.b16 %v636
        %v659 = vunpack.c.l.b16 %v637
        %v660 = vunpack.c.h.b16 %v637
        %v661 = vunpack.c.l.b16 %v638
        %v662 = vunpack.c.h.b16 %v638
        %v663 = vpack.c.b16 %v649, %v647
        %v664 = vpack.c.b16 %v650, %v648
        %v665 = vpack.c.b16 %v653, %v651
        %v666 = vpack.c.b16 %v654, %v652
        %v667 = vpack.c.b16 %v657, %v655
        %v668 = vpack.c.b16 %v658, %v656
        %v669 = vpack.c.b16 %v661, %v659
        %v670 = vpack.c.b16 %v662, %v660
        %vm679 = vcmask 523264
        %v681 = vsel %vm679, 0, 0
        %683 = vmatprep.subr.bf16.mxu0 0
        %684 = vmatpush1.bf16.msra.mxu0 0
        %685 = vmatprep.subr.bf16.mxu0 0
        %686 = vmatpush1.bf16.msra.mxu0 0
        %687 = vmatprep.subr.bf16.mxu0 0
        %688 = vmatpush1.bf16.msra.mxu0 0
        %689 = vmatprep.subr.bf16.mxu0 0
        %690 = vmatpush1.bf16.msra.mxu0 0
        %691 = vmatprep.subr.bf16.mxu0 %v670
        %692 = vmatpush1.bf16.msra.mxu0 %v669
        %693 = vmatprep.subr.bf16.mxu0 %v668
        %694 = vmatpush1.bf16.msra.mxu0 %v667
        %695 = vmatprep.subr.bf16.mxu0 %v666
        %696 = vmatpush1.bf16.msra.mxu0 %v665
        %697 = vmatprep.subr.bf16.mxu0 %v664
        %698 = vmatpush1.bf16.msra.mxu0 %v663
        %699 = vmatprep.subr.bf16.mxu0 0
        %700 = vmatpush2.bf16.msra.mxu0 0
        %701 = vmatprep.subr.bf16.mxu0 0
        %702 = vmatpush2.bf16.msra.mxu0 0
        %703 = vmatprep.subr.bf16.mxu0 0
        %704 = vmatpush2.bf16.msra.mxu0 0
        %705 = vmatprep.subr.bf16.mxu0 0
        %706 = vmatpush2.bf16.msra.mxu0 0
        %707 = vmatprep.subr.bf16.mxu0 0
        %708 = vmatpush2.bf16.msra.mxu0 0
        %709 = vmatprep.subr.bf16.mxu0 0
        %710 = vmatpush2.bf16.msra.mxu0 0
        %711 = vmatprep.subr.bf16.mxu0 0
        %712 = vmatpush2.bf16.msra.mxu0 0
        %713 = vmatprep.subr.bf16.mxu0 0
        %714 = vmatpush2.bf16.msra.mxu0 0
        %715 = vmatprep.mubr.bf16.mxu0 0
        %716 = vmatmul.mubr.bf16.gmra.mxu0 %v681
        %v717 = vpop.f32.mrf.mxu0
        %v718 = vadd.f32 0.0, %v717
        %v719 = vpop.f32.mrf.mxu0
        %v720 = vadd.f32 0.0, %v719
        %v721 = vpop.f32.mrf.mxu0
        %v722 = vpop.f32.mrf.mxu0
        %723 = vdwg.mxu0
        %v724 = vadd.f32 %v627, %v718
        %v725 = vadd.f32 %v628, %v720
        %v726 = vxor.u32 %v724, 2147483648
        %v727 = vmul.f32 %v726, 1.442695
        %v728 = vpow.pop %v727
        %v729 = vadd.f32 %v728, 1.0
        %v730 = vrcp.pop %v729
        %v731 = vmul.f32 1.0, %v730
        %v732 = vtanh.pop %v725
        %v733 = vxor.u32 %v725, 2147483648
        %v734 = vmul.f32 %v733, 1.442695
        %v735 = vpow.pop %v734
        %v736 = vadd.f32 %v735, 1.0
        %v737 = vrcp.pop %v736
        %v738 = vmul.f32 1.0, %v737
        %v739 = vmul.f32 %v731, 0.0
        %v740 = vmul.f32 %v731, %v732
        %742 = vrot.lane.b32.xlu0 %v740, 64
        %v743 = vpop.permute.xlu0 %742
        %v745 = vadd.f32 %v739, %v743
        %v746 = vtanh.pop %v745
        %v747 = vmul.f32 %v738, %v746
        %v748 = vpack.c.bf16 %v747, %v747
        %750 = vrot.lane.b32.xlu0 %v748, 64
        %v751 = vpop.permute.xlu0 %750
        %v753 = vsel %vm679, %v751, 0
        %755 = vmatprep.subr.bf16.mxu0 0
        %756 = vmatpush1.bf16.msra.mxu0 0
        %757 = vmatprep.subr.bf16.mxu0 0
        %758 = vmatpush1.bf16.msra.mxu0 0
        %759 = vmatprep.subr.bf16.mxu0 0
        %760 = vmatpush1.bf16.msra.mxu0 0
        %761 = vmatprep.subr.bf16.mxu0 0
        %762 = vmatpush1.bf16.msra.mxu0 0
        %763 = vmatprep.subr.bf16.mxu0 %v670
        %764 = vmatpush1.bf16.msra.mxu0 %v669
        %765 = vmatprep.subr.bf16.mxu0 %v668
        %766 = vmatpush1.bf16.msra.mxu0 %v667
        %767 = vmatprep.subr.bf16.mxu0 %v666
        %768 = vmatpush1.bf16.msra.mxu0 %v665
        %769 = vmatprep.subr.bf16.mxu0 %v664
        %770 = vmatpush1.bf16.msra.mxu0 %v663
        %771 = vmatprep.subr.bf16.mxu0 0
        %772 = vmatpush2.bf16.msra.mxu0 0
        %773 = vmatprep.subr.bf16.mxu0 0
        %774 = vmatpush2.bf16.msra.mxu0 0
        %775 = vmatprep.subr.bf16.mxu0 0
        %776 = vmatpush2.bf16.msra.mxu0 0
        %777 = vmatprep.subr.bf16.mxu0 0
        %778 = vmatpush2.bf16.msra.mxu0 0
        %779 = vmatprep.subr.bf16.mxu0 0
        %780 = vmatpush2.bf16.msra.mxu0 0
        %781 = vmatprep.subr.bf16.mxu0 0
        %782 = vmatpush2.bf16.msra.mxu0 0
        %783 = vmatprep.subr.bf16.mxu0 0
        %784 = vmatpush2.bf16.msra.mxu0 0
        %785 = vmatprep.subr.bf16.mxu0 0
        %786 = vmatpush2.bf16.msra.mxu0 0
        %787 = vmatprep.mubr.bf16.mxu0 0
        %788 = vmatmul.mubr.bf16.gmra.mxu0 %v753
        %v789 = vpop.f32.mrf.mxu0
        %v790 = vadd.f32 0.0, %v789
        %v791 = vpop.f32.mrf.mxu0
        %v792 = vadd.f32 0.0, %v791
        %v793 = vpop.f32.mrf.mxu0
        %v794 = vpop.f32.mrf.mxu0
        %795 = vdwg.mxu0
        %v798 = vrot.slane %v790, 7
        %v799 = vrot.slane %v792, 7
        %v802 = vadd.f32 %v627, %v798
        %v803 = vadd.f32 %v628, %v799
        %v804 = vxor.u32 %v802, 2147483648
        %v805 = vmul.f32 %v804, 1.442695
        %v806 = vpow.pop %v805
        %v807 = vadd.f32 %v806, 1.0
        %v808 = vrcp.pop %v807
        %v809 = vmul.f32 1.0, %v808
        %v810 = vtanh.pop %v803
        %v811 = vxor.u32 %v803, 2147483648
        %v812 = vmul.f32 %v811, 1.442695
        %v813 = vpow.pop %v812
        %v814 = vadd.f32 %v813, 1.0
        %v815 = vrcp.pop %v814
        %v816 = vmul.f32 1.0, %v815
        %v818 = vrot.slane %v745, 7
        %v820 = vmul.f32 %v809, %v818
        %v821 = vmul.f32 %v809, %v810
        %823 = vrot.lane.b32.xlu0 %v821, 64
        %v824 = vpop.permute.xlu0 %823
        %v826 = vadd.f32 %v820, %v824
        %v827 = vtanh.pop %v826
        %v828 = vmul.f32 %v816, %v827
        %v829 = vpack.c.bf16 %v828, %v828
        %v831 = vshrl.u32 %v829, 16
        %833 = vrot.lane.b32.xlu0 %v831, 64
        %v834 = vpop.permute.xlu0 %833
        %v836 = vsel %vm679, %v834, 0
        %838 = vmatprep.subr.bf16.mxu0 0
        %839 = vmatpush1.bf16.msra.mxu0 0
        %840 = vmatprep.subr.bf16.mxu0 0
        %841 = vmatpush1.bf16.msra.mxu0 0
        %842 = vmatprep.subr.bf16.mxu0 0
        %843 = vmatpush1.bf16.msra.mxu0 0
        %844 = vmatprep.subr.bf16.mxu0 0
        %845 = vmatpush1.bf16.msra.mxu0 0
        %846 = vmatprep.subr.bf16.mxu0 %v670
        %847 = vmatpush1.bf16.msra.mxu0 %v669
        %848 = vmatprep.subr.bf16.mxu0 %v668
        %849 = vmatpush1.bf16.msra.mxu0 %v667
        %850 = vmatprep.subr.bf16.mxu0 %v666
        %851 = vmatpush1.bf16.msra.mxu0 %v665
        %852 = vmatprep.subr.bf16.mxu0 %v664
        %853 = vmatpush1.bf16.msra.mxu0 %v663
        %854 = vmatprep.subr.bf16.mxu0 0
        %855 = vmatpush2.bf16.msra.mxu0 0
        %856 = vmatprep.subr.bf16.mxu0 0
        %857 = vmatpush2.bf16.msra.mxu0 0
        %858 = vmatprep.subr.bf16.mxu0 0
        %859 = vmatpush2.bf16.msra.mxu0 0
        %860 = vmatprep.subr.bf16.mxu0 0
        %861 = vmatpush2.bf16.msra.mxu0 0
        %862 = vmatprep.subr.bf16.mxu0 0
        %863 = vmatpush2.bf16.msra.mxu0 0
        %864 = vmatprep.subr.bf16.mxu0 0
        %865 = vmatpush2.bf16.msra.mxu0 0
        %866 = vmatprep.subr.bf16.mxu0 0
        %867 = vmatpush2.bf16.msra.mxu0 0
        %868 = vmatprep.subr.bf16.mxu0 0
        %869 = vmatpush2.bf16.msra.mxu0 0
        %870 = vmatprep.mubr.bf16.mxu0 0
        %871 = vmatmul.mubr.bf16.gmra.mxu0 %v836
        %v872 = vpop.f32.mrf.mxu0
        %v873 = vadd.f32 0.0, %v872
        %v874 = vpop.f32.mrf.mxu0
        %v875 = vadd.f32 0.0, %v874
        %v876 = vpop.f32.mrf.mxu0
        %v877 = vpop.f32.mrf.mxu0
        %878 = vdwg.mxu0
        %v881 = vrot.slane %v873, 6
        %v882 = vrot.slane %v875, 6
        %v885 = vadd.f32 %v627, %v881
        %v886 = vadd.f32 %v628, %v882
        %v887 = vxor.u32 %v885, 2147483648
        %v888 = vmul.f32 %v887, 1.442695
        %v889 = vpow.pop %v888
        %v890 = vadd.f32 %v889, 1.0
        %v891 = vrcp.pop %v890
        %v892 = vmul.f32 1.0, %v891
        %v893 = vtanh.pop %v886
        %v894 = vxor.u32 %v886, 2147483648
        %v895 = vmul.f32 %v894, 1.442695
        %v896 = vpow.pop %v895
        %v897 = vadd.f32 %v896, 1.0
        %v898 = vrcp.pop %v897
        %v899 = vmul.f32 1.0, %v898
        %v901 = vrot.slane %v826, 7
        %v903 = vmul.f32 %v892, %v901
        %v904 = vmul.f32 %v892, %v893
        %906 = vrot.lane.b32.xlu0 %v904, 64
        %v907 = vpop.permute.xlu0 %906
        %v909 = vadd.f32 %v903, %v907
        %v910 = vtanh.pop %v909
        %v911 = vmul.f32 %v899, %v910
        %v912 = vpack.c.bf16 %v911, %v911
        %v914 = vrot.slane %v912, 1
        %915 = vrot.lane.b32.xlu0 %v914, 64
        %v916 = vpop.permute.xlu0 %915
        %v918 = vsel %vm679, %v916, 0
        %920 = vmatprep.subr.bf16.mxu0 0
        %921 = vmatpush1.bf16.msra.mxu0 0
        %922 = vmatprep.subr.bf16.mxu0 0
        %923 = vmatpush1.bf16.msra.mxu0 0
        %924 = vmatprep.subr.bf16.mxu0 0
        %925 = vmatpush1.bf16.msra.mxu0 0
        %926 = vmatprep.subr.bf16.mxu0 0
        %927 = vmatpush1.bf16.msra.mxu0 0
        %928 = vmatprep.subr.bf16.mxu0 %v670
        %929 = vmatpush1.bf16.msra.mxu0 %v669
        %930 = vmatprep.subr.bf16.mxu0 %v668
        %931 = vmatpush1.bf16.msra.mxu0 %v667
        %932 = vmatprep.subr.bf16.mxu0 %v666
        %933 = vmatpush1.bf16.msra.mxu0 %v665
        %934 = vmatprep.subr.bf16.mxu0 %v664
        %935 = vmatpush1.bf16.msra.mxu0 %v663
        %936 = vmatprep.subr.bf16.mxu0 0
        %937 = vmatpush2.bf16.msra.mxu0 0
        %938 = vmatprep.subr.bf16.mxu0 0
        %939 = vmatpush2.bf16.msra.mxu0 0
        %940 = vmatprep.subr.bf16.mxu0 0
        %941 = vmatpush2.bf16.msra.mxu0 0
        %942 = vmatprep.subr.bf16.mxu0 0
        %943 = vmatpush2.bf16.msra.mxu0 0
        %944 = vmatprep.subr.bf16.mxu0 0
        %945 = vmatpush2.bf16.msra.mxu0 0
        %946 = vmatprep.subr.bf16.mxu0 0
        %947 = vmatpush2.bf16.msra.mxu0 0
        %948 = vmatprep.subr.bf16.mxu0 0
        %949 = vmatpush2.bf16.msra.mxu0 0
        %950 = vmatprep.subr.bf16.mxu0 0
        %951 = vmatpush2.bf16.msra.mxu0 0
        %952 = vmatprep.mubr.bf16.mxu0 0
        %953 = vmatmul.mubr.bf16.gmra.mxu0 %v918
        %v954 = vpop.f32.mrf.mxu0
        %v955 = vadd.f32 0.0, %v954
        %v956 = vpop.f32.mrf.mxu0
        %v957 = vadd.f32 0.0, %v956
        %v958 = vpop.f32.mrf.mxu0
        %v959 = vpop.f32.mrf.mxu0
        %960 = vdwg.mxu0
        %v963 = vrot.slane %v955, 5
        %v964 = vrot.slane %v957, 5
        %v967 = vadd.f32 %v627, %v963
        %v968 = vadd.f32 %v628, %v964
        %v969 = vxor.u32 %v967, 2147483648
        %v970 = vmul.f32 %v969, 1.442695
        %v971 = vpow.pop %v970
        %v972 = vadd.f32 %v971, 1.0
        %v973 = vrcp.pop %v972
        %v974 = vmul.f32 1.0, %v973
        %v975 = vtanh.pop %v968
        %v976 = vxor.u32 %v968, 2147483648
        %v977 = vmul.f32 %v976, 1.442695
        %v978 = vpow.pop %v977
        %v979 = vadd.f32 %v978, 1.0
        %v980 = vrcp.pop %v979
        %v981 = vmul.f32 1.0, %v980
        %v983 = vrot.slane %v909, 7
        %v985 = vmul.f32 %v974, %v983
        %v986 = vmul.f32 %v974, %v975
        %988 = vrot.lane.b32.xlu0 %v986, 64
        %v989 = vpop.permute.xlu0 %988
        %v991 = vadd.f32 %v985, %v989
        %v992 = vtanh.pop %v991
        %v993 = vmul.f32 %v981, %v992
        %v994 = vpack.c.bf16 %v993, %v993
        %v996 = vshrl.u32 %v994, 16
        %v998 = vrot.slane %v996, 1
        %999 = vrot.lane.b32.xlu0 %v998, 64
        %v1000 = vpop.permute.xlu0 %999
        %v1002 = vsel %vm679, %v1000, 0
        %1004 = vmatprep.subr.bf16.mxu0 0
        %1005 = vmatpush1.bf16.msra.mxu0 0
        %1006 = vmatprep.subr.bf16.mxu0 0
        %1007 = vmatpush1.bf16.msra.mxu0 0
        %1008 = vmatprep.subr.bf16.mxu0 0
        %1009 = vmatpush1.bf16.msra.mxu0 0
        %1010 = vmatprep.subr.bf16.mxu0 0
        %1011 = vmatpush1.bf16.msra.mxu0 0
        %1012 = vmatprep.subr.bf16.mxu0 %v670
        %1013 = vmatpush1.bf16.msra.mxu0 %v669
        %1014 = vmatprep.subr.bf16.mxu0 %v668
        %1015 = vmatpush1.bf16.msra.mxu0 %v667
        %1016 = vmatprep.subr.bf16.mxu0 %v666
        %1017 = vmatpush1.bf16.msra.mxu0 %v665
        %1018 = vmatprep.subr.bf16.mxu0 %v664
        %1019 = vmatpush1.bf16.msra.mxu0 %v663
        %1020 = vmatprep.subr.bf16.mxu0 0
        %1021 = vmatpush2.bf16.msra.mxu0 0
        %1022 = vmatprep.subr.bf16.mxu0 0
        %1023 = vmatpush2.bf16.msra.mxu0 0
        %1024 = vmatprep.subr.bf16.mxu0 0
        %1025 = vmatpush2.bf16.msra.mxu0 0
        %1026 = vmatprep.subr.bf16.mxu0 0
        %1027 = vmatpush2.bf16.msra.mxu0 0
        %1028 = vmatprep.subr.bf16.mxu0 0
        %1029 = vmatpush2.bf16.msra.mxu0 0
        %1030 = vmatprep.subr.bf16.mxu0 0
        %1031 = vmatpush2.bf16.msra.mxu0 0
        %1032 = vmatprep.subr.bf16.mxu0 0
        %1033 = vmatpush2.bf16.msra.mxu0 0
        %1034 = vmatprep.subr.bf16.mxu0 0
        %1035 = vmatpush2.bf16.msra.mxu0 0
        %1036 = vmatprep.mubr.bf16.mxu0 0
        %1037 = vmatmul.mubr.bf16.gmra.mxu0 %v1002
        %v1038 = vpop.f32.mrf.mxu0
        %v1039 = vadd.f32 0.0, %v1038
        %v1040 = vpop.f32.mrf.mxu0
        %v1041 = vadd.f32 0.0, %v1040
        %v1042 = vpop.f32.mrf.mxu0
        %v1043 = vpop.f32.mrf.mxu0
        %1044 = vdwg.mxu0
        %v1047 = vrot.slane %v1039, 4
        %v1048 = vrot.slane %v1041, 4
        %v1051 = vadd.f32 %v627, %v1047
        %v1052 = vadd.f32 %v628, %v1048
        %v1053 = vxor.u32 %v1051, 2147483648
        %v1054 = vmul.f32 %v1053, 1.442695
        %v1055 = vpow.pop %v1054
        %v1056 = vadd.f32 %v1055, 1.0
        %v1057 = vrcp.pop %v1056
        %v1058 = vmul.f32 1.0, %v1057
        %v1059 = vtanh.pop %v1052
        %v1060 = vxor.u32 %v1052, 2147483648
        %v1061 = vmul.f32 %v1060, 1.442695
        %v1062 = vpow.pop %v1061
        %v1063 = vadd.f32 %v1062, 1.0
        %v1064 = vrcp.pop %v1063
        %v1065 = vmul.f32 1.0, %v1064
        %v1067 = vrot.slane %v991, 7
        %v1069 = vmul.f32 %v1058, %v1067
        %v1070 = vmul.f32 %v1058, %v1059
        %1072 = vrot.lane.b32.xlu0 %v1070, 64
        %v1073 = vpop.permute.xlu0 %1072
        %v1075 = vadd.f32 %v1069, %v1073
        %v1076 = vtanh.pop %v1075
        %v1077 = vmul.f32 %v1065, %v1076
        %v1078 = vpack.c.bf16 %v1077, %v1077
        %v1080 = vrot.slane %v1078, 2
        %1081 = vrot.lane.b32.xlu0 %v1080, 64
        %v1082 = vpop.permute.xlu0 %1081
        %v1084 = vsel %vm679, %v1082, 0
        %1086 = vmatprep.subr.bf16.mxu0 0
        %1087 = vmatpush1.bf16.msra.mxu0 0
        %1088 = vmatprep.subr.bf16.mxu0 0
        %1089 = vmatpush1.bf16.msra.mxu0 0
        %1090 = vmatprep.subr.bf16.mxu0 0
        %1091 = vmatpush1.bf16.msra.mxu0 0
        %1092 = vmatprep.subr.bf16.mxu0 0
        %1093 = vmatpush1.bf16.msra.mxu0 0
        %1094 = vmatprep.subr.bf16.mxu0 %v670
        %1095 = vmatpush1.bf16.msra.mxu0 %v669
        %1096 = vmatprep.subr.bf16.mxu0 %v668
        %1097 = vmatpush1.bf16.msra.mxu0 %v667
        %1098 = vmatprep.subr.bf16.mxu0 %v666
        %1099 = vmatpush1.bf16.msra.mxu0 %v665
        %1100 = vmatprep.subr.bf16.mxu0 %v664
        %1101 = vmatpush1.bf16.msra.mxu0 %v663
        %1102 = vmatprep.subr.bf16.mxu0 0
        %1103 = vmatpush2.bf16.msra.mxu0 0
        %1104 = vmatprep.subr.bf16.mxu0 0
        %1105 = vmatpush2.bf16.msra.mxu0 0
        %1106 = vmatprep.subr.bf16.mxu0 0
        %1107 = vmatpush2.bf16.msra.mxu0 0
        %1108 = vmatprep.subr.bf16.mxu0 0
        %1109 = vmatpush2.bf16.msra.mxu0 0
        %1110 = vmatprep.subr.bf16.mxu0 0
        %1111 = vmatpush2.bf16.msra.mxu0 0
        %1112 = vmatprep.subr.bf16.mxu0 0
        %1113 = vmatpush2.bf16.msra.mxu0 0
        %1114 = vmatprep.subr.bf16.mxu0 0
        %1115 = vmatpush2.bf16.msra.mxu0 0
        %1116 = vmatprep.subr.bf16.mxu0 0
        %1117 = vmatpush2.bf16.msra.mxu0 0
        %1118 = vmatprep.mubr.bf16.mxu0 0
        %1119 = vmatmul.mubr.bf16.gmra.mxu0 %v1084
        %v1120 = vpop.f32.mrf.mxu0
        %v1121 = vadd.f32 0.0, %v1120
        %v1122 = vpop.f32.mrf.mxu0
        %v1123 = vadd.f32 0.0, %v1122
        %v1124 = vpop.f32.mrf.mxu0
        %v1125 = vpop.f32.mrf.mxu0
        %1126 = vdwg.mxu0
        %v1129 = vrot.slane %v1121, 3
        %v1130 = vrot.slane %v1123, 3
        %v1133 = vadd.f32 %v627, %v1129
        %v1134 = vadd.f32 %v628, %v1130
        %v1135 = vxor.u32 %v1133, 2147483648
        %v1136 = vmul.f32 %v1135, 1.442695
        %v1137 = vpow.pop %v1136
        %v1138 = vadd.f32 %v1137, 1.0
        %v1139 = vrcp.pop %v1138
        %v1140 = vmul.f32 1.0, %v1139
        %v1141 = vtanh.pop %v1134
        %v1142 = vxor.u32 %v1134, 2147483648
        %v1143 = vmul.f32 %v1142, 1.442695
        %v1144 = vpow.pop %v1143
        %v1145 = vadd.f32 %v1144, 1.0
        %v1146 = vrcp.pop %v1145
        %v1147 = vmul.f32 1.0, %v1146
        %v1149 = vrot.slane %v1075, 7
        %v1151 = vmul.f32 %v1140, %v1149
        %v1152 = vmul.f32 %v1140, %v1141
        %1154 = vrot.lane.b32.xlu0 %v1152, 64
        %v1155 = vpop.permute.xlu0 %1154
        %v1157 = vadd.f32 %v1151, %v1155
        %v1158 = vtanh.pop %v1157
        %v1159 = vmul.f32 %v1147, %v1158
        %v1160 = vpack.c.bf16 %v1159, %v1159
        %v1162 = vshrl.u32 %v1160, 16
        %v1164 = vrot.slane %v1162, 2
        %1165 = vrot.lane.b32.xlu0 %v1164, 64
        %v1166 = vpop.permute.xlu0 %1165
        %v1168 = vsel %vm679, %v1166, 0
        %1170 = vmatprep.subr.bf16.mxu0 0
        %1171 = vmatpush1.bf16.msra.mxu0 0
        %1172 = vmatprep.subr.bf16.mxu0 0
        %1173 = vmatpush1.bf16.msra.mxu0 0
        %1174 = vmatprep.subr.bf16.mxu0 0
        %1175 = vmatpush1.bf16.msra.mxu0 0
        %1176 = vmatprep.subr.bf16.mxu0 0
        %1177 = vmatpush1.bf16.msra.mxu0 0
        %1178 = vmatprep.subr.bf16.mxu0 %v670
        %1179 = vmatpush1.bf16.msra.mxu0 %v669
        %1180 = vmatprep.subr.bf16.mxu0 %v668
        %1181 = vmatpush1.bf16.msra.mxu0 %v667
        %1182 = vmatprep.subr.bf16.mxu0 %v666
        %1183 = vmatpush1.bf16.msra.mxu0 %v665
        %1184 = vmatprep.subr.bf16.mxu0 %v664
        %1185 = vmatpush1.bf16.msra.mxu0 %v663
        %1186 = vmatprep.subr.bf16.mxu0 0
        %1187 = vmatpush2.bf16.msra.mxu0 0
        %1188 = vmatprep.subr.bf16.mxu0 0
        %1189 = vmatpush2.bf16.msra.mxu0 0
        %1190 = vmatprep.subr.bf16.mxu0 0
        %1191 = vmatpush2.bf16.msra.mxu0 0
        %1192 = vmatprep.subr.bf16.mxu0 0
        %1193 = vmatpush2.bf16.msra.mxu0 0
        %1194 = vmatprep.subr.bf16.mxu0 0
        %1195 = vmatpush2.bf16.msra.mxu0 0
        %1196 = vmatprep.subr.bf16.mxu0 0
        %1197 = vmatpush2.bf16.msra.mxu0 0
        %1198 = vmatprep.subr.bf16.mxu0 0
        %1199 = vmatpush2.bf16.msra.mxu0 0
        %1200 = vmatprep.subr.bf16.mxu0 0
        %1201 = vmatpush2.bf16.msra.mxu0 0
        %1202 = vmatprep.mubr.bf16.mxu0 0
        %1203 = vmatmul.mubr.bf16.gmra.mxu0 %v1168
        %v1204 = vpop.f32.mrf.mxu0
        %v1205 = vadd.f32 0.0, %v1204
        %v1206 = vpop.f32.mrf.mxu0
        %v1207 = vadd.f32 0.0, %v1206
        %v1208 = vpop.f32.mrf.mxu0
        %v1209 = vpop.f32.mrf.mxu0
        %1210 = vdwg.mxu0
        %v1213 = vrot.slane %v1205, 2
        %v1214 = vrot.slane %v1207, 2
        %v1217 = vadd.f32 %v627, %v1213
        %v1218 = vadd.f32 %v628, %v1214
        %v1219 = vxor.u32 %v1217, 2147483648
        %v1220 = vmul.f32 %v1219, 1.442695
        %v1221 = vpow.pop %v1220
        %v1222 = vadd.f32 %v1221, 1.0
        %v1223 = vrcp.pop %v1222
        %v1224 = vmul.f32 1.0, %v1223
        %v1225 = vtanh.pop %v1218
        %v1226 = vxor.u32 %v1218, 2147483648
        %v1227 = vmul.f32 %v1226, 1.442695
        %v1228 = vpow.pop %v1227
        %v1229 = vadd.f32 %v1228, 1.0
        %v1230 = vrcp.pop %v1229
        %v1231 = vmul.f32 1.0, %v1230
        %v1233 = vrot.slane %v1157, 7
        %v1235 = vmul.f32 %v1224, %v1233
        %v1236 = vmul.f32 %v1224, %v1225
        %1238 = vrot.lane.b32.xlu0 %v1236, 64
        %v1239 = vpop.permute.xlu0 %1238
        %v1241 = vadd.f32 %v1235, %v1239
        %v1242 = vtanh.pop %v1241
        %v1243 = vmul.f32 %v1231, %v1242
        %v1244 = vpack.c.bf16 %v1243, %v1243
        %v1246 = vrot.slane %v1244, 3
        %1247 = vrot.lane.b32.xlu0 %v1246, 64
        %v1248 = vpop.permute.xlu0 %1247
        %v1250 = vsel %vm679, %v1248, 0
        %1252 = vmatprep.subr.bf16.mxu0 0
        %1253 = vmatpush1.bf16.msra.mxu0 0
        %1254 = vmatprep.subr.bf16.mxu0 0
        %1255 = vmatpush1.bf16.msra.mxu0 0
        %1256 = vmatprep.subr.bf16.mxu0 0
        %1257 = vmatpush1.bf16.msra.mxu0 0
        %1258 = vmatprep.subr.bf16.mxu0 0
        %1259 = vmatpush1.bf16.msra.mxu0 0
        %1260 = vmatprep.subr.bf16.mxu0 %v670
        %1261 = vmatpush1.bf16.msra.mxu0 %v669
        %1262 = vmatprep.subr.bf16.mxu0 %v668
        %1263 = vmatpush1.bf16.msra.mxu0 %v667
        %1264 = vmatprep.subr.bf16.mxu0 %v666
        %1265 = vmatpush1.bf16.msra.mxu0 %v665
        %1266 = vmatprep.subr.bf16.mxu0 %v664
        %1267 = vmatpush1.bf16.msra.mxu0 %v663
        %1268 = vmatprep.subr.bf16.mxu0 0
        %1269 = vmatpush2.bf16.msra.mxu0 0
        %1270 = vmatprep.subr.bf16.mxu0 0
        %1271 = vmatpush2.bf16.msra.mxu0 0
        %1272 = vmatprep.subr.bf16.mxu0 0
        %1273 = vmatpush2.bf16.msra.mxu0 0
        %1274 = vmatprep.subr.bf16.mxu0 0
        %1275 = vmatpush2.bf16.msra.mxu0 0
        %1276 = vmatprep.subr.bf16.mxu0 0
        %1277 = vmatpush2.bf16.msra.mxu0 0
        %1278 = vmatprep.subr.bf16.mxu0 0
        %1279 = vmatpush2.bf16.msra.mxu0 0
        %1280 = vmatprep.subr.bf16.mxu0 0
        %1281 = vmatpush2.bf16.msra.mxu0 0
        %1282 = vmatprep.subr.bf16.mxu0 0
        %1283 = vmatpush2.bf16.msra.mxu0 0
        %1284 = vmatprep.mubr.bf16.mxu0 0
        %1285 = vmatmul.mubr.bf16.gmra.mxu0 %v1250
        %v1286 = vpop.f32.mrf.mxu0
        %v1287 = vadd.f32 0.0, %v1286
        %v1288 = vpop.f32.mrf.mxu0
        %v1289 = vadd.f32 0.0, %v1288
        %v1290 = vpop.f32.mrf.mxu0
        %v1291 = vpop.f32.mrf.mxu0
        %1292 = vdwg.mxu0
        %v1295 = vrot.slane %v1287, 1
        %v1296 = vrot.slane %v1289, 1
        %v1299 = vadd.f32 %v627, %v1295
        %v1300 = vadd.f32 %v628, %v1296
        %v1301 = vxor.u32 %v1299, 2147483648
        %v1302 = vmul.f32 %v1301, 1.442695
        %v1303 = vpow.pop %v1302
        %v1304 = vadd.f32 %v1303, 1.0
        %v1305 = vrcp.pop %v1304
        %v1306 = vmul.f32 1.0, %v1305
        %v1307 = vtanh.pop %v1300
        %v1308 = vxor.u32 %v1300, 2147483648
        %v1309 = vmul.f32 %v1308, 1.442695
        %v1310 = vpow.pop %v1309
        %v1311 = vadd.f32 %v1310, 1.0
        %v1312 = vrcp.pop %v1311
        %v1313 = vmul.f32 1.0, %v1312
        %v1315 = vrot.slane %v1241, 7
        %v1317 = vmul.f32 %v1306, %v1315
        %v1318 = vmul.f32 %v1306, %v1307
        %1320 = vrot.lane.b32.xlu0 %v1318, 64
        %v1321 = vpop.permute.xlu0 %1320
        %v1323 = vadd.f32 %v1317, %v1321
        %v1324 = vtanh.pop %v1323
        %v1325 = vmul.f32 %v1313, %v1324
        %v1326 = vpack.c.bf16 %v1325, %v1325
        %v1328 = vshrl.u32 %v1326, 16
        %v1330 = vrot.slane %v1328, 3
        %1331 = vrot.lane.b32.xlu0 %v1330, 64
        %v1332 = vpop.permute.xlu0 %1331
        %v1334 = vsel %vm679, %v1332, 0
        %1336 = vmatprep.subr.bf16.mxu0 0
        %1337 = vmatpush1.bf16.msra.mxu0 0
        %1338 = vmatprep.subr.bf16.mxu0 0
        %1339 = vmatpush1.bf16.msra.mxu0 0
        %1340 = vmatprep.subr.bf16.mxu0 0
        %1341 = vmatpush1.bf16.msra.mxu0 0
        %1342 = vmatprep.subr.bf16.mxu0 0
        %1343 = vmatpush1.bf16.msra.mxu0 0
        %1344 = vmatprep.subr.bf16.mxu0 %v670
        %1345 = vmatpush1.bf16.msra.mxu0 %v669
        %1346 = vmatprep.subr.bf16.mxu0 %v668
        %1347 = vmatpush1.bf16.msra.mxu0 %v667
        %1348 = vmatprep.subr.bf16.mxu0 %v666
        %1349 = vmatpush1.bf16.msra.mxu0 %v665
        %1350 = vmatprep.subr.bf16.mxu0 %v664
        %1351 = vmatpush1.bf16.msra.mxu0 %v663
        %1352 = vmatprep.subr.bf16.mxu0 0
        %1353 = vmatpush2.bf16.msra.mxu0 0
        %1354 = vmatprep.subr.bf16.mxu0 0
        %1355 = vmatpush2.bf16.msra.mxu0 0
        %1356 = vmatprep.subr.bf16.mxu0 0
        %1357 = vmatpush2.bf16.msra.mxu0 0
        %1358 = vmatprep.subr.bf16.mxu0 0
        %1359 = vmatpush2.bf16.msra.mxu0 0
        %1360 = vmatprep.subr.bf16.mxu0 0
        %1361 = vmatpush2.bf16.msra.mxu0 0
        %1362 = vmatprep.subr.bf16.mxu0 0
        %1363 = vmatpush2.bf16.msra.mxu0 0
        %1364 = vmatprep.subr.bf16.mxu0 0
        %1365 = vmatpush2.bf16.msra.mxu0 0
        %1366 = vmatprep.subr.bf16.mxu0 0
        %1367 = vmatpush2.bf16.msra.mxu0 0
        %1368 = vmatprep.mubr.bf16.mxu0 0
        %1369 = vmatmul.mubr.bf16.gmra.mxu0 %v1334
        %v1370 = vpop.f32.mrf.mxu0
        %v1371 = vadd.f32 0.0, %v1370
        %v1372 = vpop.f32.mrf.mxu0
        %v1373 = vadd.f32 0.0, %v1372
        %v1374 = vpop.f32.mrf.mxu0
        %v1375 = vpop.f32.mrf.mxu0
        %1376 = vdwg.mxu0
        %v1377 = vadd.f32 %v629, %v1371
        %v1378 = vadd.f32 %v630, %v1373
        %v1379 = vxor.u32 %v1377, 2147483648
        %v1380 = vmul.f32 %v1379, 1.442695
        %v1381 = vpow.pop %v1380
        %v1382 = vadd.f32 %v1381, 1.0
        %v1383 = vrcp.pop %v1382
        %v1384 = vmul.f32 1.0, %v1383
        %v1385 = vtanh.pop %v1378
        %v1386 = vxor.u32 %v1378, 2147483648
        %v1387 = vmul.f32 %v1386, 1.442695
        %v1388 = vpow.pop %v1387
        %v1389 = vadd.f32 %v1388, 1.0
        %v1390 = vrcp.pop %v1389
        %v1391 = vmul.f32 1.0, %v1390
        %v1393 = vrot.slane %v1323, 7
        %v1395 = vmul.f32 %v1384, %v1393
        %v1396 = vmul.f32 %v1384, %v1385
        %1398 = vrot.lane.b32.xlu0 %v1396, 64
        %v1399 = vpop.permute.xlu0 %1398
        %v1401 = vadd.f32 %v1395, %v1399
        %v1402 = vtanh.pop %v1401
        %v1403 = vmul.f32 %v1391, %v1402
        %v1404 = vpack.c.bf16 %v1403, %v1403
        %1406 = vrot.lane.b32.xlu0 %v1404, 64
        %v1407 = vpop.permute.xlu0 %1406
        %v1409 = vsel %vm679, %v1407, 0
        %1411 = vmatprep.subr.bf16.mxu0 0
        %1412 = vmatpush1.bf16.msra.mxu0 0
        %1413 = vmatprep.subr.bf16.mxu0 0
        %1414 = vmatpush1.bf16.msra.mxu0 0
        %1415 = vmatprep.subr.bf16.mxu0 0
        %1416 = vmatpush1.bf16.msra.mxu0 0
        %1417 = vmatprep.subr.bf16.mxu0 0
        %1418 = vmatpush1.bf16.msra.mxu0 0
        %1419 = vmatprep.subr.bf16.mxu0 %v670
        %1420 = vmatpush1.bf16.msra.mxu0 %v669
        %1421 = vmatprep.subr.bf16.mxu0 %v668
        %1422 = vmatpush1.bf16.msra.mxu0 %v667
        %1423 = vmatprep.subr.bf16.mxu0 %v666
        %1424 = vmatpush1.bf16.msra.mxu0 %v665
        %1425 = vmatprep.subr.bf16.mxu0 %v664
        %1426 = vmatpush1.bf16.msra.mxu0 %v663
        %1427 = vmatprep.subr.bf16.mxu0 0
        %1428 = vmatpush2.bf16.msra.mxu0 0
        %1429 = vmatprep.subr.bf16.mxu0 0
        %1430 = vmatpush2.bf16.msra.mxu0 0
        %1431 = vmatprep.subr.bf16.mxu0 0
        %1432 = vmatpush2.bf16.msra.mxu0 0
        %1433 = vmatprep.subr.bf16.mxu0 0
        %1434 = vmatpush2.bf16.msra.mxu0 0
        %1435 = vmatprep.subr.bf16.mxu0 0
        %1436 = vmatpush2.bf16.msra.mxu0 0
        %1437 = vmatprep.subr.bf16.mxu0 0
        %1438 = vmatpush2.bf16.msra.mxu0 0
        %1439 = vmatprep.subr.bf16.mxu0 0
        %1440 = vmatpush2.bf16.msra.mxu0 0
        %1441 = vmatprep.subr.bf16.mxu0 0
        %1442 = vmatpush2.bf16.msra.mxu0 0
        %1443 = vmatprep.mubr.bf16.mxu0 0
        %1444 = vmatmul.mubr.bf16.gmra.mxu0 %v1409
        %v1445 = vpop.f32.mrf.mxu0
        %v1446 = vadd.f32 0.0, %v1445
        %v1447 = vpop.f32.mrf.mxu0
        %v1448 = vadd.f32 0.0, %v1447
        %v1449 = vpop.f32.mrf.mxu0
        %v1450 = vpop.f32.mrf.mxu0
        %1451 = vdwg.mxu0
        %v1454 = vrot.slane %v1446, 7
        %v1455 = vrot.slane %v1448, 7
        %v1458 = vadd.f32 %v629, %v1454
        %v1459 = vadd.f32 %v630, %v1455
        %v1460 = vxor.u32 %v1458, 2147483648
        %v1461 = vmul.f32 %v1460, 1.442695
        %v1462 = vpow.pop %v1461
        %v1463 = vadd.f32 %v1462, 1.0
        %v1464 = vrcp.pop %v1463
        %v1465 = vmul.f32 1.0, %v1464
        %v1466 = vtanh.pop %v1459
        %v1467 = vxor.u32 %v1459, 2147483648
        %v1468 = vmul.f32 %v1467, 1.442695
        %v1469 = vpow.pop %v1468
        %v1470 = vadd.f32 %v1469, 1.0
        %v1471 = vrcp.pop %v1470
        %v1472 = vmul.f32 1.0, %v1471
        %v1474 = vrot.slane %v1401, 7
        %v1476 = vmul.f32 %v1465, %v1474
        %v1477 = vmul.f32 %v1465, %v1466
        %1479 = vrot.lane.b32.xlu0 %v1477, 64
        %v1480 = vpop.permute.xlu0 %1479
        %v1482 = vadd.f32 %v1476, %v1480
        %v1483 = vtanh.pop %v1482
        %v1484 = vmul.f32 %v1472, %v1483
        %v1485 = vpack.c.bf16 %v1484, %v1484
        %v1487 = vshrl.u32 %v1485, 16
        %1489 = vrot.lane.b32.xlu0 %v1487, 64
        %v1490 = vpop.permute.xlu0 %1489
        %v1492 = vsel %vm679, %v1490, 0
        %1494 = vmatprep.subr.bf16.mxu0 0
        %1495 = vmatpush1.bf16.msra.mxu0 0
        %1496 = vmatprep.subr.bf16.mxu0 0
        %1497 = vmatpush1.bf16.msra.mxu0 0
        %1498 = vmatprep.subr.bf16.mxu0 0
        %1499 = vmatpush1.bf16.msra.mxu0 0
        %1500 = vmatprep.subr.bf16.mxu0 0
        %1501 = vmatpush1.bf16.msra.mxu0 0
        %1502 = vmatprep.subr.bf16.mxu0 %v670
        %1503 = vmatpush1.bf16.msra.mxu0 %v669
        %1504 = vmatprep.subr.bf16.mxu0 %v668
        %1505 = vmatpush1.bf16.msra.mxu0 %v667
        %1506 = vmatprep.subr.bf16.mxu0 %v666
        %1507 = vmatpush1.bf16.msra.mxu0 %v665
        %1508 = vmatprep.subr.bf16.mxu0 %v664
        %1509 = vmatpush1.bf16.msra.mxu0 %v663
        %1510 = vmatprep.subr.bf16.mxu0 0
        %1511 = vmatpush2.bf16.msra.mxu0 0
        %1512 = vmatprep.subr.bf16.mxu0 0
        %1513 = vmatpush2.bf16.msra.mxu0 0
        %1514 = vmatprep.subr.bf16.mxu0 0
        %1515 = vmatpush2.bf16.msra.mxu0 0
        %1516 = vmatprep.subr.bf16.mxu0 0
        %1517 = vmatpush2.bf16.msra.mxu0 0
        %1518 = vmatprep.subr.bf16.mxu0 0
        %1519 = vmatpush2.bf16.msra.mxu0 0
        %1520 = vmatprep.subr.bf16.mxu0 0
        %1521 = vmatpush2.bf16.msra.mxu0 0
        %1522 = vmatprep.subr.bf16.mxu0 0
        %1523 = vmatpush2.bf16.msra.mxu0 0
        %1524 = vmatprep.subr.bf16.mxu0 0
        %1525 = vmatpush2.bf16.msra.mxu0 0
        %1526 = vmatprep.mubr.bf16.mxu0 0
        %1527 = vmatmul.mubr.bf16.gmra.mxu0 %v1492
        %v1528 = vpop.f32.mrf.mxu0
        %v1529 = vadd.f32 0.0, %v1528
        %v1530 = vpop.f32.mrf.mxu0
        %v1531 = vadd.f32 0.0, %v1530
        %v1532 = vpop.f32.mrf.mxu0
        %v1533 = vpop.f32.mrf.mxu0
        %1534 = vdwg.mxu0
        %v1537 = vrot.slane %v1529, 6
        %v1538 = vrot.slane %v1531, 6
        %v1541 = vadd.f32 %v629, %v1537
        %v1542 = vadd.f32 %v630, %v1538
        %v1543 = vxor.u32 %v1541, 2147483648
        %v1544 = vmul.f32 %v1543, 1.442695
        %v1545 = vpow.pop %v1544
        %v1546 = vadd.f32 %v1545, 1.0
        %v1547 = vrcp.pop %v1546
        %v1548 = vmul.f32 1.0, %v1547
        %v1549 = vtanh.pop %v1542
        %v1550 = vxor.u32 %v1542, 2147483648
        %v1551 = vmul.f32 %v1550, 1.442695
        %v1552 = vpow.pop %v1551
        %v1553 = vadd.f32 %v1552, 1.0
        %v1554 = vrcp.pop %v1553
        %v1555 = vmul.f32 1.0, %v1554
        %v1557 = vrot.slane %v1482, 7
        %v1559 = vmul.f32 %v1548, %v1557
        %v1560 = vmul.f32 %v1548, %v1549
        %1562 = vrot.lane.b32.xlu0 %v1560, 64
        %v1563 = vpop.permute.xlu0 %1562
        %v1565 = vadd.f32 %v1559, %v1563
        %v1566 = vtanh.pop %v1565
        %v1567 = vmul.f32 %v1555, %v1566
        %v1568 = vpack.c.bf16 %v1567, %v1567
        %v1570 = vrot.slane %v1568, 1
        %1571 = vrot.lane.b32.xlu0 %v1570, 64
        %v1572 = vpop.permute.xlu0 %1571
        %v1574 = vsel %vm679, %v1572, 0
        %1576 = vmatprep.subr.bf16.mxu0 0
        %1577 = vmatpush1.bf16.msra.mxu0 0
        %1578 = vmatprep.subr.bf16.mxu0 0
        %1579 = vmatpush1.bf16.msra.mxu0 0
        %1580 = vmatprep.subr.bf16.mxu0 0
        %1581 = vmatpush1.bf16.msra.mxu0 0
        %1582 = vmatprep.subr.bf16.mxu0 0
        %1583 = vmatpush1.bf16.msra.mxu0 0
        %1584 = vmatprep.subr.bf16.mxu0 %v670
        %1585 = vmatpush1.bf16.msra.mxu0 %v669
        %1586 = vmatprep.subr.bf16.mxu0 %v668
        %1587 = vmatpush1.bf16.msra.mxu0 %v667
        %1588 = vmatprep.subr.bf16.mxu0 %v666
        %1589 = vmatpush1.bf16.msra.mxu0 %v665
        %1590 = vmatprep.subr.bf16.mxu0 %v664
        %1591 = vmatpush1.bf16.msra.mxu0 %v663
        %1592 = vmatprep.subr.bf16.mxu0 0
        %1593 = vmatpush2.bf16.msra.mxu0 0
        %1594 = vmatprep.subr.bf16.mxu0 0
        %1595 = vmatpush2.bf16.msra.mxu0 0
        %1596 = vmatprep.subr.bf16.mxu0 0
        %1597 = vmatpush2.bf16.msra.mxu0 0
        %1598 = vmatprep.subr.bf16.mxu0 0
        %1599 = vmatpush2.bf16.msra.mxu0 0
        %1600 = vmatprep.subr.bf16.mxu0 0
        %1601 = vmatpush2.bf16.msra.mxu0 0
        %1602 = vmatprep.subr.bf16.mxu0 0
        %1603 = vmatpush2.bf16.msra.mxu0 0
        %1604 = vmatprep.subr.bf16.mxu0 0
        %1605 = vmatpush2.bf16.msra.mxu0 0
        %1606 = vmatprep.subr.bf16.mxu0 0
        %1607 = vmatpush2.bf16.msra.mxu0 0
        %1608 = vmatprep.mubr.bf16.mxu0 0
        %1609 = vmatmul.mubr.bf16.gmra.mxu0 %v1574
        %v1610 = vpop.f32.mrf.mxu0
        %v1611 = vadd.f32 0.0, %v1610
        %v1612 = vpop.f32.mrf.mxu0
        %v1613 = vadd.f32 0.0, %v1612
        %v1614 = vpop.f32.mrf.mxu0
        %v1615 = vpop.f32.mrf.mxu0
        %1616 = vdwg.mxu0
        %v1619 = vrot.slane %v1611, 5
        %v1620 = vrot.slane %v1613, 5
        %v1623 = vadd.f32 %v629, %v1619
        %v1624 = vadd.f32 %v630, %v1620
        %v1625 = vxor.u32 %v1623, 2147483648
        %v1626 = vmul.f32 %v1625, 1.442695
        %v1627 = vpow.pop %v1626
        %v1628 = vadd.f32 %v1627, 1.0
        %v1629 = vrcp.pop %v1628
        %v1630 = vmul.f32 1.0, %v1629
        %v1631 = vtanh.pop %v1624
        %v1632 = vxor.u32 %v1624, 2147483648
        %v1633 = vmul.f32 %v1632, 1.442695
        %v1634 = vpow.pop %v1633
        %v1635 = vadd.f32 %v1634, 1.0
        %v1636 = vrcp.pop %v1635
        %v1637 = vmul.f32 1.0, %v1636
        %v1639 = vrot.slane %v1565, 7
        %v1641 = vmul.f32 %v1630, %v1639
        %v1642 = vmul.f32 %v1630, %v1631
        %1644 = vrot.lane.b32.xlu0 %v1642, 64
        %v1645 = vpop.permute.xlu0 %1644
        %v1647 = vadd.f32 %v1641, %v1645
        %v1648 = vtanh.pop %v1647
        %v1649 = vmul.f32 %v1637, %v1648
        %v1650 = vpack.c.bf16 %v1649, %v1649
        %v1652 = vshrl.u32 %v1650, 16
        %v1654 = vrot.slane %v1652, 1
        %1655 = vrot.lane.b32.xlu0 %v1654, 64
        %v1656 = vpop.permute.xlu0 %1655
        %v1658 = vsel %vm679, %v1656, 0
        %1660 = vmatprep.subr.bf16.mxu0 0
        %1661 = vmatpush1.bf16.msra.mxu0 0
        %1662 = vmatprep.subr.bf16.mxu0 0
        %1663 = vmatpush1.bf16.msra.mxu0 0
        %1664 = vmatprep.subr.bf16.mxu0 0
        %1665 = vmatpush1.bf16.msra.mxu0 0
        %1666 = vmatprep.subr.bf16.mxu0 0
        %1667 = vmatpush1.bf16.msra.mxu0 0
        %1668 = vmatprep.subr.bf16.mxu0 %v670
        %1669 = vmatpush1.bf16.msra.mxu0 %v669
        %1670 = vmatprep.subr.bf16.mxu0 %v668
        %1671 = vmatpush1.bf16.msra.mxu0 %v667
        %1672 = vmatprep.subr.bf16.mxu0 %v666
        %1673 = vmatpush1.bf16.msra.mxu0 %v665
        %1674 = vmatprep.subr.bf16.mxu0 %v664
        %1675 = vmatpush1.bf16.msra.mxu0 %v663
        %1676 = vmatprep.subr.bf16.mxu0 0
        %1677 = vmatpush2.bf16.msra.mxu0 0
        %1678 = vmatprep.subr.bf16.mxu0 0
        %1679 = vmatpush2.bf16.msra.mxu0 0
        %1680 = vmatprep.subr.bf16.mxu0 0
        %1681 = vmatpush2.bf16.msra.mxu0 0
        %1682 = vmatprep.subr.bf16.mxu0 0
        %1683 = vmatpush2.bf16.msra.mxu0 0
        %1684 = vmatprep.subr.bf16.mxu0 0
        %1685 = vmatpush2.bf16.msra.mxu0 0
        %1686 = vmatprep.subr.bf16.mxu0 0
        %1687 = vmatpush2.bf16.msra.mxu0 0
        %1688 = vmatprep.subr.bf16.mxu0 0
        %1689 = vmatpush2.bf16.msra.mxu0 0
        %1690 = vmatprep.subr.bf16.mxu0 0
        %1691 = vmatpush2.bf16.msra.mxu0 0
        %1692 = vmatprep.mubr.bf16.mxu0 0
        %1693 = vmatmul.mubr.bf16.gmra.mxu0 %v1658
        %v1694 = vpop.f32.mrf.mxu0
        %v1695 = vadd.f32 0.0, %v1694
        %v1696 = vpop.f32.mrf.mxu0
        %v1697 = vadd.f32 0.0, %v1696
        %v1698 = vpop.f32.mrf.mxu0
        %v1699 = vpop.f32.mrf.mxu0
        %1700 = vdwg.mxu0
        %v1703 = vrot.slane %v1695, 4
        %v1704 = vrot.slane %v1697, 4
        %v1707 = vadd.f32 %v629, %v1703
        %v1708 = vadd.f32 %v630, %v1704
        %v1709 = vxor.u32 %v1707, 2147483648
        %v1710 = vmul.f32 %v1709, 1.442695
        %v1711 = vpow.pop %v1710
        %v1712 = vadd.f32 %v1711, 1.0
        %v1713 = vrcp.pop %v1712
        %v1714 = vmul.f32 1.0, %v1713
        %v1715 = vtanh.pop %v1708
        %v1716 = vxor.u32 %v1708, 2147483648
        %v1717 = vmul.f32 %v1716, 1.442695
        %v1718 = vpow.pop %v1717
        %v1719 = vadd.f32 %v1718, 1.0
        %v1720 = vrcp.pop %v1719
        %v1721 = vmul.f32 1.0, %v1720
        %v1723 = vrot.slane %v1647, 7
        %v1725 = vmul.f32 %v1714, %v1723
        %v1726 = vmul.f32 %v1714, %v1715
        %1728 = vrot.lane.b32.xlu0 %v1726, 64
        %v1729 = vpop.permute.xlu0 %1728
        %v1731 = vadd.f32 %v1725, %v1729
        %v1732 = vtanh.pop %v1731
        %v1733 = vmul.f32 %v1721, %v1732
        %v1734 = vpack.c.bf16 %v1733, %v1733
        %v1736 = vrot.slane %v1734, 2
        %1737 = vrot.lane.b32.xlu0 %v1736, 64
        %v1738 = vpop.permute.xlu0 %1737
        %v1740 = vsel %vm679, %v1738, 0
        %1742 = vmatprep.subr.bf16.mxu0 0
        %1743 = vmatpush1.bf16.msra.mxu0 0
        %1744 = vmatprep.subr.bf16.mxu0 0
        %1745 = vmatpush1.bf16.msra.mxu0 0
        %1746 = vmatprep.subr.bf16.mxu0 0
        %1747 = vmatpush1.bf16.msra.mxu0 0
        %1748 = vmatprep.subr.bf16.mxu0 0
        %1749 = vmatpush1.bf16.msra.mxu0 0
        %1750 = vmatprep.subr.bf16.mxu0 %v670
        %1751 = vmatpush1.bf16.msra.mxu0 %v669
        %1752 = vmatprep.subr.bf16.mxu0 %v668
        %1753 = vmatpush1.bf16.msra.mxu0 %v667
        %1754 = vmatprep.subr.bf16.mxu0 %v666
        %1755 = vmatpush1.bf16.msra.mxu0 %v665
        %1756 = vmatprep.subr.bf16.mxu0 %v664
        %1757 = vmatpush1.bf16.msra.mxu0 %v663
        %1758 = vmatprep.subr.bf16.mxu0 0
        %1759 = vmatpush2.bf16.msra.mxu0 0
        %1760 = vmatprep.subr.bf16.mxu0 0
        %1761 = vmatpush2.bf16.msra.mxu0 0
        %1762 = vmatprep.subr.bf16.mxu0 0
        %1763 = vmatpush2.bf16.msra.mxu0 0
        %1764 = vmatprep.subr.bf16.mxu0 0
        %1765 = vmatpush2.bf16.msra.mxu0 0
        %1766 = vmatprep.subr.bf16.mxu0 0
        %1767 = vmatpush2.bf16.msra.mxu0 0
        %1768 = vmatprep.subr.bf16.mxu0 0
        %1769 = vmatpush2.bf16.msra.mxu0 0
        %1770 = vmatprep.subr.bf16.mxu0 0
        %1771 = vmatpush2.bf16.msra.mxu0 0
        %1772 = vmatprep.subr.bf16.mxu0 0
        %1773 = vmatpush2.bf16.msra.mxu0 0
        %1774 = vmatprep.mubr.bf16.mxu0 0
        %1775 = vmatmul.mubr.bf16.gmra.mxu0 %v1740
        %v1776 = vpop.f32.mrf.mxu0
        %v1777 = vadd.f32 0.0, %v1776
        %v1778 = vpop.f32.mrf.mxu0
        %v1779 = vadd.f32 0.0, %v1778
        %v1780 = vpop.f32.mrf.mxu0
        %v1781 = vpop.f32.mrf.mxu0
        %1782 = vdwg.mxu0
        %v1785 = vrot.slane %v1777, 3
        %v1786 = vrot.slane %v1779, 3
        %v1789 = vadd.f32 %v629, %v1785
        %v1790 = vadd.f32 %v630, %v1786
        %v1791 = vxor.u32 %v1789, 2147483648
        %v1792 = vmul.f32 %v1791, 1.442695
        %v1793 = vpow.pop %v1792
        %v1794 = vadd.f32 %v1793, 1.0
        %v1795 = vrcp.pop %v1794
        %v1796 = vmul.f32 1.0, %v1795
        %v1797 = vtanh.pop %v1790
        %v1798 = vxor.u32 %v1790, 2147483648
        %v1799 = vmul.f32 %v1798, 1.442695
        %v1800 = vpow.pop %v1799
        %v1801 = vadd.f32 %v1800, 1.0
        %v1802 = vrcp.pop %v1801
        %v1803 = vmul.f32 1.0, %v1802
        %v1805 = vrot.slane %v1731, 7
        %v1807 = vmul.f32 %v1796, %v1805
        %v1808 = vmul.f32 %v1796, %v1797
        %1810 = vrot.lane.b32.xlu0 %v1808, 64
        %v1811 = vpop.permute.xlu0 %1810
        %v1813 = vadd.f32 %v1807, %v1811
        %v1814 = vtanh.pop %v1813
        %v1815 = vmul.f32 %v1803, %v1814
        %v1816 = vpack.c.bf16 %v1815, %v1815
        %v1818 = vshrl.u32 %v1816, 16
        %v1820 = vrot.slane %v1818, 2
        %1821 = vrot.lane.b32.xlu0 %v1820, 64
        %v1822 = vpop.permute.xlu0 %1821
        %v1824 = vsel %vm679, %v1822, 0
        %1826 = vmatprep.subr.bf16.mxu0 0
        %1827 = vmatpush1.bf16.msra.mxu0 0
        %1828 = vmatprep.subr.bf16.mxu0 0
        %1829 = vmatpush1.bf16.msra.mxu0 0
        %1830 = vmatprep.subr.bf16.mxu0 0
        %1831 = vmatpush1.bf16.msra.mxu0 0
        %1832 = vmatprep.subr.bf16.mxu0 0
        %1833 = vmatpush1.bf16.msra.mxu0 0
        %1834 = vmatprep.subr.bf16.mxu0 %v670
        %1835 = vmatpush1.bf16.msra.mxu0 %v669
        %1836 = vmatprep.subr.bf16.mxu0 %v668
        %1837 = vmatpush1.bf16.msra.mxu0 %v667
        %1838 = vmatprep.subr.bf16.mxu0 %v666
        %1839 = vmatpush1.bf16.msra.mxu0 %v665
        %1840 = vmatprep.subr.bf16.mxu0 %v664
        %1841 = vmatpush1.bf16.msra.mxu0 %v663
        %1842 = vmatprep.subr.bf16.mxu0 0
        %1843 = vmatpush2.bf16.msra.mxu0 0
        %1844 = vmatprep.subr.bf16.mxu0 0
        %1845 = vmatpush2.bf16.msra.mxu0 0
        %1846 = vmatprep.subr.bf16.mxu0 0
        %1847 = vmatpush2.bf16.msra.mxu0 0
        %1848 = vmatprep.subr.bf16.mxu0 0
        %1849 = vmatpush2.bf16.msra.mxu0 0
        %1850 = vmatprep.subr.bf16.mxu0 0
        %1851 = vmatpush2.bf16.msra.mxu0 0
        %1852 = vmatprep.subr.bf16.mxu0 0
        %1853 = vmatpush2.bf16.msra.mxu0 0
        %1854 = vmatprep.subr.bf16.mxu0 0
        %1855 = vmatpush2.bf16.msra.mxu0 0
        %1856 = vmatprep.subr.bf16.mxu0 0
        %1857 = vmatpush2.bf16.msra.mxu0 0
        %1858 = vmatprep.mubr.bf16.mxu0 0
        %1859 = vmatmul.mubr.bf16.gmra.mxu0 %v1824
        %v1860 = vpop.f32.mrf.mxu0
        %v1861 = vadd.f32 0.0, %v1860
        %v1862 = vpop.f32.mrf.mxu0
        %v1863 = vadd.f32 0.0, %v1862
        %v1864 = vpop.f32.mrf.mxu0
        %v1865 = vpop.f32.mrf.mxu0
        %1866 = vdwg.mxu0
        %v1869 = vrot.slane %v1861, 2
        %v1870 = vrot.slane %v1863, 2
        %v1873 = vadd.f32 %v629, %v1869
        %v1874 = vadd.f32 %v630, %v1870
        %v1875 = vxor.u32 %v1873, 2147483648
        %v1876 = vmul.f32 %v1875, 1.442695
        %v1877 = vpow.pop %v1876
        %v1878 = vadd.f32 %v1877, 1.0
        %v1879 = vrcp.pop %v1878
        %v1880 = vmul.f32 1.0, %v1879
        %v1881 = vtanh.pop %v1874
        %v1882 = vxor.u32 %v1874, 2147483648
        %v1883 = vmul.f32 %v1882, 1.442695
        %v1884 = vpow.pop %v1883
        %v1885 = vadd.f32 %v1884, 1.0
        %v1886 = vrcp.pop %v1885
        %v1887 = vmul.f32 1.0, %v1886
        %v1889 = vrot.slane %v1813, 7
        %v1891 = vmul.f32 %v1880, %v1889
        %v1892 = vmul.f32 %v1880, %v1881
        %1894 = vrot.lane.b32.xlu0 %v1892, 64
        %v1895 = vpop.permute.xlu0 %1894
        %v1897 = vadd.f32 %v1891, %v1895
        %v1898 = vtanh.pop %v1897
        %v1899 = vmul.f32 %v1887, %v1898
        %v1900 = vpack.c.bf16 %v1899, %v1899
        %v1902 = vrot.slane %v1900, 3
        %1903 = vrot.lane.b32.xlu0 %v1902, 64
        %v1904 = vpop.permute.xlu0 %1903
        %v1906 = vsel %vm679, %v1904, 0
        %1908 = vmatprep.subr.bf16.mxu0 0
        %1909 = vmatpush1.bf16.msra.mxu0 0
        %1910 = vmatprep.subr.bf16.mxu0 0
        %1911 = vmatpush1.bf16.msra.mxu0 0
        %1912 = vmatprep.subr.bf16.mxu0 0
        %1913 = vmatpush1.bf16.msra.mxu0 0
        %1914 = vmatprep.subr.bf16.mxu0 0
        %1915 = vmatpush1.bf16.msra.mxu0 0
        %1916 = vmatprep.subr.bf16.mxu0 %v670
        %1917 = vmatpush1.bf16.msra.mxu0 %v669
        %1918 = vmatprep.subr.bf16.mxu0 %v668
        %1919 = vmatpush1.bf16.msra.mxu0 %v667
        %1920 = vmatprep.subr.bf16.mxu0 %v666
        %1921 = vmatpush1.bf16.msra.mxu0 %v665
        %1922 = vmatprep.subr.bf16.mxu0 %v664
        %1923 = vmatpush1.bf16.msra.mxu0 %v663
        %1924 = vmatprep.subr.bf16.mxu0 0
        %1925 = vmatpush2.bf16.msra.mxu0 0
        %1926 = vmatprep.subr.bf16.mxu0 0
        %1927 = vmatpush2.bf16.msra.mxu0 0
        %1928 = vmatprep.subr.bf16.mxu0 0
        %1929 = vmatpush2.bf16.msra.mxu0 0
        %1930 = vmatprep.subr.bf16.mxu0 0
        %1931 = vmatpush2.bf16.msra.mxu0 0
        %1932 = vmatprep.subr.bf16.mxu0 0
        %1933 = vmatpush2.bf16.msra.mxu0 0
        %1934 = vmatprep.subr.bf16.mxu0 0
        %1935 = vmatpush2.bf16.msra.mxu0 0
        %1936 = vmatprep.subr.bf16.mxu0 0
        %1937 = vmatpush2.bf16.msra.mxu0 0
        %1938 = vmatprep.subr.bf16.mxu0 0
        %1939 = vmatpush2.bf16.msra.mxu0 0
        %1940 = vmatprep.mubr.bf16.mxu0 0
        %1941 = vmatmul.mubr.bf16.gmra.mxu0 %v1906
        %v1942 = vpop.f32.mrf.mxu0
        %v1943 = vadd.f32 0.0, %v1942
        %v1944 = vpop.f32.mrf.mxu0
        %v1945 = vadd.f32 0.0, %v1944
        %v1946 = vpop.f32.mrf.mxu0
        %v1947 = vpop.f32.mrf.mxu0
        %1948 = vdwg.mxu0
        %v1951 = vrot.slane %v1943, 1
        %v1952 = vrot.slane %v1945, 1
        %v1955 = vadd.f32 %v629, %v1951
        %v1956 = vadd.f32 %v630, %v1952
        %v1957 = vxor.u32 %v1955, 2147483648
        %v1958 = vmul.f32 %v1957, 1.442695
        %v1959 = vpow.pop %v1958
        %v1960 = vadd.f32 %v1959, 1.0
        %v1961 = vrcp.pop %v1960
        %v1962 = vmul.f32 1.0, %v1961
        %v1963 = vtanh.pop %v1956
        %v1964 = vxor.u32 %v1956, 2147483648
        %v1965 = vmul.f32 %v1964, 1.442695
        %v1966 = vpow.pop %v1965
        %v1967 = vadd.f32 %v1966, 1.0
        %v1968 = vrcp.pop %v1967
        %v1969 = vmul.f32 1.0, %v1968
        %v1971 = vrot.slane %v1897, 7
        %v1973 = vmul.f32 %v1962, %v1971
        %v1974 = vmul.f32 %v1962, %v1963
        %1976 = vrot.lane.b32.xlu0 %v1974, 64
        %v1977 = vpop.permute.xlu0 %1976
        %v1979 = vadd.f32 %v1973, %v1977
        %v1980 = vtanh.pop %v1979
        %v1981 = vmul.f32 %v1969, %v1980
        %vm1982 = vcmask 1040384
        %v1983 = vsel %vm1982, %v747, %v828
        %v1984 = vsel %vm565, %v1983, %v911
        %vm1985 = vcmask 1042432
        %v1986 = vsel %vm1985, %v1984, %v993
        %vm1987 = vcmask 1043456
        %v1988 = vsel %vm1987, %v1986, %v1077
        %vm1989 = vcmask 1044480
        %v1990 = vsel %vm1989, %v1988, %v1159
        %vm1991 = vcmask 1045504
        %v1992 = vsel %vm1991, %v1990, %v1243
        %v1993 = vsel %vm499, %v1992, %v1325
        %v1994 = vsel %vm1982, %v1403, %v1484
        %v1995 = vsel %vm565, %v1994, %v1567
        %v1996 = vsel %vm1985, %v1995, %v1649
        %v1997 = vsel %vm1987, %v1996, %v1733
        %v1998 = vsel %vm1989, %v1997, %v1815
        %v1999 = vsel %vm1991, %v1998, %v1899
        %v2000 = vsel %vm499, %v1999, %v1981
        %v2001 = vld [vmem:[%s450] sm:$0xff]
        %v2002 = vld [vmem:[%s450 + $0x8] sm:$0xff]
        %2005 = vrot.lane.b32.xlu0 %v1993, 64
        %v2006 = vpop.permute.xlu0 %2005
        %2007 = vrot.lane.b32.xlu0 %v2000, 64
        %v2008 = vpop.permute.xlu0 %2007
        %2013 = vrot.lane.b32.xlu0 %v2001, 64
        %v2014 = vpop.permute.xlu0 %2013
        %2015 = vrot.lane.b32.xlu0 %v2002, 64
        %v2016 = vpop.permute.xlu0 %2015
        %v2019 = vsel %vm679, %v2006, %v2014
        %v2020 = vsel %vm679, %v2008, %v2016
        %v2023 = vrot.slane %v2019, 1
        %v2024 = vrot.slane %v2020, 1
        %v2025 = vsel %vm499, %v2023, %v2024
        %2026 = vrot.lane.b32.xlu0 %v2025, 80
        %v2027 = vpop.permute.xlu0 %2026
        %2028 = vrot.lane.b32.xlu0 %v2024, 80
        %v2029 = vpop.permute.xlu0 %2028
        %v2032 = vrot.slane %v2019, 2
        %v2033 = vrot.slane %v2020, 2
        %v2034 = vsel %vm1991, %v2032, %v2033
        %2035 = vrot.lane.b32.xlu0 %v2034, 32
        %v2036 = vpop.permute.xlu0 %2035
        %2037 = vrot.lane.b32.xlu0 %v2033, 32
        %v2038 = vpop.permute.xlu0 %2037
        %v2041 = vrot.slane %v2019, 3
        %v2042 = vrot.slane %v2020, 3
        %v2043 = vsel %vm1989, %v2041, %v2042
        %2044 = vrot.lane.b32.xlu0 %v2043, 112
        %v2045 = vpop.permute.xlu0 %2044
        %2046 = vrot.lane.b32.xlu0 %v2042, 112
        %v2047 = vpop.permute.xlu0 %2046
        %v2050 = vrot.slane %v2019, 4
        %v2051 = vrot.slane %v2020, 4
        %v2052 = vsel %vm1987, %v2050, %v2051
        %2053 = vrot.lane.b32.xlu0 %v2052, 64
        %v2054 = vpop.permute.xlu0 %2053
        %2055 = vrot.lane.b32.xlu0 %v2051, 64
        %v2056 = vpop.permute.xlu0 %2055
        %v2059 = vrot.slane %v2019, 5
        %v2060 = vrot.slane %v2020, 5
        %v2061 = vsel %vm1985, %v2059, %v2060
        %2062 = vrot.lane.b32.xlu0 %v2061, 16
        %v2063 = vpop.permute.xlu0 %2062
        %2064 = vrot.lane.b32.xlu0 %v2060, 16
        %v2065 = vpop.permute.xlu0 %2064
        %vm2068 = vcmask 654336
        %v2069 = vsel %vm2068, %v2019, %v2027
        %v2070 = vsel %vm2068, %v2020, %v2029
        %vm2071 = vcmask 261120
        %v2072 = vsel %vm2071, %v2027, %v2036
        %v2073 = vsel %vm2071, %v2029, %v2038
        %vm2074 = vcmask 916480
        %v2075 = vsel %vm2074, %v2072, %v2045
        %v2076 = vsel %vm2074, %v2073, %v2047
        %v2077 = vsel %vm679, %v2045, %v2054
        %v2078 = vsel %vm679, %v2047, %v2056
        %vm2079 = vcmask 130048
        %v2080 = vsel %vm2079, %v2054, %v2063
        %v2081 = vsel %vm2079, %v2056, %v2065
        %v2082 = vpack.c.bf16 %v2070, %v2069
        %v2083 = vpack.c.bf16 %v2076, %v2075
        %v2084 = vpack.c.bf16 %v2078, %v2077
        %v2085 = vpack.c.bf16 %v2081, %v2080
        %v2086 = vld [vmem:[%s7] sm:$0xf]
        %v2087 = vld [vmem:[%s7 + $0x4] sm:$0xf]
        %v2088 = vld [vmem:[%s7 + $0x8] sm:$0xf]
        %v2089 = vld [vmem:[%s7 + $0xc] sm:$0xf]
        %v2090 = vld [vmem:[%s7 + $0x10] sm:$0xf]
        %v2091 = vld [vmem:[%s7 + $0x14] sm:$0xf]
        %v2092 = vld [vmem:[%s7 + $0x18] sm:$0xf]
        %v2093 = vld [vmem:[%s7 + $0x1c] sm:$0xf]
        %v2094 = vld [vmem:[%s7 + $0x20] sm:$0xf]
        %v2095 = vld [vmem:[%s7 + $0x24] sm:$0xf]
        %v2096 = vld [vmem:[%s7 + $0x28] sm:$0xf]
        %v2097 = vld [vmem:[%s7 + $0x2c] sm:$0xf]
        %v2098 = vld [vmem:[%s7 + $0x30] sm:$0xf]
        %v2099 = vld [vmem:[%s7 + $0x34] sm:$0xf]
        %v2100 = vld [vmem:[%s7 + $0x38] sm:$0xf]
        %v2101 = vld [vmem:[%s7 + $0x3c] sm:$0xf]
        %v2102 = vld [vmem:[%s7 + $0x40] sm:$0xf]
        %v2103 = vld [vmem:[%s7 + $0x44] sm:$0xf]
        %v2104 = vld [vmem:[%s7 + $0x48] sm:$0xf]
        %v2105 = vld [vmem:[%s7 + $0x4c] sm:$0xf]
        %v2106 = vld [vmem:[%s7 + $0x50] sm:$0xf]
        %v2107 = vld [vmem:[%s7 + $0x54] sm:$0xf]
        %v2108 = vld [vmem:[%s7 + $0x58] sm:$0xf]
        %v2109 = vld [vmem:[%s7 + $0x5c] sm:$0xf]
        %v2110 = vld [vmem:[%s7 + $0x60] sm:$0xf]
        %v2111 = vld [vmem:[%s7 + $0x64] sm:$0xf]
        %v2112 = vld [vmem:[%s7 + $0x68] sm:$0xf]
        %v2113 = vld [vmem:[%s7 + $0x6c] sm:$0xf]
        %v2114 = vld [vmem:[%s7 + $0x70] sm:$0xf]
        %v2115 = vld [vmem:[%s7 + $0x74] sm:$0xf]
        %v2116 = vld [vmem:[%s7 + $0x78] sm:$0xf]
        %v2117 = vld [vmem:[%s7 + $0x7c] sm:$0xf]
        %v2118 = vld [vmem:[%s7 + $0x80] sm:$0xf]
        %v2119 = vld [vmem:[%s7 + $0x84] sm:$0xf]
        %v2120 = vld [vmem:[%s7 + $0x88] sm:$0xf]
        %v2121 = vld [vmem:[%s7 + $0x8c] sm:$0xf]
        %v2122 = vld [vmem:[%s7 + $0x90] sm:$0xf]
        %v2123 = vld [vmem:[%s7 + $0x94] sm:$0xf]
        %v2124 = vld [vmem:[%s7 + $0x98] sm:$0xf]
        %v2125 = vld [vmem:[%s7 + $0x9c] sm:$0xf]
        %v2126 = vld [vmem:[%s7 + $0xa0] sm:$0xf]
        %v2127 = vld [vmem:[%s7 + $0xa4] sm:$0xf]
        %v2128 = vld [vmem:[%s7 + $0xa8] sm:$0xf]
        %v2129 = vld [vmem:[%s7 + $0xac] sm:$0xf]
        %v2130 = vld [vmem:[%s7 + $0xb0] sm:$0xf]
        %v2131 = vld [vmem:[%s7 + $0xb4] sm:$0xf]
        %v2132 = vld [vmem:[%s7 + $0xb8] sm:$0xf]
        %v2133 = vld [vmem:[%s7 + $0xbc] sm:$0xf]
        %v2134 = vld [vmem:[%s7 + $0xc0] sm:$0xf]
        %v2135 = vld [vmem:[%s7 + $0xc4] sm:$0xf]
        %v2136 = vld [vmem:[%s7 + $0xc8] sm:$0xf]
        %v2137 = vld [vmem:[%s7 + $0xcc] sm:$0xf]
        %v2138 = vld [vmem:[%s7 + $0xd0] sm:$0xf]
        %v2139 = vld [vmem:[%s7 + $0xd4] sm:$0xf]
        %v2140 = vld [vmem:[%s7 + $0xd8] sm:$0xf]
        %v2141 = vld [vmem:[%s7 + $0xdc] sm:$0xf]
        %v2142 = vld [vmem:[%s7 + $0xe0] sm:$0xf]
        %v2143 = vld [vmem:[%s7 + $0xe4] sm:$0xf]
        %v2144 = vld [vmem:[%s7 + $0xe8] sm:$0xf]
        %v2145 = vld [vmem:[%s7 + $0xec] sm:$0xf]
        %v2146 = vld [vmem:[%s8] sm:$0x1]
        %v2148 = vlaneseq
        %v2149 = vshrl.u32 %v2148, 7
        %v2150 = vsub.s32 0, %v2149
        %v2151 = vrot.slane %v2146, %v2150
        %v2213 = vunpack.c.l.b16 %v2086
        %v2214 = vunpack.c.l.b16 %v2087
        %v2215 = vunpack.c.l.b16 %v2088
        %v2216 = vunpack.c.l.b16 %v2089
        %v2217 = vunpack.c.l.b16 %v2090
        %v2218 = vunpack.c.l.b16 %v2091
        %v2219 = vunpack.c.l.b16 %v2092
        %v2220 = vunpack.c.l.b16 %v2093
        %v2221 = vunpack.c.l.b16 %v2094
        %v2222 = vunpack.c.l.b16 %v2095
        %v2223 = vunpack.c.l.b16 %v2096
        %v2224 = vunpack.c.l.b16 %v2097
        %v2225 = vunpack.c.l.b16 %v2098
        %v2226 = vunpack.c.l.b16 %v2099
        %v2227 = vunpack.c.l.b16 %v2100
        %v2228 = vunpack.c.l.b16 %v2101
        %v2229 = vunpack.c.l.b16 %v2102
        %v2230 = vunpack.c.l.b16 %v2103
        %v2231 = vunpack.c.l.b16 %v2104
        %v2232 = vunpack.c.l.b16 %v2105
        %v2233 = vunpack.c.l.b16 %v2106
        %v2234 = vunpack.c.l.b16 %v2107
        %v2235 = vunpack.c.l.b16 %v2108
        %v2236 = vunpack.c.l.b16 %v2109
        %v2237 = vunpack.c.l.b16 %v2110
        %v2238 = vunpack.c.l.b16 %v2111
        %v2239 = vunpack.c.l.b16 %v2112
        %v2240 = vunpack.c.l.b16 %v2113
        %v2241 = vunpack.c.l.b16 %v2114
        %v2242 = vunpack.c.l.b16 %v2115
        %v2243 = vunpack.c.l.b16 %v2116
        %v2244 = vunpack.c.l.b16 %v2117
        %v2245 = vunpack.c.l.b16 %v2118
        %v2246 = vunpack.c.l.b16 %v2119
        %v2247 = vunpack.c.l.b16 %v2120
        %v2248 = vunpack.c.l.b16 %v2121
        %v2249 = vunpack.c.l.b16 %v2122
        %v2250 = vunpack.c.l.b16 %v2123
        %v2251 = vunpack.c.l.b16 %v2124
        %v2252 = vunpack.c.l.b16 %v2125
        %v2253 = vunpack.c.l.b16 %v2126
        %v2254 = vunpack.c.l.b16 %v2127
        %v2255 = vunpack.c.l.b16 %v2128
        %v2256 = vunpack.c.l.b16 %v2129
        %v2257 = vunpack.c.l.b16 %v2130
        %v2258 = vunpack.c.l.b16 %v2131
        %v2259 = vunpack.c.l.b16 %v2132
        %v2260 = vunpack.c.l.b16 %v2133
        %v2261 = vunpack.c.l.b16 %v2134
        %v2262 = vunpack.c.l.b16 %v2135
        %v2263 = vunpack.c.l.b16 %v2136
        %v2264 = vunpack.c.l.b16 %v2137
        %v2265 = vunpack.c.l.b16 %v2138
        %v2266 = vunpack.c.l.b16 %v2139
        %v2267 = vunpack.c.l.b16 %v2140
        %v2268 = vunpack.c.l.b16 %v2141
        %v2269 = vunpack.c.l.b16 %v2142
        %v2270 = vunpack.c.l.b16 %v2143
        %v2271 = vunpack.c.l.b16 %v2144
        %v2272 = vunpack.c.l.b16 %v2145
        %v2273 = vpack.c.b16 %v2214, %v2213
        %v2274 = vpack.c.b16 %v2216, %v2215
        %v2275 = vpack.c.b16 %v2218, %v2217
        %v2276 = vpack.c.b16 %v2220, %v2219
        %v2277 = vpack.c.b16 %v2222, %v2221
        %v2278 = vpack.c.b16 %v2224, %v2223
        %v2279 = vpack.c.b16 %v2226, %v2225
        %v2280 = vpack.c.b16 %v2228, %v2227
        %v2281 = vpack.c.b16 %v2230, %v2229
        %v2282 = vpack.c.b16 %v2232, %v2231
        %v2283 = vpack.c.b16 %v2234, %v2233
        %v2284 = vpack.c.b16 %v2236, %v2235
        %v2285 = vpack.c.b16 %v2238, %v2237
        %v2286 = vpack.c.b16 %v2240, %v2239
        %v2287 = vpack.c.b16 %v2242, %v2241
        %v2288 = vpack.c.b16 %v2244, %v2243
        %v2289 = vpack.c.b16 %v2246, %v2245
        %v2290 = vpack.c.b16 %v2248, %v2247
        %v2291 = vpack.c.b16 %v2250, %v2249
        %v2292 = vpack.c.b16 %v2252, %v2251
        %v2293 = vpack.c.b16 %v2254, %v2253
        %v2294 = vpack.c.b16 %v2256, %v2255
        %v2295 = vpack.c.b16 %v2258, %v2257
        %v2296 = vpack.c.b16 %v2260, %v2259
        %v2297 = vpack.c.b16 %v2262, %v2261
        %v2298 = vpack.c.b16 %v2264, %v2263
        %v2299 = vpack.c.b16 %v2266, %v2265
        %v2300 = vpack.c.b16 %v2268, %v2267
        %v2301 = vpack.c.b16 %v2270, %v2269
        %v2302 = vpack.c.b16 %v2272, %v2271
        %vm2333 = vcmask 785408
        %v2335 = vsel %vm2333, %v2085, 0
        %2337 = vmatprep.subr.bf16.mxu0 0
        %2338 = vmatpush1.bf16.msra.mxu0 %v2280
        %2339 = vmatprep.subr.bf16.mxu0 0
        %2340 = vmatpush1.bf16.msra.mxu0 %v2279
        %2341 = vmatprep.subr.bf16.mxu0 0
        %2342 = vmatpush1.bf16.msra.mxu0 %v2278
        %2343 = vmatprep.subr.bf16.mxu0 0
        %2344 = vmatpush1.bf16.msra.mxu0 %v2277
        %2345 = vmatprep.subr.bf16.mxu0 0
        %2346 = vmatpush1.bf16.msra.mxu0 %v2276
        %2347 = vmatprep.subr.bf16.mxu0 0
        %2348 = vmatpush1.bf16.msra.mxu0 %v2275
        %2349 = vmatprep.subr.bf16.mxu0 0
        %2350 = vmatpush1.bf16.msra.mxu0 %v2274
        %2351 = vmatprep.subr.bf16.mxu0 0
        %2352 = vmatpush1.bf16.msra.mxu0 %v2273
        %2353 = vmatprep.subr.bf16.mxu0 0
        %2354 = vmatpush2.bf16.msra.mxu0 %v2288
        %2355 = vmatprep.subr.bf16.mxu0 0
        %2356 = vmatpush2.bf16.msra.mxu0 %v2287
        %2357 = vmatprep.subr.bf16.mxu0 0
        %2358 = vmatpush2.bf16.msra.mxu0 %v2286
        %2359 = vmatprep.subr.bf16.mxu0 0
        %2360 = vmatpush2.bf16.msra.mxu0 %v2285
        %2361 = vmatprep.subr.bf16.mxu0 0
        %2362 = vmatpush2.bf16.msra.mxu0 %v2284
        %2363 = vmatprep.subr.bf16.mxu0 0
        %2364 = vmatpush2.bf16.msra.mxu0 %v2283
        %2365 = vmatprep.subr.bf16.mxu0 0
        %2366 = vmatpush2.bf16.msra.mxu0 %v2282
        %2367 = vmatprep.subr.bf16.mxu0 0
        %2368 = vmatpush2.bf16.msra.mxu0 %v2281
        %2369 = vmatprep.mubr.bf16.mxu0 %v2083
        %2370 = vmatmul.mubr.bf16.gmra.mxu0 %v2082
        %v2371 = vpop.f32.mrf.mxu0
        %v2372 = vadd.f32 %v2151, %v2371
        %v2373 = vpop.f32.mrf.mxu0
        %v2374 = vpop.f32.mrf.mxu0
        %v2375 = vadd.f32 %v2151, %v2374
        %v2376 = vpop.f32.mrf.mxu0
        %2377 = vdwg.mxu0
        %2378 = vmatprep.subr.bf16.mxu0 0
        %2379 = vmatpush1.bf16.msra.mxu0 %v2296
        %2380 = vmatprep.subr.bf16.mxu0 0
        %2381 = vmatpush1.bf16.msra.mxu0 %v2295
        %2382 = vmatprep.subr.bf16.mxu0 0
        %2383 = vmatpush1.bf16.msra.mxu0 %v2294
        %2384 = vmatprep.subr.bf16.mxu0 0
        %2385 = vmatpush1.bf16.msra.mxu0 %v2293
        %2386 = vmatprep.subr.bf16.mxu0 0
        %2387 = vmatpush1.bf16.msra.mxu0 %v2292
        %2388 = vmatprep.subr.bf16.mxu0 0
        %2389 = vmatpush1.bf16.msra.mxu0 %v2291
        %2390 = vmatprep.subr.bf16.mxu0 0
        %2391 = vmatpush1.bf16.msra.mxu0 %v2290
        %2392 = vmatprep.subr.bf16.mxu0 0
        %2393 = vmatpush1.bf16.msra.mxu0 %v2289
        %2394 = vmatprep.subr.bf16.mxu0 0
        %2395 = vmatpush2.bf16.msra.mxu0 0
        %2396 = vmatprep.subr.bf16.mxu0 0
        %2397 = vmatpush2.bf16.msra.mxu0 0
        %2398 = vmatprep.subr.bf16.mxu0 0
        %2399 = vmatpush2.bf16.msra.mxu0 %v2302
        %2400 = vmatprep.subr.bf16.mxu0 0
        %2401 = vmatpush2.bf16.msra.mxu0 %v2301
        %2402 = vmatprep.subr.bf16.mxu0 0
        %2403 = vmatpush2.bf16.msra.mxu0 %v2300
        %2404 = vmatprep.subr.bf16.mxu0 0
        %2405 = vmatpush2.bf16.msra.mxu0 %v2299
        %2406 = vmatprep.subr.bf16.mxu0 0
        %2407 = vmatpush2.bf16.msra.mxu0 %v2298
        %2408 = vmatprep.subr.bf16.mxu0 0
        %2409 = vmatpush2.bf16.msra.mxu0 %v2297
        %2410 = vmatprep.mubr.bf16.mxu0 %v2335
        %2411 = vmatmul.mubr.bf16.gmra.mxu0 %v2084
        %v2412 = vpop.f32.mrf.mxu0
        %v2413 = vadd.f32 %v2372, %v2412
        %v2414 = vpop.f32.mrf.mxu0
        %v2415 = vpop.f32.mrf.mxu0
        %v2416 = vadd.f32 %v2375, %v2415
        %v2417 = vpop.f32.mrf.mxu0
        %2418 = vdwg.mxu0
        %vm2419 = vcmp.gt.f32.partialorder %v2413, 0.0
        %vm2420 = vcmp.gt.f32.partialorder %v2416, 0.0
        %v2421 = vmul.f32 %v2413, 0.01
        %v2422 = vmul.f32 %v2416, 0.01
        %v2423 = vsel %vm2419, %v2413, %v2421
        %v2424 = vsel %vm2420, %v2416, %v2422
        %v2426 = vrot.slane %v2423, 1
        %2427 = vrot.lane.b32.xlu0 %v2426, 64
        %v2428 = vpop.permute.xlu0 %2427
        %v2430 = vrot.slane %v2423, 2
        %v2432 = vrot.slane %v2423, 3
        %2433 = vrot.lane.b32.xlu0 %v2432, 64
        %v2434 = vpop.permute.xlu0 %2433
        %v2436 = vrot.slane %v2423, 4
        %v2438 = vrot.slane %v2423, 5
        %2439 = vrot.lane.b32.xlu0 %v2438, 64
        %v2440 = vpop.permute.xlu0 %2439
        %v2442 = vrot.slane %v2423, 6
        %v2444 = vrot.slane %v2423, 7
        %2445 = vrot.lane.b32.xlu0 %v2444, 64
        %v2446 = vpop.permute.xlu0 %2445
        %v2449 = vrot.slane %v2424, 1
        %2450 = vrot.lane.b32.xlu0 %v2449, 64
        %v2451 = vpop.permute.xlu0 %2450
        %v2453 = vrot.slane %v2424, 2
        %v2455 = vsel %vm679, %v2423, %v2428
        %v2456 = vsel %vm679, %v2430, %v2434
        %v2457 = vsel %vm679, %v2436, %v2440
        %v2458 = vsel %vm679, %v2442, %v2446
        %v2459 = vsel %vm679, %v2424, %v2451
        %v2460 = vpack.c.bf16 %v2455, %v2455
        %v2461 = vpack.c.bf16 %v2456, %v2456
        %v2462 = vpack.c.bf16 %v2457, %v2457
        %v2463 = vpack.c.bf16 %v2458, %v2458
        %v2464 = vpack.c.bf16 %v2459, %v2459
        %v2465 = vpack.c.bf16 %v2453, %v2453
        %v2466 = vld [vmem:[%s9] sm:$0xf]
        %v2467 = vld [vmem:[%s9 + $0x4] sm:$0xf]
        %v2468 = vld [vmem:[%s9 + $0x8] sm:$0xf]
        %v2469 = vld [vmem:[%s9 + $0xc] sm:$0xf]
        %v2470 = vld [vmem:[%s9 + $0x10] sm:$0xf]
        %v2471 = vld [vmem:[%s9 + $0x14] sm:$0xf]
        %v2472 = vld [vmem:[%s9 + $0x18] sm:$0xf]
        %v2473 = vld [vmem:[%s9 + $0x1c] sm:$0xf]
        %v2474 = vld [vmem:[%s9 + $0x20] sm:$0xf]
        %v2475 = vld [vmem:[%s9 + $0x24] sm:$0xf]
        %v2476 = vld [vmem:[%s9 + $0x28] sm:$0xf]
        %v2477 = vld [vmem:[%s9 + $0x2c] sm:$0xf]
        %v2478 = vld [vmem:[%s9 + $0x30] sm:$0xf]
        %v2479 = vld [vmem:[%s9 + $0x34] sm:$0xf]
        %v2480 = vld [vmem:[%s9 + $0x38] sm:$0xf]
        %v2481 = vld [vmem:[%s9 + $0x3c] sm:$0xf]
        %v2482 = vld [vmem:[%s9 + $0x40] sm:$0xf]
        %v2483 = vld [vmem:[%s9 + $0x44] sm:$0xf]
        %v2484 = vld [vmem:[%s9 + $0x48] sm:$0xf]
        %v2485 = vld [vmem:[%s9 + $0x4c] sm:$0xf]
        %v2486 = vld [vmem:[%s9 + $0x50] sm:$0xf]
        %v2487 = vld [vmem:[%s9 + $0x54] sm:$0xf]
        %v2488 = vld [vmem:[%s9 + $0x58] sm:$0xf]
        %v2489 = vld [vmem:[%s9 + $0x5c] sm:$0xf]
        %v2490 = vld [vmem:[%s9 + $0x60] sm:$0xf]
        %v2491 = vld [vmem:[%s9 + $0x64] sm:$0xf]
        %v2492 = vld [vmem:[%s9 + $0x68] sm:$0xf]
        %v2493 = vld [vmem:[%s9 + $0x6c] sm:$0xf]
        %v2494 = vld [vmem:[%s9 + $0x70] sm:$0xf]
        %v2495 = vld [vmem:[%s9 + $0x74] sm:$0xf]
        %v2496 = vld [vmem:[%s9 + $0x78] sm:$0xf]
        %v2497 = vld [vmem:[%s9 + $0x7c] sm:$0xf]
        %v2498 = vld [vmem:[%s9 + $0x80] sm:$0xf]
        %v2499 = vld [vmem:[%s9 + $0x84] sm:$0xf]
        %v2500 = vld [vmem:[%s9 + $0x88] sm:$0xf]
        %v2501 = vld [vmem:[%s9 + $0x8c] sm:$0xf]
        %v2502 = vld [vmem:[%s9 + $0x90] sm:$0xf]
        %v2503 = vld [vmem:[%s9 + $0x94] sm:$0xf]
        %v2504 = vld [vmem:[%s9 + $0x98] sm:$0xf]
        %v2505 = vld [vmem:[%s9 + $0x9c] sm:$0xf]
        %v2506 = vld [vmem:[%s9 + $0xa0] sm:$0xf]
        %v2507 = vld [vmem:[%s9 + $0xa4] sm:$0xf]
        %v2508 = vld [vmem:[%s9 + $0xa8] sm:$0xf]
        %v2509 = vld [vmem:[%s9 + $0xac] sm:$0xf]
        %v2510 = vld [vmem:[%s9 + $0xb0] sm:$0xf]
        %v2511 = vld [vmem:[%s9 + $0xb4] sm:$0xf]
        %v2512 = vld [vmem:[%s9 + $0xb8] sm:$0xf]
        %v2513 = vld [vmem:[%s9 + $0xbc] sm:$0xf]
        %v2514 = vld [vmem:[%s9 + $0xc0] sm:$0xf]
        %v2515 = vld [vmem:[%s9 + $0xc4] sm:$0xf]
        %v2516 = vld [vmem:[%s9 + $0xc8] sm:$0xf]
        %v2517 = vld [vmem:[%s9 + $0xcc] sm:$0xf]
        %v2518 = vld [vmem:[%s9 + $0xd0] sm:$0xf]
        %v2519 = vld [vmem:[%s9 + $0xd4] sm:$0xf]
        %v2520 = vld [vmem:[%s9 + $0xd8] sm:$0xf]
        %v2521 = vld [vmem:[%s9 + $0xdc] sm:$0xf]
        %v2522 = vld [vmem:[%s9 + $0xe0] sm:$0xf]
        %v2523 = vld [vmem:[%s9 + $0xe4] sm:$0xf]
        %v2524 = vld [vmem:[%s9 + $0xe8] sm:$0xf]
        %v2525 = vld [vmem:[%s9 + $0xec] sm:$0xf]
        %v2526 = vld [vmem:[%s9 + $0xf0] sm:$0xf]
        %v2527 = vld [vmem:[%s9 + $0xf4] sm:$0xf]
        %v2528 = vld [vmem:[%s9 + $0xf8] sm:$0xf]
        %v2529 = vld [vmem:[%s9 + $0xfc] sm:$0xf]
        %v2530 = vld [vmem:[%s9 + $0x100] sm:$0xf]
        %v2531 = vld [vmem:[%s9 + $0x104] sm:$0xf]
        %v2532 = vld [vmem:[%s9 + $0x108] sm:$0xf]
        %v2533 = vld [vmem:[%s9 + $0x10c] sm:$0xf]
        %v2534 = vld [vmem:[%s9 + $0x110] sm:$0xf]
        %v2535 = vld [vmem:[%s9 + $0x114] sm:$0xf]
        %v2536 = vld [vmem:[%s9 + $0x118] sm:$0xf]
        %v2537 = vld [vmem:[%s9 + $0x11c] sm:$0xf]
        %v2538 = vld [vmem:[%s9 + $0x120] sm:$0xf]
        %v2539 = vld [vmem:[%s9 + $0x124] sm:$0xf]
        %v2540 = vld [vmem:[%s9 + $0x128] sm:$0xf]
        %v2541 = vld [vmem:[%s9 + $0x12c] sm:$0xf]
        %v2542 = vld [vmem:[%s9 + $0x130] sm:$0xf]
        %v2543 = vld [vmem:[%s9 + $0x134] sm:$0xf]
        %v2544 = vld [vmem:[%s9 + $0x138] sm:$0xf]
        %v2545 = vld [vmem:[%s9 + $0x13c] sm:$0xf]
        %v2546 = vld [vmem:[%s9 + $0x140] sm:$0xf]
        %v2547 = vld [vmem:[%s9 + $0x144] sm:$0xf]
        %v2548 = vld [vmem:[%s9 + $0x148] sm:$0xf]
        %v2549 = vld [vmem:[%s9 + $0x14c] sm:$0xf]
        %v2550 = vld [vmem:[%s9 + $0x150] sm:$0xf]
        %v2551 = vld [vmem:[%s9 + $0x154] sm:$0xf]
        %v2552 = vld [vmem:[%s9 + $0x158] sm:$0xf]
        %v2553 = vld [vmem:[%s9 + $0x15c] sm:$0xf]
        %v2554 = vld [vmem:[%s10] sm:$0x1]
        %v2643 = vunpack.c.l.b16 %v2466
        %v2644 = vunpack.c.l.b16 %v2467
        %v2645 = vunpack.c.l.b16 %v2468
        %v2646 = vunpack.c.l.b16 %v2469
        %v2647 = vunpack.c.l.b16 %v2470
        %v2648 = vunpack.c.l.b16 %v2471
        %v2649 = vunpack.c.l.b16 %v2472
        %v2650 = vunpack.c.l.b16 %v2473
        %v2651 = vunpack.c.l.b16 %v2474
        %v2652 = vunpack.c.l.b16 %v2475
        %v2653 = vunpack.c.l.b16 %v2476
        %v2654 = vunpack.c.l.b16 %v2477
        %v2655 = vunpack.c.l.b16 %v2478
        %v2656 = vunpack.c.l.b16 %v2479
        %v2657 = vunpack.c.l.b16 %v2480
        %v2658 = vunpack.c.l.b16 %v2481
        %v2659 = vunpack.c.l.b16 %v2482
        %v2660 = vunpack.c.l.b16 %v2483
        %v2661 = vunpack.c.l.b16 %v2484
        %v2662 = vunpack.c.l.b16 %v2485
        %v2663 = vunpack.c.l.b16 %v2486
        %v2664 = vunpack.c.l.b16 %v2487
        %v2665 = vunpack.c.l.b16 %v2488
        %v2666 = vunpack.c.l.b16 %v2489
        %v2667 = vunpack.c.l.b16 %v2490
        %v2668 = vunpack.c.l.b16 %v2491
        %v2669 = vunpack.c.l.b16 %v2492
        %v2670 = vunpack.c.l.b16 %v2493
        %v2671 = vunpack.c.l.b16 %v2494
        %v2672 = vunpack.c.l.b16 %v2495
        %v2673 = vunpack.c.l.b16 %v2496
        %v2674 = vunpack.c.l.b16 %v2497
        %v2675 = vunpack.c.l.b16 %v2498
        %v2676 = vunpack.c.l.b16 %v2499
        %v2677 = vunpack.c.l.b16 %v2500
        %v2678 = vunpack.c.l.b16 %v2501
        %v2679 = vunpack.c.l.b16 %v2502
        %v2680 = vunpack.c.l.b16 %v2503
        %v2681 = vunpack.c.l.b16 %v2504
        %v2682 = vunpack.c.l.b16 %v2505
        %v2683 = vunpack.c.l.b16 %v2506
        %v2684 = vunpack.c.l.b16 %v2507
        %v2685 = vunpack.c.l.b16 %v2508
        %v2686 = vunpack.c.l.b16 %v2509
        %v2687 = vunpack.c.l.b16 %v2510
        %v2688 = vunpack.c.l.b16 %v2511
        %v2689 = vunpack.c.l.b16 %v2512
        %v2690 = vunpack.c.l.b16 %v2513
        %v2691 = vunpack.c.l.b16 %v2514
        %v2692 = vunpack.c.l.b16 %v2515
        %v2693 = vunpack.c.l.b16 %v2516
        %v2694 = vunpack.c.l.b16 %v2517
        %v2695 = vunpack.c.l.b16 %v2518
        %v2696 = vunpack.c.l.b16 %v2519
        %v2697 = vunpack.c.l.b16 %v2520
        %v2698 = vunpack.c.l.b16 %v2521
        %v2699 = vunpack.c.l.b16 %v2522
        %v2700 = vunpack.c.l.b16 %v2523
        %v2701 = vunpack.c.l.b16 %v2524
        %v2702 = vunpack.c.l.b16 %v2525
        %v2703 = vunpack.c.l.b16 %v2526
        %v2704 = vunpack.c.l.b16 %v2527
        %v2705 = vunpack.c.l.b16 %v2528
        %v2706 = vunpack.c.l.b16 %v2529
        %v2707 = vunpack.c.l.b16 %v2530
        %v2708 = vunpack.c.l.b16 %v2531
        %v2709 = vunpack.c.l.b16 %v2532
        %v2710 = vunpack.c.l.b16 %v2533
        %v2711 = vunpack.c.l.b16 %v2534
        %v2712 = vunpack.c.l.b16 %v2535
        %v2713 = vunpack.c.l.b16 %v2536
        %v2714 = vunpack.c.l.b16 %v2537
        %v2715 = vunpack.c.l.b16 %v2538
        %v2716 = vunpack.c.l.b16 %v2539
        %v2717 = vunpack.c.l.b16 %v2540
        %v2718 = vunpack.c.l.b16 %v2541
        %v2719 = vunpack.c.l.b16 %v2542
        %v2720 = vunpack.c.l.b16 %v2543
        %v2721 = vunpack.c.l.b16 %v2544
        %v2722 = vunpack.c.l.b16 %v2545
        %v2723 = vunpack.c.l.b16 %v2546
        %v2724 = vunpack.c.l.b16 %v2547
        %v2725 = vunpack.c.l.b16 %v2548
        %v2726 = vunpack.c.l.b16 %v2549
        %v2727 = vunpack.c.l.b16 %v2550
        %v2728 = vunpack.c.l.b16 %v2551
        %v2729 = vunpack.c.l.b16 %v2552
        %v2730 = vunpack.c.l.b16 %v2553
        %v2731 = vpack.c.b16 %v2644, %v2643
        %v2732 = vpack.c.b16 %v2646, %v2645
        %v2733 = vpack.c.b16 %v2648, %v2647
        %v2734 = vpack.c.b16 %v2650, %v2649
        %v2735 = vpack.c.b16 %v2652, %v2651
        %v2736 = vpack.c.b16 %v2654, %v2653
        %v2737 = vpack.c.b16 %v2656, %v2655
        %v2738 = vpack.c.b16 %v2658, %v2657
        %v2739 = vpack.c.b16 %v2660, %v2659
        %v2740 = vpack.c.b16 %v2662, %v2661
        %v2741 = vpack.c.b16 %v2664, %v2663
        %v2742 = vpack.c.b16 %v2666, %v2665
        %v2743 = vpack.c.b16 %v2668, %v2667
        %v2744 = vpack.c.b16 %v2670, %v2669
        %v2745 = vpack.c.b16 %v2672, %v2671
        %v2746 = vpack.c.b16 %v2674, %v2673
        %v2747 = vpack.c.b16 %v2676, %v2675
        %v2748 = vpack.c.b16 %v2678, %v2677
        %v2749 = vpack.c.b16 %v2680, %v2679
        %v2750 = vpack.c.b16 %v2682, %v2681
        %v2751 = vpack.c.b16 %v2684, %v2683
        %v2752 = vpack.c.b16 %v2686, %v2685
        %v2753 = vpack.c.b16 %v2688, %v2687
        %v2754 = vpack.c.b16 %v2690, %v2689
        %v2755 = vpack.c.b16 %v2692, %v2691
        %v2756 = vpack.c.b16 %v2694, %v2693
        %v2757 = vpack.c.b16 %v2696, %v2695
        %v2758 = vpack.c.b16 %v2698, %v2697
        %v2759 = vpack.c.b16 %v2700, %v2699
        %v2760 = vpack.c.b16 %v2702, %v2701
        %v2761 = vpack.c.b16 %v2704, %v2703
        %v2762 = vpack.c.b16 %v2706, %v2705
        %v2763 = vpack.c.b16 %v2708, %v2707
        %v2764 = vpack.c.b16 %v2710, %v2709
        %v2765 = vpack.c.b16 %v2712, %v2711
        %v2766 = vpack.c.b16 %v2714, %v2713
        %v2767 = vpack.c.b16 %v2716, %v2715
        %v2768 = vpack.c.b16 %v2718, %v2717
        %v2769 = vpack.c.b16 %v2720, %v2719
        %v2770 = vpack.c.b16 %v2722, %v2721
        %v2771 = vpack.c.b16 %v2724, %v2723
        %v2772 = vpack.c.b16 %v2726, %v2725
        %v2773 = vpack.c.b16 %v2728, %v2727
        %v2774 = vpack.c.b16 %v2730, %v2729
        %v2820 = vsel %vm679, %v2465, 0
        %2822 = vmatprep.subr.bf16.mxu0 0
        %2823 = vmatpush1.bf16.msra.mxu0 %v2738
        %2824 = vmatprep.subr.bf16.mxu0 0
        %2825 = vmatpush1.bf16.msra.mxu0 %v2737
        %2826 = vmatprep.subr.bf16.mxu0 0
        %2827 = vmatpush1.bf16.msra.mxu0 %v2736
        %2828 = vmatprep.subr.bf16.mxu0 0
        %2829 = vmatpush1.bf16.msra.mxu0 %v2735
        %2830 = vmatprep.subr.bf16.mxu0 0
        %2831 = vmatpush1.bf16.msra.mxu0 %v2734
        %2832 = vmatprep.subr.bf16.mxu0 0
        %2833 = vmatpush1.bf16.msra.mxu0 %v2733
        %2834 = vmatprep.subr.bf16.mxu0 0
        %2835 = vmatpush1.bf16.msra.mxu0 %v2732
        %2836 = vmatprep.subr.bf16.mxu0 0
        %2837 = vmatpush1.bf16.msra.mxu0 %v2731
        %2838 = vmatprep.subr.bf16.mxu0 0
        %2839 = vmatpush2.bf16.msra.mxu0 %v2746
        %2840 = vmatprep.subr.bf16.mxu0 0
        %2841 = vmatpush2.bf16.msra.mxu0 %v2745
        %2842 = vmatprep.subr.bf16.mxu0 0
        %2843 = vmatpush2.bf16.msra.mxu0 %v2744
        %2844 = vmatprep.subr.bf16.mxu0 0
        %2845 = vmatpush2.bf16.msra.mxu0 %v2743
        %2846 = vmatprep.subr.bf16.mxu0 0
        %2847 = vmatpush2.bf16.msra.mxu0 %v2742
        %2848 = vmatprep.subr.bf16.mxu0 0
        %2849 = vmatpush2.bf16.msra.mxu0 %v2741
        %2850 = vmatprep.subr.bf16.mxu0 0
        %2851 = vmatpush2.bf16.msra.mxu0 %v2740
        %2852 = vmatprep.subr.bf16.mxu0 0
        %2853 = vmatpush2.bf16.msra.mxu0 %v2739
        %2854 = vmatprep.mubr.bf16.mxu0 %v2461
        %2855 = vmatmul.mubr.bf16.gmra.mxu0 %v2460
        %v2856 = vpop.f32.mrf.mxu0
        %v2857 = vadd.f32 %v2554, %v2856
        %v2858 = vpop.f32.mrf.mxu0
        %v2859 = vpop.f32.mrf.mxu0
        %v2860 = vpop.f32.mrf.mxu0
        %2861 = vdwg.mxu0
        %2862 = vmatprep.subr.bf16.mxu0 0
        %2863 = vmatpush1.bf16.msra.mxu0 %v2754
        %2864 = vmatprep.subr.bf16.mxu0 0
        %2865 = vmatpush1.bf16.msra.mxu0 %v2753
        %2866 = vmatprep.subr.bf16.mxu0 0
        %2867 = vmatpush1.bf16.msra.mxu0 %v2752
        %2868 = vmatprep.subr.bf16.mxu0 0
        %2869 = vmatpush1.bf16.msra.mxu0 %v2751
        %2870 = vmatprep.subr.bf16.mxu0 0
        %2871 = vmatpush1.bf16.msra.mxu0 %v2750
        %2872 = vmatprep.subr.bf16.mxu0 0
        %2873 = vmatpush1.bf16.msra.mxu0 %v2749
        %2874 = vmatprep.subr.bf16.mxu0 0
        %2875 = vmatpush1.bf16.msra.mxu0 %v2748
        %2876 = vmatprep.subr.bf16.mxu0 0
        %2877 = vmatpush1.bf16.msra.mxu0 %v2747
        %2878 = vmatprep.subr.bf16.mxu0 0
        %2879 = vmatpush2.bf16.msra.mxu0 %v2762
        %2880 = vmatprep.subr.bf16.mxu0 0
        %2881 = vmatpush2.bf16.msra.mxu0 %v2761
        %2882 = vmatprep.subr.bf16.mxu0 0
        %2883 = vmatpush2.bf16.msra.mxu0 %v2760
        %2884 = vmatprep.subr.bf16.mxu0 0
        %2885 = vmatpush2.bf16.msra.mxu0 %v2759
        %2886 = vmatprep.subr.bf16.mxu0 0
        %2887 = vmatpush2.bf16.msra.mxu0 %v2758
        %2888 = vmatprep.subr.bf16.mxu0 0
        %2889 = vmatpush2.bf16.msra.mxu0 %v2757
        %2890 = vmatprep.subr.bf16.mxu0 0
        %2891 = vmatpush2.bf16.msra.mxu0 %v2756
        %2892 = vmatprep.subr.bf16.mxu0 0
        %2893 = vmatpush2.bf16.msra.mxu0 %v2755
        %2894 = vmatprep.mubr.bf16.mxu0 %v2463
        %2895 = vmatmul.mubr.bf16.gmra.mxu0 %v2462
        %v2896 = vpop.f32.mrf.mxu0
        %v2897 = vadd.f32 %v2857, %v2896
        %v2898 = vpop.f32.mrf.mxu0
        %v2899 = vpop.f32.mrf.mxu0
        %v2900 = vpop.f32.mrf.mxu0
        %2901 = vdwg.mxu0
        %2902 = vmatprep.subr.bf16.mxu0 0
        %2903 = vmatpush1.bf16.msra.mxu0 %v2770
        %2904 = vmatprep.subr.bf16.mxu0 0
        %2905 = vmatpush1.bf16.msra.mxu0 %v2769
        %2906 = vmatprep.subr.bf16.mxu0 0
        %2907 = vmatpush1.bf16.msra.mxu0 %v2768
        %2908 = vmatprep.subr.bf16.mxu0 0
        %2909 = vmatpush1.bf16.msra.mxu0 %v2767
        %2910 = vmatprep.subr.bf16.mxu0 0
        %2911 = vmatpush1.bf16.msra.mxu0 %v2766
        %2912 = vmatprep.subr.bf16.mxu0 0
        %2913 = vmatpush1.bf16.msra.mxu0 %v2765
        %2914 = vmatprep.subr.bf16.mxu0 0
        %2915 = vmatpush1.bf16.msra.mxu0 %v2764
        %2916 = vmatprep.subr.bf16.mxu0 0
        %2917 = vmatpush1.bf16.msra.mxu0 %v2763
        %2918 = vmatprep.subr.bf16.mxu0 0
        %2919 = vmatpush2.bf16.msra.mxu0 0
        %2920 = vmatprep.subr.bf16.mxu0 0
        %2921 = vmatpush2.bf16.msra.mxu0 0
        %2922 = vmatprep.subr.bf16.mxu0 0
        %2923 = vmatpush2.bf16.msra.mxu0 0
        %2924 = vmatprep.subr.bf16.mxu0 0
        %2925 = vmatpush2.bf16.msra.mxu0 0
        %2926 = vmatprep.subr.bf16.mxu0 0
        %2927 = vmatpush2.bf16.msra.mxu0 %v2774
        %2928 = vmatprep.subr.bf16.mxu0 0
        %2929 = vmatpush2.bf16.msra.mxu0 %v2773
        %2930 = vmatprep.subr.bf16.mxu0 0
        %2931 = vmatpush2.bf16.msra.mxu0 %v2772
        %2932 = vmatprep.subr.bf16.mxu0 0
        %2933 = vmatpush2.bf16.msra.mxu0 %v2771
        %2934 = vmatprep.mubr.bf16.mxu0 %v2820
        %2935 = vmatmul.mubr.bf16.gmra.mxu0 %v2464
        %v2936 = vpop.f32.mrf.mxu0
        %v2937 = vadd.f32 %v2897, %v2936
        %v2938 = vpop.f32.mrf.mxu0
        %v2939 = vpop.f32.mrf.mxu0
        %v2940 = vpop.f32.mrf.mxu0
        %2941 = vdwg.mxu0
        %vm2942 = vcmp.gt.f32.partialorder %v2937, 0.0
        %v2943 = vmul.f32 %v2937, 0.01
        %v2944 = vsel %vm2942, %v2937, %v2943
        %v2945 = vpack.c.bf16 %v2944, %v2944
        %v2946 = vld [vmem:[%s11] sm:$0xf]
        %v2947 = vld [vmem:[%s11 + $0x4] sm:$0xf]
        %v2948 = vld [vmem:[%s11 + $0x8] sm:$0xf]
        %v2949 = vld [vmem:[%s11 + $0xc] sm:$0xf]
        %v2950 = vld [vmem:[%s11 + $0x10] sm:$0xf]
        %v2951 = vld [vmem:[%s11 + $0x14] sm:$0xf]
        %v2952 = vld [vmem:[%s11 + $0x18] sm:$0xf]
        %v2953 = vld [vmem:[%s11 + $0x1c] sm:$0xf]
        %v2962 = vunpack.c.l.b16 %v2946
        %v2963 = vunpack.c.l.b16 %v2947
        %v2964 = vunpack.c.l.b16 %v2948
        %v2965 = vunpack.c.l.b16 %v2949
        %v2966 = vunpack.c.l.b16 %v2950
        %v2967 = vunpack.c.l.b16 %v2951
        %v2968 = vunpack.c.l.b16 %v2952
        %v2969 = vunpack.c.l.b16 %v2953
        %v2970 = vpack.c.b16 %v2963, %v2962
        %v2971 = vpack.c.b16 %v2965, %v2964
        %v2972 = vpack.c.b16 %v2967, %v2966
        %v2973 = vpack.c.b16 %v2969, %v2968
        %v2979 = vsel %vm679, %v2945, 0
        %2981 = vmatprep.subr.bf16.mxu0 0
        %2982 = vmatpush1.bf16.msra.mxu0 0
        %2983 = vmatprep.subr.bf16.mxu0 0
        %2984 = vmatpush1.bf16.msra.mxu0 0
        %2985 = vmatprep.subr.bf16.mxu0 0
        %2986 = vmatpush1.bf16.msra.mxu0 0
        %2987 = vmatprep.subr.bf16.mxu0 0
        %2988 = vmatpush1.bf16.msra.mxu0 0
        %2989 = vmatprep.subr.bf16.mxu0 0
        %2990 = vmatpush1.bf16.msra.mxu0 %v2973
        %2991 = vmatprep.subr.bf16.mxu0 0
        %2992 = vmatpush1.bf16.msra.mxu0 %v2972
        %2993 = vmatprep.subr.bf16.mxu0 0
        %2994 = vmatpush1.bf16.msra.mxu0 %v2971
        %2995 = vmatprep.subr.bf16.mxu0 0
        %2996 = vmatpush1.bf16.msra.mxu0 %v2970
        %2997 = vmatprep.subr.bf16.mxu0 0
        %2998 = vmatpush2.bf16.msra.mxu0 0
        %2999 = vmatprep.subr.bf16.mxu0 0
        %3000 = vmatpush2.bf16.msra.mxu0 0
        %3001 = vmatprep.subr.bf16.mxu0 0
        %3002 = vmatpush2.bf16.msra.mxu0 0
        %3003 = vmatprep.subr.bf16.mxu0 0
        %3004 = vmatpush2.bf16.msra.mxu0 0
        %3005 = vmatprep.subr.bf16.mxu0 0
        %3006 = vmatpush2.bf16.msra.mxu0 0
        %3007 = vmatprep.subr.bf16.mxu0 0
        %3008 = vmatpush2.bf16.msra.mxu0 0
        %3009 = vmatprep.subr.bf16.mxu0 0
        %3010 = vmatpush2.bf16.msra.mxu0 0
        %3011 = vmatprep.subr.bf16.mxu0 0
        %3012 = vmatpush2.bf16.msra.mxu0 0
        %3013 = vmatprep.mubr.bf16.mxu0 0
        %3014 = vmatmul.mubr.bf16.gmra.mxu0 %v2979
        %v3015 = vpop.f32.mrf.mxu0
        %v3016 = vadd.f32 0.0, %v3015
        %v3017 = vpop.f32.mrf.mxu0
        %v3018 = vpop.f32.mrf.mxu0
        %v3019 = vpop.f32.mrf.mxu0
        %3020 = vdwg.mxu0
        %v3021 = vxor.u32 %v3016, 2147483648
        %v3022 = vmul.f32 %v3021, 1.442695
        %v3023 = vpow.pop %v3022
        %v3024 = vadd.f32 %v3023, 1.0
        %v3025 = vrcp.pop %v3024
        %v3026 = vmul.f32 1.0, %v3025
        %vm3027 = vcmask 483328
        %3028 = vst.msk [vmem:[%s435] sm:$0x1] %vm3027, %v3026
        %s3029 = sand.u32 %s301, 1
        %s3030 = scalar_lea.sflag [#allocation3], %s3029
        %s3031 = sand.u32 %s301, 1
        %s3032 = scalar_lea.vmem [#allocation2], %s3031
        // Predicated region
        $region69: #{tpu_custom_call.1} parent=67 // pred_check
          %p3033 = pneg %p311
        $region70: #{tpu_custom_call.1} parent=67 // pred_check_branch
          %3035 = sbr.rel (%p3033) target = $region72
        $region71: #{tpu_custom_call.1} parent=67 // pred_region
          %s3037 = ssub.s32 16, 16
          %3038 = vsyncadd %s3030, %s3037
          %s3039 = smul.addr %s26, 16
          %s3040 = scalar_lea.hbm %s12, %s3039
          %s3042 = sshll.u32 %s3032, 4
          %s3043 = int_to_ptr.vmem [resolvable:$true] %s3042
          %3045 = dma.vmem_to_hbm [thread:$0]  %s3043, 16, %s3040, %s3030
        $region72: #{tpu_custom_call.1} parent=67 // pred_fallthru
          _
      $region68: #{tpu_custom_call.1} parent=5 // pred_fallthru
        _
      %p3046 = scmp.le.s32.totalorder 2, %s21
      // Predicated region
      $region73: #{tpu_custom_call.1} parent=5 // pred_check
        %p3047 = pneg %p3046
      $region74: #{tpu_custom_call.1} parent=5 // pred_check_branch
        %3049 = sbr.rel (%p3047) target = $region76
      $region75: #{tpu_custom_call.1} parent=5 // pred_region
        %s3050 = ssub.s32 %s21, 2
        // Predicated region
        $region77: #{tpu_custom_call.1} parent=75 // pred_check
          %p3051 = pneg %p317
        $region78: #{tpu_custom_call.1} parent=75 // pred_check_branch
          %3053 = sbr.rel (%p3051) target = $region80
        $region79: #{tpu_custom_call.1} parent=75 // pred_region
          %s3054 = sand.u32 %s302, 1
          %s3055 = scalar_lea.sflag [#allocation3], %s3054
          %s3056 = sand.u32 %s302, 1
          %s3057 = scalar_lea.vmem [#allocation2], %s3056
          %3058 = dma.done %s3055, 16
        $region80: #{tpu_custom_call.1} parent=75 // pred_fallthru
          _
      $region76: #{tpu_custom_call.1} parent=5 // pred_fallthru
        _
    $region6: #{tpu_custom_call.1} parent=1 // loop_footer
      %s25 = sadd.s32 1, %s21
    $region7: #{tpu_custom_call.1} parent=1 // loop_footer_branch
      %20 = sbr.rel target = $region3
    $region8: #{tpu_custom_call.1} parent=1 // loop_exit
      _
    %3059 = vsyncpa [#allocation3], 1
    %s3060 = scalar_lea.sflag [#allocation3], 1
    %3061 = vsyncpa %s3060, 1

</llo_original>
